<compile_context>
chip_gen: v7x
topology: tpu7x:2x2x1
jax: 0.10.0
libtpu: 0.0.40
codegen_flags: <defaults>
</compile_context>

<pallas_src>
import functools

import jax
import jax.numpy as jnp
from jax.experimental import pallas as pl
from jax.experimental.pallas import tpu as pltpu

H1_PAD = 512   # layer-1 width 400 zero-padded to a lane multiple
H2_PAD = 384   # layer-2 width 300 zero-padded to a lane multiple


def critic_kernel(x_ref, u_ref, w1x_ref, w1u_ref, b1_ref,
                  w2_ref, b2_ref, w3_ref, b3_ref, o_ref):
    # layer 1: (TB,S)@(S,512) + (TB,A)@(A,512) + b1 -> ReLU  (f32 accumulate)
    h1 = jnp.dot(x_ref[...], w1x_ref[...], preferred_element_type=jnp.float32)
    h1 = h1 + jnp.dot(u_ref[...], w1u_ref[...], preferred_element_type=jnp.float32)
    h1 = jnp.maximum(h1 + b1_ref[...], 0.0)
    # layer 2: (TB,512)@(512,384) + b2 -> ReLU  (f32 accumulate)
    h2 = jnp.dot(h1.astype(jnp.bfloat16), w2_ref[...],
                 preferred_element_type=jnp.float32)
    h2 = jnp.maximum(h2 + b2_ref[...], 0.0)
    # layer 3 (N=1): VPU multiply + cross-lane reduction instead of an MXU pass
    q = jnp.sum(h2 * w3_ref[...], axis=-1, keepdims=True) + b3_ref[...]
    o_ref[...] = q.astype(o_ref.dtype)


@functools.partial(jax.jit, static_argnames=("tb",))
def critic_forward(x, u, kernel_params, *, tb=256):
    """x: (B, state_dim) f32, u: (B, action_dim) f32 -> (B, 1) f32."""
    w1x, w1u, b1, w2, b2, w3, b3 = kernel_params
    B, S = x.shape
    A = u.shape[1]
    n_tiles = pl.cdiv(B, tb)
    b_pad = n_tiles * tb

    # feed the MXU bf16 inputs; padded batch rows are zeros and get sliced off
    xb = jnp.pad(x.astype(jnp.bfloat16), ((0, b_pad - B), (0, 0)))
    ub = jnp.pad(u.astype(jnp.bfloat16), ((0, b_pad - B), (0, 0)))

    const = lambda shape: pl.BlockSpec(shape, lambda i: (0, 0))

    out = pl.pallas_call(
        critic_kernel,
        out_shape=jax.ShapeDtypeStruct((b_pad, 1), jnp.float32),
        grid=(n_tiles,),
        in_specs=[
            pl.BlockSpec((tb, S), lambda i: (i, 0)),      # x batch tile
            pl.BlockSpec((tb, A), lambda i: (i, 0)),      # u batch tile
            const(w1x.shape), const(w1u.shape), const(b1.shape),
            const(w2.shape), const(b2.shape),
            const(w3.shape), const(b3.shape),
        ],
        out_specs=pl.BlockSpec((tb, 1), lambda i: (i, 0)),
        compiler_params=pltpu.CompilerParams(
            dimension_semantics=("parallel",),
            vmem_limit_bytes=32 * 1024 * 1024),
    )(xb, ub, w1x, w1u, b1, w2, b2, w3, b3)
    return out[:B]


def init_params(key, state_dim, action_dim):
    """f32 'master' params matching torch.nn.Linear default init, logical dims."""
    dims = [(state_dim + action_dim, 400), (400, 300), (300, 1)]
    params = []
    for (fan_in, fan_out) in dims:
        key, kw, kb = jax.random.split(key, 3)
        bound = 1.0 / jnp.sqrt(jnp.float32(fan_in))
        w = jax.random.uniform(kw, (fan_in, fan_out), jnp.float32, -bound, bound)
        b = jax.random.uniform(kb, (1, fan_out), jnp.float32, -bound, bound)
        params += [w, b]
    return tuple(params)


def pack_params(params, state_dim, action_dim):
    """Build padded / bf16 kernel params from the f32 logical params."""
    w1, b1, w2, b2, w3, b3 = params
    S, A = state_dim, action_dim

    def pad2(a, rows, cols):
        return jnp.pad(a, ((0, rows - a.shape[0]), (0, cols - a.shape[1])))

    w1x = pad2(w1[:S, :], S, H1_PAD).astype(jnp.bfloat16)   # (S, 512)
    w1u = pad2(w1[S:, :], A, H1_PAD).astype(jnp.bfloat16)   # (A, 512)
    b1p = pad2(b1, 1, H1_PAD)                               # (1, 512) f32
    w2p = pad2(w2, H1_PAD, H2_PAD).astype(jnp.bfloat16)     # (512, 384)
    b2p = pad2(b2, 1, H2_PAD)                               # (1, 384) f32
    w3p = pad2(w3.T, 1, H2_PAD)                             # (1, 384) f32 row
    return (w1x, w1u, b1p, w2p, b2p, w3p, b3)


if __name__ == "__main__":
    state_dim, action_dim, batch = 16, 8, 2

    key = jax.random.PRNGKey(0)
    key, kx, ku, kp = jax.random.split(key, 4)
    x = jax.random.normal(kx, (batch, state_dim), jnp.float32)
    u = jax.random.normal(ku, (batch, action_dim), jnp.float32)

    params = init_params(kp, state_dim, action_dim)          # f32, logical dims
    kparams = pack_params(params, state_dim, action_dim)     # padded bf16/f32

    q = critic_forward(x, u, kparams)
    q = jax.block_until_ready(q)

    # pure-f32 reference (original PyTorch semantics); tolerance loosened for
    # the bf16 weights/activations used inside the kernel.
    w1, b1, w2, b2, w3, b3 = params
    xu = jnp.concatenate([x, u], axis=1)
    ref = jnp.maximum(xu @ w1 + b1, 0.0)
    ref = jnp.maximum(ref @ w2 + b2, 0.0)
    ref = ref @ w3 + b3

    assert q.shape == (batch, 1)
    assert jnp.allclose(q, ref, atol=3e-2, rtol=3e-2), (q, ref)

    print("KERNEL_OK")
</pallas_src>

<mosaic_0001>
module attributes {stable_mosaic.version = 11 : i64} {
  func.func @critic_kernel(%arg0: i32, %arg1: memref<256x16xbf16, #tpu.memory_space<vmem>>, %arg2: memref<256x8xbf16, #tpu.memory_space<vmem>>, %arg3: memref<16x512xbf16, #tpu.memory_space<vmem>>, %arg4: memref<8x512xbf16, #tpu.memory_space<vmem>>, %arg5: memref<1x512xf32, #tpu.memory_space<vmem>>, %arg6: memref<512x384xbf16, #tpu.memory_space<vmem>>, %arg7: memref<1x384xf32, #tpu.memory_space<vmem>>, %arg8: memref<1x384xf32, #tpu.memory_space<vmem>>, %arg9: memref<1x1xf32, #tpu.memory_space<vmem>>, %arg10: memref<256x1xf32, #tpu.memory_space<vmem>>) attributes {dimension_semantics = [#tpu.dimension_semantics<parallel>], iteration_bounds = array<i64: 1>, scalar_prefetch = 0 : i64, scratch_operands = 0 : i64, tpu.core_type = #tpu.core_type<tc>, window_params = [{transform_indices = @transform_0, window_bounds = array<i64: 256, 16>}, {transform_indices = @transform_1, window_bounds = array<i64: 256, 8>}, {pipeline_mode = #tpu.pipeline_mode<synchronous>, transform_indices = @transform_2, window_bounds = array<i64: 16, 512>}, {pipeline_mode = #tpu.pipeline_mode<synchronous>, transform_indices = @transform_3, window_bounds = array<i64: 8, 512>}, {pipeline_mode = #tpu.pipeline_mode<synchronous>, transform_indices = @transform_4, window_bounds = array<i64: 1, 512>}, {pipeline_mode = #tpu.pipeline_mode<synchronous>, transform_indices = @transform_5, window_bounds = array<i64: 512, 384>}, {pipeline_mode = #tpu.pipeline_mode<synchronous>, transform_indices = @transform_6, window_bounds = array<i64: 1, 384>}, {pipeline_mode = #tpu.pipeline_mode<synchronous>, transform_indices = @transform_7, window_bounds = array<i64: 1, 384>}, {pipeline_mode = #tpu.pipeline_mode<synchronous>, transform_indices = @transform_8, window_bounds = array<i64: 1, 1>}, {transform_indices = @transform_9, window_bounds = array<i64: 256, 1>}]} {
    %c0 = arith.constant 0 : index
    %c0_0 = arith.constant 0 : index
    %0 = vector.load %arg1[%c0, %c0_0] : memref<256x16xbf16, #tpu.memory_space<vmem>>, vector<256x16xbf16>
    %c0_1 = arith.constant 0 : index
    %c0_2 = arith.constant 0 : index
    %1 = vector.load %arg3[%c0_1, %c0_2] : memref<16x512xbf16, #tpu.memory_space<vmem>>, vector<16x512xbf16>
    %cst = arith.constant dense<0.000000e+00> : vector<256x512xf32>
    %2 = tpu.matmul %0, %1, %cst {dimension_numbers = #tpu.dot_dimension_numbers<[1], [0], [0], [1], [0, 0, 1, 1], [], []>} : vector<256x16xbf16>, vector<16x512xbf16>, vector<256x512xf32> -> vector<256x512xf32>
    %c0_3 = arith.constant 0 : index
    %c0_4 = arith.constant 0 : index
    %3 = vector.load %arg2[%c0_3, %c0_4] : memref<256x8xbf16, #tpu.memory_space<vmem>>, vector<256x8xbf16>
    %c0_5 = arith.constant 0 : index
    %c0_6 = arith.constant 0 : index
    %4 = vector.load %arg4[%c0_5, %c0_6] : memref<8x512xbf16, #tpu.memory_space<vmem>>, vector<8x512xbf16>
    %cst_7 = arith.constant dense<0.000000e+00> : vector<256x512xf32>
    %5 = tpu.matmul %3, %4, %cst_7 {dimension_numbers = #tpu.dot_dimension_numbers<[1], [0], [0], [1], [0, 0, 1, 1], [], []>} : vector<256x8xbf16>, vector<8x512xbf16>, vector<256x512xf32> -> vector<256x512xf32>
    %6 = arith.addf %2, %5 : vector<256x512xf32>
    %c0_8 = arith.constant 0 : index
    %c0_9 = arith.constant 0 : index
    %7 = vector.load %arg5[%c0_8, %c0_9] : memref<1x512xf32, #tpu.memory_space<vmem>>, vector<1x512xf32>
    %8 = vector.broadcast %7 : vector<1x512xf32> to vector<256x512xf32>
    %9 = arith.addf %6, %8 : vector<256x512xf32>
    %cst_10 = arith.constant 0.000000e+00 : f32
    %10 = vector.broadcast %cst_10 : f32 to vector<256x512xf32>
    %11 = arith.maximumf %9, %10 : vector<256x512xf32>
    %12 = arith.truncf %11 : vector<256x512xf32> to vector<256x512xbf16>
    %c0_11 = arith.constant 0 : index
    %c0_12 = arith.constant 0 : index
    %13 = vector.load %arg6[%c0_11, %c0_12] : memref<512x384xbf16, #tpu.memory_space<vmem>>, vector<512x384xbf16>
    %cst_13 = arith.constant dense<0.000000e+00> : vector<256x384xf32>
    %14 = tpu.matmul %12, %13, %cst_13 {dimension_numbers = #tpu.dot_dimension_numbers<[1], [0], [0], [1], [0, 0, 1, 1], [], []>} : vector<256x512xbf16>, vector<512x384xbf16>, vector<256x384xf32> -> vector<256x384xf32>
    %c0_14 = arith.constant 0 : index
    %c0_15 = arith.constant 0 : index
    %15 = vector.load %arg7[%c0_14, %c0_15] : memref<1x384xf32, #tpu.memory_space<vmem>>, vector<1x384xf32>
    %16 = vector.broadcast %15 : vector<1x384xf32> to vector<256x384xf32>
    %17 = arith.addf %14, %16 : vector<256x384xf32>
    %cst_16 = arith.constant 0.000000e+00 : f32
    %18 = vector.broadcast %cst_16 : f32 to vector<256x384xf32>
    %19 = arith.maximumf %17, %18 : vector<256x384xf32>
    %c0_17 = arith.constant 0 : index
    %c0_18 = arith.constant 0 : index
    %20 = vector.load %arg8[%c0_17, %c0_18] : memref<1x384xf32, #tpu.memory_space<vmem>>, vector<1x384xf32>
    %21 = vector.broadcast %20 : vector<1x384xf32> to vector<256x384xf32>
    %22 = arith.mulf %19, %21 : vector<256x384xf32>
    %cst_19 = arith.constant dense<0.000000e+00> : vector<256xf32>
    %23 = vector.multi_reduction <add>, %22, %cst_19 [1] : vector<256x384xf32> to vector<256xf32>
    %24 = vector.shape_cast %23 : vector<256xf32> to vector<256x1xf32>
    %c0_20 = arith.constant 0 : index
    %c0_21 = arith.constant 0 : index
    %25 = vector.load %arg9[%c0_20, %c0_21] : memref<1x1xf32, #tpu.memory_space<vmem>>, vector<1x1xf32>
    %26 = vector.broadcast %25 : vector<1x1xf32> to vector<256x1xf32>
    %27 = arith.addf %24, %26 : vector<256x1xf32>
    %c0_22 = arith.constant 0 : index
    %c0_23 = arith.constant 0 : index
    %28 = vector.load %arg10[%c0_22, %c0_23] : memref<256x1xf32, #tpu.memory_space<vmem>>, vector<256x1xf32>
    tpu.vector_store %arg10[%c0_22, %c0_23], %27 {strides = array<i32>} : memref<256x1xf32, #tpu.memory_space<vmem>>, vector<256x1xf32>,
    return
  }
  func.func @transform_0(%arg0: i32) -> (i32, i32) {
    %c0_i32 = arith.constant 0 : i32
    %c0_i32_0 = arith.constant 0 : i32
    return %arg0, %c0_i32 : i32, i32
  }
  func.func @transform_1(%arg0: i32) -> (i32, i32) {
    %c0_i32 = arith.constant 0 : i32
    %c0_i32_0 = arith.constant 0 : i32
    return %arg0, %c0_i32 : i32, i32
  }
  func.func @transform_2(%arg0: i32) -> (i32, i32) {
    %c0_i32 = arith.constant 0 : i32
    %c0_i32_0 = arith.constant 0 : i32
    %c0_i32_1 = arith.constant 0 : i32
    return %c0_i32, %c0_i32_0 : i32, i32
  }
  func.func @transform_3(%arg0: i32) -> (i32, i32) {
    %c0_i32 = arith.constant 0 : i32
    %c0_i32_0 = arith.constant 0 : i32
    %c0_i32_1 = arith.constant 0 : i32
    return %c0_i32, %c0_i32_0 : i32, i32
  }
  func.func @transform_4(%arg0: i32) -> (i32, i32) {
    %c0_i32 = arith.constant 0 : i32
    %c0_i32_0 = arith.constant 0 : i32
    %c0_i32_1 = arith.constant 0 : i32
    return %c0_i32, %c0_i32_0 : i32, i32
  }
  func.func @transform_5(%arg0: i32) -> (i32, i32) {
    %c0_i32 = arith.constant 0 : i32
    %c0_i32_0 = arith.constant 0 : i32
    %c0_i32_1 = arith.constant 0 : i32
    return %c0_i32, %c0_i32_0 : i32, i32
  }
  func.func @transform_6(%arg0: i32) -> (i32, i32) {
    %c0_i32 = arith.constant 0 : i32
    %c0_i32_0 = arith.constant 0 : i32
    %c0_i32_1 = arith.constant 0 : i32
    return %c0_i32, %c0_i32_0 : i32, i32
  }
  func.func @transform_7(%arg0: i32) -> (i32, i32) {
    %c0_i32 = arith.constant 0 : i32
    %c0_i32_0 = arith.constant 0 : i32
    %c0_i32_1 = arith.constant 0 : i32
    return %c0_i32, %c0_i32_0 : i32, i32
  }
  func.func @transform_8(%arg0: i32) -> (i32, i32) {
    %c0_i32 = arith.constant 0 : i32
    %c0_i32_0 = arith.constant 0 : i32
    %c0_i32_1 = arith.constant 0 : i32
    return %c0_i32, %c0_i32_0 : i32, i32
  }
  func.func @transform_9(%arg0: i32) -> (i32, i32) {
    %c0_i32 = arith.constant 0 : i32
    %c0_i32_0 = arith.constant 0 : i32
    return %arg0, %c0_i32 : i32, i32
  }
}

</mosaic_0001>

<llo_original>
// kernel: critic_forward.1
$region0: #{critic_forward.1}
  #allocation0 [shape = 'u32[]', space=smem, size = 0x4, offset = 0x4, fixed_abs, tag = 'smem constant byte address 0x4 - core index']
  #allocation1 [shape = 'u32[144,128]{1,0:T(1,128)}', space=vmem, size = 0x12000, scoped, tag = 'internal scratch']
  #allocation2 [shape = 'f32[1,1]{1,0:T(1,128)S(1)}', space=vmem, size = 0x200, scoped, tag = 'scoped memory for critic_forward.1']
  %s0 = inlined_call_operand.vmem [shape: bf16[256,16], index: 0, kind: input, shape index: {}]
  %s1 = inlined_call_operand.vmem [shape: bf16[256,8], index: 1, kind: input, shape index: {}]
  %s2 = inlined_call_operand.vmem [shape: bf16[16,512], index: 2, kind: input, shape index: {}]
  %s3 = inlined_call_operand.vmem [shape: bf16[8,512], index: 3, kind: input, shape index: {}]
  %s4 = inlined_call_operand.vmem [shape: f32[1,512], index: 4, kind: input, shape index: {}]
  %s5 = inlined_call_operand.hbm [shape: bf16[512,384], index: 5, kind: input, shape index: {}]
  %s6 = inlined_call_operand.vmem [shape: f32[1,384], index: 6, kind: input, shape index: {}]
  %s7 = inlined_call_operand.vmem [shape: f32[1,384], index: 7, kind: input, shape index: {}]
  %s8 = inlined_call_operand.<no memory space> [shape: f32[1,1], index: 8, kind: input, shape index: {}]
  %s9 = inlined_call_operand.vmem [shape: f32[256,1], index: 9, kind: output, shape index: {}]
  %s10 = sld [smem:[#allocation0]]
  $region50: #{critic_forward.1} parent=0
    _
  %s12 = ssub.s32 1, %s10
  %s13 = scalar_select 0, %s12, %s10
  %v14 = vstv %s8
  %15 = vst [vmem:[#allocation2] sm:$0x1] %v14
  $region1: #{critic_forward.1} parent=0
    #allocation3 [shape = 'u8[393216]{0}', space=vmem, size = 0x60000, scoped, tag = 'input window, operand 5, single buffered']
    #allocation4 [shape = 's32[1]{0}', space=sflag, size = 0x4, scoped, tag = 'scoped memory for critic_forward.1']
    %16 = vsyncpa [#allocation4], 0
    // Predicated region
    $region2: #{critic_forward.1} parent=1 // pred_check
      _
    $region3: #{critic_forward.1} parent=1 // pred_check_branch
      %18 = sbr.rel (0) target = $region5
    $region4: #{critic_forward.1} parent=1 // pred_region
      _
    $region5: #{critic_forward.1} parent=1 // pred_fallthru
      _
    // Predicated region
    $region6: #{critic_forward.1} parent=1 // pred_check
      _
    $region7: #{critic_forward.1} parent=1 // pred_check_branch
      %20 = sbr.rel (0) target = $region9
    $region8: #{critic_forward.1} parent=1 // pred_region
      _
    $region9: #{critic_forward.1} parent=1 // pred_fallthru
      _
    // Predicated region
    $region10: #{critic_forward.1} parent=1 // pred_check
      _
    $region11: #{critic_forward.1} parent=1 // pred_check_branch
      %22 = sbr.rel (0) target = $region13
    $region12: #{critic_forward.1} parent=1 // pred_region
      _
    $region13: #{critic_forward.1} parent=1 // pred_fallthru
      _
    // Predicated region
    $region14: #{critic_forward.1} parent=1 // pred_check
      _
    $region15: #{critic_forward.1} parent=1 // pred_check_branch
      %24 = sbr.rel (0) target = $region17
    $region16: #{critic_forward.1} parent=1 // pred_region
      _
    $region17: #{critic_forward.1} parent=1 // pred_fallthru
      _
    // Predicated region
    $region18: #{critic_forward.1} parent=1 // pred_check
      _
    $region19: #{critic_forward.1} parent=1 // pred_check_branch
      %26 = sbr.rel (0) target = $region21
    $region20: #{critic_forward.1} parent=1 // pred_region
      _
    $region21: #{critic_forward.1} parent=1 // pred_fallthru
      _
    // Predicated region
    $region22: #{critic_forward.1} parent=1 // pred_check
      _
    $region23: #{critic_forward.1} parent=1 // pred_check_branch
      %28 = sbr.rel (0) target = $region25
    $region24: #{critic_forward.1} parent=1 // pred_region
      %s30 = ssub.s32 12288, 12288
      %31 = vsyncadd [#allocation4], %s30
      %s32 = sshll.u32 [#allocation3], 4
      %s33 = int_to_ptr.vmem [resolvable:$true] %s32
      %38 = dma.hbm_to_vmem [thread:$0]  %s5, 12288, %s33, [#allocation4], 192, 192, 12
    $region25: #{critic_forward.1} parent=1 // pred_fallthru
      _
    // Predicated region
    $region26: #{critic_forward.1} parent=1 // pred_check
      _
    $region27: #{critic_forward.1} parent=1 // pred_check_branch
      %40 = sbr.rel (0) target = $region29
    $region28: #{critic_forward.1} parent=1 // pred_region
      _
    $region29: #{critic_forward.1} parent=1 // pred_fallthru
      _
    // Predicated region
    $region30: #{critic_forward.1} parent=1 // pred_check
      _
    $region31: #{critic_forward.1} parent=1 // pred_check_branch
      %42 = sbr.rel (0) target = $region33
    $region32: #{critic_forward.1} parent=1 // pred_region
      _
    $region33: #{critic_forward.1} parent=1 // pred_fallthru
      _
    // Predicated region
    $region34: #{critic_forward.1} parent=1 // pred_check
      _
    $region35: #{critic_forward.1} parent=1 // pred_check_branch
      %44 = sbr.rel (0) target = $region37
    $region36: #{critic_forward.1} parent=1 // pred_region
      _
    $region37: #{critic_forward.1} parent=1 // pred_fallthru
      _
    // Predicated region
    $region38: #{critic_forward.1} parent=1 // pred_check
      _
    $region39: #{critic_forward.1} parent=1 // pred_check_branch
      %46 = sbr.rel (0) target = $region41
    $region40: #{critic_forward.1} parent=1 // pred_region
      %47 = dma.done [#allocation4], 12288
    $region41: #{critic_forward.1} parent=1 // pred_fallthru
      _
    %v49 = vld [vmem:[%s0] sm:$0xf]
    %v50 = vld [vmem:[%s0 + $0x4] sm:$0xf]
    %v51 = vld [vmem:[%s0 + $0x8] sm:$0xf]
    %v52 = vld [vmem:[%s0 + $0xc] sm:$0xf]
    %v53 = vld [vmem:[%s0 + $0x10] sm:$0xf]
    %v54 = vld [vmem:[%s0 + $0x14] sm:$0xf]
    %v55 = vld [vmem:[%s0 + $0x18] sm:$0xf]
    %v56 = vld [vmem:[%s0 + $0x1c] sm:$0xf]
    %v57 = vld [vmem:[%s0 + $0x20] sm:$0xf]
    %v58 = vld [vmem:[%s0 + $0x24] sm:$0xf]
    %v59 = vld [vmem:[%s0 + $0x28] sm:$0xf]
    %v60 = vld [vmem:[%s0 + $0x2c] sm:$0xf]
    %v61 = vld [vmem:[%s0 + $0x30] sm:$0xf]
    %v62 = vld [vmem:[%s0 + $0x34] sm:$0xf]
    %v63 = vld [vmem:[%s0 + $0x38] sm:$0xf]
    %v64 = vld [vmem:[%s0 + $0x3c] sm:$0xf]
    %v65 = vld [vmem:[%s0 + $0x40] sm:$0xf]
    %v66 = vld [vmem:[%s0 + $0x44] sm:$0xf]
    %v67 = vld [vmem:[%s0 + $0x48] sm:$0xf]
    %v68 = vld [vmem:[%s0 + $0x4c] sm:$0xf]
    %v69 = vld [vmem:[%s0 + $0x50] sm:$0xf]
    %v70 = vld [vmem:[%s0 + $0x54] sm:$0xf]
    %v71 = vld [vmem:[%s0 + $0x58] sm:$0xf]
    %v72 = vld [vmem:[%s0 + $0x5c] sm:$0xf]
    %v73 = vld [vmem:[%s0 + $0x60] sm:$0xf]
    %v74 = vld [vmem:[%s0 + $0x64] sm:$0xf]
    %v75 = vld [vmem:[%s0 + $0x68] sm:$0xf]
    %v76 = vld [vmem:[%s0 + $0x6c] sm:$0xf]
    %v77 = vld [vmem:[%s0 + $0x70] sm:$0xf]
    %v78 = vld [vmem:[%s0 + $0x74] sm:$0xf]
    %v79 = vld [vmem:[%s0 + $0x78] sm:$0xf]
    %v80 = vld [vmem:[%s0 + $0x7c] sm:$0xf]
    %v81 = vld [vmem:[%s2] sm:$0xff]
    %v82 = vld [vmem:[%s2 + $0x8] sm:$0xff]
    %v83 = vld [vmem:[%s2 + $0x10] sm:$0xff]
    %v84 = vld [vmem:[%s2 + $0x18] sm:$0xff]
    %v85 = vld [vmem:[%s1] sm:$0xf]
    %v86 = vld [vmem:[%s1 + $0x4] sm:$0xf]
    %v87 = vld [vmem:[%s1 + $0x8] sm:$0xf]
    %v88 = vld [vmem:[%s1 + $0xc] sm:$0xf]
    %v89 = vld [vmem:[%s1 + $0x10] sm:$0xf]
    %v90 = vld [vmem:[%s1 + $0x14] sm:$0xf]
    %v91 = vld [vmem:[%s1 + $0x18] sm:$0xf]
    %v92 = vld [vmem:[%s1 + $0x1c] sm:$0xf]
    %v93 = vld [vmem:[%s1 + $0x20] sm:$0xf]
    %v94 = vld [vmem:[%s1 + $0x24] sm:$0xf]
    %v95 = vld [vmem:[%s1 + $0x28] sm:$0xf]
    %v96 = vld [vmem:[%s1 + $0x2c] sm:$0xf]
    %v97 = vld [vmem:[%s1 + $0x30] sm:$0xf]
    %v98 = vld [vmem:[%s1 + $0x34] sm:$0xf]
    %v99 = vld [vmem:[%s1 + $0x38] sm:$0xf]
    %v100 = vld [vmem:[%s1 + $0x3c] sm:$0xf]
    %v101 = vld [vmem:[%s1 + $0x40] sm:$0xf]
    %v102 = vld [vmem:[%s1 + $0x44] sm:$0xf]
    %v103 = vld [vmem:[%s1 + $0x48] sm:$0xf]
    %v104 = vld [vmem:[%s1 + $0x4c] sm:$0xf]
    %v105 = vld [vmem:[%s1 + $0x50] sm:$0xf]
    %v106 = vld [vmem:[%s1 + $0x54] sm:$0xf]
    %v107 = vld [vmem:[%s1 + $0x58] sm:$0xf]
    %v108 = vld [vmem:[%s1 + $0x5c] sm:$0xf]
    %v109 = vld [vmem:[%s1 + $0x60] sm:$0xf]
    %v110 = vld [vmem:[%s1 + $0x64] sm:$0xf]
    %v111 = vld [vmem:[%s1 + $0x68] sm:$0xf]
    %v112 = vld [vmem:[%s1 + $0x6c] sm:$0xf]
    %v113 = vld [vmem:[%s1 + $0x70] sm:$0xf]
    %v114 = vld [vmem:[%s1 + $0x74] sm:$0xf]
    %v115 = vld [vmem:[%s1 + $0x78] sm:$0xf]
    %v116 = vld [vmem:[%s1 + $0x7c] sm:$0xf]
    %v117 = vld [vmem:[%s3] sm:$0xff]
    %v118 = vld [vmem:[%s3 + $0x8] sm:$0xff]
    %v151 = vunpack.c.l.b16 %v85
    %v152 = vunpack.c.l.b16 %v86
    %v153 = vunpack.c.l.b16 %v87
    %v154 = vunpack.c.l.b16 %v88
    %v155 = vunpack.c.l.b16 %v89
    %v156 = vunpack.c.l.b16 %v90
    %v157 = vunpack.c.l.b16 %v91
    %v158 = vunpack.c.l.b16 %v92
    %v159 = vunpack.c.l.b16 %v93
    %v160 = vunpack.c.l.b16 %v94
    %v161 = vunpack.c.l.b16 %v95
    %v162 = vunpack.c.l.b16 %v96
    %v163 = vunpack.c.l.b16 %v97
    %v164 = vunpack.c.l.b16 %v98
    %v165 = vunpack.c.l.b16 %v99
    %v166 = vunpack.c.l.b16 %v100
    %v167 = vunpack.c.l.b16 %v101
    %v168 = vunpack.c.l.b16 %v102
    %v169 = vunpack.c.l.b16 %v103
    %v170 = vunpack.c.l.b16 %v104
    %v171 = vunpack.c.l.b16 %v105
    %v172 = vunpack.c.l.b16 %v106
    %v173 = vunpack.c.l.b16 %v107
    %v174 = vunpack.c.l.b16 %v108
    %v175 = vunpack.c.l.b16 %v109
    %v176 = vunpack.c.l.b16 %v110
    %v177 = vunpack.c.l.b16 %v111
    %v178 = vunpack.c.l.b16 %v112
    %v179 = vunpack.c.l.b16 %v113
    %v180 = vunpack.c.l.b16 %v114
    %v181 = vunpack.c.l.b16 %v115
    %v182 = vunpack.c.l.b16 %v116
    %v183 = vpack.c.b16 %v152, %v151
    %v184 = vpack.c.b16 %v154, %v153
    %v185 = vpack.c.b16 %v156, %v155
    %v186 = vpack.c.b16 %v158, %v157
    %v187 = vpack.c.b16 %v160, %v159
    %v188 = vpack.c.b16 %v162, %v161
    %v189 = vpack.c.b16 %v164, %v163
    %v190 = vpack.c.b16 %v166, %v165
    %v191 = vpack.c.b16 %v168, %v167
    %v192 = vpack.c.b16 %v170, %v169
    %v193 = vpack.c.b16 %v172, %v171
    %v194 = vpack.c.b16 %v174, %v173
    %v195 = vpack.c.b16 %v176, %v175
    %v196 = vpack.c.b16 %v178, %v177
    %v197 = vpack.c.b16 %v180, %v179
    %v198 = vpack.c.b16 %v182, %v181
    %v201 = vunpack.c.l.b16 %v117
    %v202 = vunpack.c.h.b16 %v117
    %v203 = vunpack.c.l.b16 %v118
    %v204 = vunpack.c.h.b16 %v118
    %v205 = vpack.c.b16 %v201, %v201
    %v206 = vpack.c.b16 %v202, %v202
    %v207 = vpack.c.b16 %v203, %v203
    %v208 = vpack.c.b16 %v204, %v204
    %vm209 = vcmask 64512
    %v211 = vsel %vm209, %v183, 0
    %v214 = vsel %vm209, %v184, 0
    %v217 = vsel %vm209, %v185, 0
    %v220 = vsel %vm209, %v186, 0
    %v223 = vsel %vm209, %v187, 0
    %v226 = vsel %vm209, %v188, 0
    %v229 = vsel %vm209, %v189, 0
    %v232 = vsel %vm209, %v190, 0
    %v235 = vsel %vm209, %v191, 0
    %v238 = vsel %vm209, %v192, 0
    %v241 = vsel %vm209, %v193, 0
    %v244 = vsel %vm209, %v194, 0
    %v247 = vsel %vm209, %v195, 0
    %v250 = vsel %vm209, %v196, 0
    %v253 = vsel %vm209, %v197, 0
    %v256 = vsel %vm209, %v198, 0
    %vm258 = vcmask 1043456
    %v260 = vsel %vm258, %v205, 0
    %v263 = vsel %vm258, %v206, 0
    %v266 = vsel %vm258, %v207, 0
    %v269 = vsel %vm258, %v208, 0
    %271 = vmatprep.subr.bf16.mxu0 %v263
    %272 = vmatpush1.bf16.msra.mxu0 %v260
    %273 = vmatprep.subr.bf16.mxu0 0
    %274 = vmatpush1.bf16.msra.mxu0 0
    %275 = vmatprep.subr.bf16.mxu0 0
    %276 = vmatpush1.bf16.msra.mxu0 0
    %277 = vmatprep.subr.bf16.mxu0 0
    %278 = vmatpush1.bf16.msra.mxu0 0
    %279 = vmatprep.subr.bf16.mxu0 0
    %280 = vmatpush1.bf16.msra.mxu0 0
    %281 = vmatprep.subr.bf16.mxu0 0
    %282 = vmatpush1.bf16.msra.mxu0 0
    %283 = vmatprep.subr.bf16.mxu0 0
    %284 = vmatpush1.bf16.msra.mxu0 0
    %285 = vmatprep.subr.bf16.mxu0 0
    %286 = vmatpush1.bf16.msra.mxu0 0
    %287 = vmatprep.subr.bf16.mxu0 0
    %288 = vmatpush1.bf16.msra.mxu0 0
    %289 = vmatprep.subr.bf16.mxu0 0
    %290 = vmatpush1.bf16.msra.mxu0 0
    %291 = vmatprep.subr.bf16.mxu0 0
    %292 = vmatpush1.bf16.msra.mxu0 0
    %293 = vmatprep.subr.bf16.mxu0 0
    %294 = vmatpush1.bf16.msra.mxu0 0
    %295 = vmatprep.subr.bf16.mxu0 0
    %296 = vmatpush1.bf16.msra.mxu0 0
    %297 = vmatprep.subr.bf16.mxu0 0
    %298 = vmatpush1.bf16.msra.mxu0 0
    %299 = vmatprep.subr.bf16.mxu0 0
    %300 = vmatpush1.bf16.msra.mxu0 0
    %301 = vmatprep.subr.bf16.mxu0 0
    %302 = vmatpush1.bf16.msra.mxu0 0
    %303 = vmatprep.mubr.bf16.mxu0 0
    %304 = vmatmul.mubr.bf16.gmra.mrb[0].mxu0 %v211
    %v305 = vpop.f32.mrb[0].mxu0
    %v306 = vadd.f32 0.0, %v305
    %v307 = vpop.f32.mrb[0].mxu0
    %v308 = vadd.f32 0.0, %v307
    %v309 = vpop.f32.mrb[0].mxu0
    %v310 = vadd.f32 0.0, %v309
    %v311 = vpop.f32.mrb[0].mxu0
    %v312 = vadd.f32 0.0, %v311
    %313 = vmatprep.mubr.bf16.mxu0 0
    %314 = vmatmul.mubr.bf16.gmra.mrb[0].mxu0 %v214
    %v315 = vpop.f32.mrb[0].mxu0
    %v316 = vadd.f32 0.0, %v315
    %v317 = vpop.f32.mrb[0].mxu0
    %v318 = vadd.f32 0.0, %v317
    %v319 = vpop.f32.mrb[0].mxu0
    %v320 = vadd.f32 0.0, %v319
    %v321 = vpop.f32.mrb[0].mxu0
    %v322 = vadd.f32 0.0, %v321
    %323 = vmatprep.mubr.bf16.mxu0 0
    %324 = vmatmul.mubr.bf16.gmra.mrb[0].mxu0 %v217
    %v325 = vpop.f32.mrb[0].mxu0
    %v326 = vadd.f32 0.0, %v325
    %v327 = vpop.f32.mrb[0].mxu0
    %v328 = vadd.f32 0.0, %v327
    %v329 = vpop.f32.mrb[0].mxu0
    %v330 = vadd.f32 0.0, %v329
    %v331 = vpop.f32.mrb[0].mxu0
    %v332 = vadd.f32 0.0, %v331
    %333 = vmatprep.mubr.bf16.mxu0 0
    %334 = vmatmul.mubr.bf16.gmra.mrb[0].mxu0 %v220
    %v335 = vpop.f32.mrb[0].mxu0
    %v336 = vadd.f32 0.0, %v335
    %v337 = vpop.f32.mrb[0].mxu0
    %v338 = vadd.f32 0.0, %v337
    %v339 = vpop.f32.mrb[0].mxu0
    %v340 = vadd.f32 0.0, %v339
    %v341 = vpop.f32.mrb[0].mxu0
    %v342 = vadd.f32 0.0, %v341
    %343 = vmatprep.mubr.bf16.mxu0 0
    %344 = vmatmul.mubr.bf16.gmra.mrb[0].mxu0 %v223
    %v345 = vpop.f32.mrb[0].mxu0
    %v346 = vadd.f32 0.0, %v345
    %v347 = vpop.f32.mrb[0].mxu0
    %v348 = vadd.f32 0.0, %v347
    %v349 = vpop.f32.mrb[0].mxu0
    %v350 = vadd.f32 0.0, %v349
    %v351 = vpop.f32.mrb[0].mxu0
    %v352 = vadd.f32 0.0, %v351
    %353 = vmatprep.mubr.bf16.mxu0 0
    %354 = vmatmul.mubr.bf16.gmra.mrb[0].mxu0 %v226
    %v355 = vpop.f32.mrb[0].mxu0
    %v356 = vadd.f32 0.0, %v355
    %v357 = vpop.f32.mrb[0].mxu0
    %v358 = vadd.f32 0.0, %v357
    %v359 = vpop.f32.mrb[0].mxu0
    %v360 = vadd.f32 0.0, %v359
    %v361 = vpop.f32.mrb[0].mxu0
    %v362 = vadd.f32 0.0, %v361
    %363 = vmatprep.mubr.bf16.mxu0 0
    %364 = vmatmul.mubr.bf16.gmra.mrb[0].mxu0 %v229
    %v365 = vpop.f32.mrb[0].mxu0
    %v366 = vadd.f32 0.0, %v365
    %v367 = vpop.f32.mrb[0].mxu0
    %v368 = vadd.f32 0.0, %v367
    %v369 = vpop.f32.mrb[0].mxu0
    %v370 = vadd.f32 0.0, %v369
    %v371 = vpop.f32.mrb[0].mxu0
    %v372 = vadd.f32 0.0, %v371
    %373 = vmatprep.mubr.bf16.mxu0 0
    %374 = vmatmul.mubr.bf16.gmra.mrb[0].mxu0 %v232
    %v375 = vpop.f32.mrb[0].mxu0
    %v376 = vadd.f32 0.0, %v375
    %v377 = vpop.f32.mrb[0].mxu0
    %v378 = vadd.f32 0.0, %v377
    %v379 = vpop.f32.mrb[0].mxu0
    %v380 = vadd.f32 0.0, %v379
    %v381 = vpop.f32.mrb[0].mxu0
    %v382 = vadd.f32 0.0, %v381
    %383 = vmatprep.mubr.bf16.mxu0 0
    %384 = vmatmul.mubr.bf16.gmra.mrb[0].mxu0 %v235
    %v385 = vpop.f32.mrb[0].mxu0
    %v386 = vadd.f32 0.0, %v385
    %v387 = vpop.f32.mrb[0].mxu0
    %v388 = vadd.f32 0.0, %v387
    %v389 = vpop.f32.mrb[0].mxu0
    %v390 = vadd.f32 0.0, %v389
    %v391 = vpop.f32.mrb[0].mxu0
    %v392 = vadd.f32 0.0, %v391
    %393 = vmatprep.mubr.bf16.mxu0 0
    %394 = vmatmul.mubr.bf16.gmra.mrb[0].mxu0 %v238
    %v395 = vpop.f32.mrb[0].mxu0
    %v396 = vadd.f32 0.0, %v395
    %v397 = vpop.f32.mrb[0].mxu0
    %v398 = vadd.f32 0.0, %v397
    %v399 = vpop.f32.mrb[0].mxu0
    %v400 = vadd.f32 0.0, %v399
    %v401 = vpop.f32.mrb[0].mxu0
    %v402 = vadd.f32 0.0, %v401
    %403 = vmatprep.mubr.bf16.mxu0 0
    %404 = vmatmul.mubr.bf16.gmra.mrb[0].mxu0 %v241
    %v405 = vpop.f32.mrb[0].mxu0
    %v406 = vadd.f32 0.0, %v405
    %v407 = vpop.f32.mrb[0].mxu0
    %v408 = vadd.f32 0.0, %v407
    %v409 = vpop.f32.mrb[0].mxu0
    %v410 = vadd.f32 0.0, %v409
    %v411 = vpop.f32.mrb[0].mxu0
    %v412 = vadd.f32 0.0, %v411
    %413 = vmatprep.mubr.bf16.mxu0 0
    %414 = vmatmul.mubr.bf16.gmra.mrb[0].mxu0 %v244
    %v415 = vpop.f32.mrb[0].mxu0
    %v416 = vadd.f32 0.0, %v415
    %v417 = vpop.f32.mrb[0].mxu0
    %v418 = vadd.f32 0.0, %v417
    %v419 = vpop.f32.mrb[0].mxu0
    %v420 = vadd.f32 0.0, %v419
    %v421 = vpop.f32.mrb[0].mxu0
    %v422 = vadd.f32 0.0, %v421
    %423 = vmatprep.mubr.bf16.mxu0 0
    %424 = vmatmul.mubr.bf16.gmra.mrb[0].mxu0 %v247
    %v425 = vpop.f32.mrb[0].mxu0
    %v426 = vadd.f32 0.0, %v425
    %v427 = vpop.f32.mrb[0].mxu0
    %v428 = vadd.f32 0.0, %v427
    %v429 = vpop.f32.mrb[0].mxu0
    %v430 = vadd.f32 0.0, %v429
    %v431 = vpop.f32.mrb[0].mxu0
    %v432 = vadd.f32 0.0, %v431
    %433 = vmatprep.mubr.bf16.mxu0 0
    %434 = vmatmul.mubr.bf16.gmra.mrb[0].mxu0 %v250
    %v435 = vpop.f32.mrb[0].mxu0
    %v436 = vadd.f32 0.0, %v435
    %v437 = vpop.f32.mrb[0].mxu0
    %v438 = vadd.f32 0.0, %v437
    %v439 = vpop.f32.mrb[0].mxu0
    %v440 = vadd.f32 0.0, %v439
    %v441 = vpop.f32.mrb[0].mxu0
    %v442 = vadd.f32 0.0, %v441
    %443 = vmatprep.mubr.bf16.mxu0 0
    %444 = vmatmul.mubr.bf16.gmra.mrb[0].mxu0 %v253
    %v445 = vpop.f32.mrb[0].mxu0
    %v446 = vadd.f32 0.0, %v445
    %v447 = vpop.f32.mrb[0].mxu0
    %v448 = vadd.f32 0.0, %v447
    %v449 = vpop.f32.mrb[0].mxu0
    %v450 = vadd.f32 0.0, %v449
    %v451 = vpop.f32.mrb[0].mxu0
    %v452 = vadd.f32 0.0, %v451
    %453 = vmatprep.mubr.bf16.mxu0 0
    %454 = vmatmul.mubr.bf16.gmra.mrb[0].mxu0 %v256
    %v455 = vpop.f32.mrb[0].mxu0
    %v456 = vadd.f32 0.0, %v455
    %v457 = vpop.f32.mrb[0].mxu0
    %v458 = vadd.f32 0.0, %v457
    %v459 = vpop.f32.mrb[0].mxu0
    %v460 = vadd.f32 0.0, %v459
    %v461 = vpop.f32.mrb[0].mxu0
    %v462 = vadd.f32 0.0, %v461
    %463 = vdwg.mxu0
    %464 = vmatprep.subr.bf16.mxu0 %v269
    %465 = vmatpush1.bf16.msra.mxu0 %v266
    %466 = vmatprep.subr.bf16.mxu0 0
    %467 = vmatpush1.bf16.msra.mxu0 0
    %468 = vmatprep.subr.bf16.mxu0 0
    %469 = vmatpush1.bf16.msra.mxu0 0
    %470 = vmatprep.subr.bf16.mxu0 0
    %471 = vmatpush1.bf16.msra.mxu0 0
    %472 = vmatprep.subr.bf16.mxu0 0
    %473 = vmatpush1.bf16.msra.mxu0 0
    %474 = vmatprep.subr.bf16.mxu0 0
    %475 = vmatpush1.bf16.msra.mxu0 0
    %476 = vmatprep.subr.bf16.mxu0 0
    %477 = vmatpush1.bf16.msra.mxu0 0
    %478 = vmatprep.subr.bf16.mxu0 0
    %479 = vmatpush1.bf16.msra.mxu0 0
    %480 = vmatprep.subr.bf16.mxu0 0
    %481 = vmatpush1.bf16.msra.mxu0 0
    %482 = vmatprep.subr.bf16.mxu0 0
    %483 = vmatpush1.bf16.msra.mxu0 0
    %484 = vmatprep.subr.bf16.mxu0 0
    %485 = vmatpush1.bf16.msra.mxu0 0
    %486 = vmatprep.subr.bf16.mxu0 0
    %487 = vmatpush1.bf16.msra.mxu0 0
    %488 = vmatprep.subr.bf16.mxu0 0
    %489 = vmatpush1.bf16.msra.mxu0 0
    %490 = vmatprep.subr.bf16.mxu0 0
    %491 = vmatpush1.bf16.msra.mxu0 0
    %492 = vmatprep.subr.bf16.mxu0 0
    %493 = vmatpush1.bf16.msra.mxu0 0
    %494 = vmatprep.subr.bf16.mxu0 0
    %495 = vmatpush1.bf16.msra.mxu0 0
    %496 = vmatprep.mubr.bf16.mxu0 0
    %497 = vmatmul.mubr.bf16.gmra.mrb[0].mxu0 %v211
    %v498 = vpop.f32.mrb[0].mxu0
    %v499 = vadd.f32 0.0, %v498
    %v500 = vpop.f32.mrb[0].mxu0
    %v501 = vadd.f32 0.0, %v500
    %v502 = vpop.f32.mrb[0].mxu0
    %v503 = vadd.f32 0.0, %v502
    %v504 = vpop.f32.mrb[0].mxu0
    %v505 = vadd.f32 0.0, %v504
    %506 = vmatprep.mubr.bf16.mxu0 0
    %507 = vmatmul.mubr.bf16.gmra.mrb[0].mxu0 %v214
    %v508 = vpop.f32.mrb[0].mxu0
    %v509 = vadd.f32 0.0, %v508
    %v510 = vpop.f32.mrb[0].mxu0
    %v511 = vadd.f32 0.0, %v510
    %v512 = vpop.f32.mrb[0].mxu0
    %v513 = vadd.f32 0.0, %v512
    %v514 = vpop.f32.mrb[0].mxu0
    %v515 = vadd.f32 0.0, %v514
    %516 = vmatprep.mubr.bf16.mxu0 0
    %517 = vmatmul.mubr.bf16.gmra.mrb[0].mxu0 %v217
    %v518 = vpop.f32.mrb[0].mxu0
    %v519 = vadd.f32 0.0, %v518
    %v520 = vpop.f32.mrb[0].mxu0
    %v521 = vadd.f32 0.0, %v520
    %v522 = vpop.f32.mrb[0].mxu0
    %v523 = vadd.f32 0.0, %v522
    %v524 = vpop.f32.mrb[0].mxu0
    %v525 = vadd.f32 0.0, %v524
    %526 = vmatprep.mubr.bf16.mxu0 0
    %527 = vmatmul.mubr.bf16.gmra.mrb[0].mxu0 %v220
    %v528 = vpop.f32.mrb[0].mxu0
    %v529 = vadd.f32 0.0, %v528
    %v530 = vpop.f32.mrb[0].mxu0
    %v531 = vadd.f32 0.0, %v530
    %v532 = vpop.f32.mrb[0].mxu0
    %v533 = vadd.f32 0.0, %v532
    %v534 = vpop.f32.mrb[0].mxu0
    %v535 = vadd.f32 0.0, %v534
    %536 = vmatprep.mubr.bf16.mxu0 0
    %537 = vmatmul.mubr.bf16.gmra.mrb[0].mxu0 %v223
    %v538 = vpop.f32.mrb[0].mxu0
    %v539 = vadd.f32 0.0, %v538
    %v540 = vpop.f32.mrb[0].mxu0
    %v541 = vadd.f32 0.0, %v540
    %v542 = vpop.f32.mrb[0].mxu0
    %v543 = vadd.f32 0.0, %v542
    %v544 = vpop.f32.mrb[0].mxu0
    %v545 = vadd.f32 0.0, %v544
    %546 = vmatprep.mubr.bf16.mxu0 0
    %547 = vmatmul.mubr.bf16.gmra.mrb[0].mxu0 %v226
    %v548 = vpop.f32.mrb[0].mxu0
    %v549 = vadd.f32 0.0, %v548
    %v550 = vpop.f32.mrb[0].mxu0
    %v551 = vadd.f32 0.0, %v550
    %v552 = vpop.f32.mrb[0].mxu0
    %v553 = vadd.f32 0.0, %v552
    %v554 = vpop.f32.mrb[0].mxu0
    %v555 = vadd.f32 0.0, %v554
    %556 = vmatprep.mubr.bf16.mxu0 0
    %557 = vmatmul.mubr.bf16.gmra.mrb[0].mxu0 %v229
    %v558 = vpop.f32.mrb[0].mxu0
    %v559 = vadd.f32 0.0, %v558
    %v560 = vpop.f32.mrb[0].mxu0
    %v561 = vadd.f32 0.0, %v560
    %v562 = vpop.f32.mrb[0].mxu0
    %v563 = vadd.f32 0.0, %v562
    %v564 = vpop.f32.mrb[0].mxu0
    %v565 = vadd.f32 0.0, %v564
    %566 = vmatprep.mubr.bf16.mxu0 0
    %567 = vmatmul.mubr.bf16.gmra.mrb[0].mxu0 %v232
    %v568 = vpop.f32.mrb[0].mxu0
    %v569 = vadd.f32 0.0, %v568
    %v570 = vpop.f32.mrb[0].mxu0
    %v571 = vadd.f32 0.0, %v570
    %v572 = vpop.f32.mrb[0].mxu0
    %v573 = vadd.f32 0.0, %v572
    %v574 = vpop.f32.mrb[0].mxu0
    %v575 = vadd.f32 0.0, %v574
    %576 = vmatprep.mubr.bf16.mxu0 0
    %577 = vmatmul.mubr.bf16.gmra.mrb[0].mxu0 %v235
    %v578 = vpop.f32.mrb[0].mxu0
    %v579 = vadd.f32 0.0, %v578
    %v580 = vpop.f32.mrb[0].mxu0
    %v581 = vadd.f32 0.0, %v580
    %v582 = vpop.f32.mrb[0].mxu0
    %v583 = vadd.f32 0.0, %v582
    %v584 = vpop.f32.mrb[0].mxu0
    %v585 = vadd.f32 0.0, %v584
    %586 = vmatprep.mubr.bf16.mxu0 0
    %587 = vmatmul.mubr.bf16.gmra.mrb[0].mxu0 %v238
    %v588 = vpop.f32.mrb[0].mxu0
    %v589 = vadd.f32 0.0, %v588
    %v590 = vpop.f32.mrb[0].mxu0
    %v591 = vadd.f32 0.0, %v590
    %v592 = vpop.f32.mrb[0].mxu0
    %v593 = vadd.f32 0.0, %v592
    %v594 = vpop.f32.mrb[0].mxu0
    %v595 = vadd.f32 0.0, %v594
    %596 = vmatprep.mubr.bf16.mxu0 0
    %597 = vmatmul.mubr.bf16.gmra.mrb[0].mxu0 %v241
    %v598 = vpop.f32.mrb[0].mxu0
    %v599 = vadd.f32 0.0, %v598
    %v600 = vpop.f32.mrb[0].mxu0
    %v601 = vadd.f32 0.0, %v600
    %v602 = vpop.f32.mrb[0].mxu0
    %v603 = vadd.f32 0.0, %v602
    %v604 = vpop.f32.mrb[0].mxu0
    %v605 = vadd.f32 0.0, %v604
    %606 = vmatprep.mubr.bf16.mxu0 0
    %607 = vmatmul.mubr.bf16.gmra.mrb[0].mxu0 %v244
    %v608 = vpop.f32.mrb[0].mxu0
    %v609 = vadd.f32 0.0, %v608
    %v610 = vpop.f32.mrb[0].mxu0
    %v611 = vadd.f32 0.0, %v610
    %v612 = vpop.f32.mrb[0].mxu0
    %v613 = vadd.f32 0.0, %v612
    %v614 = vpop.f32.mrb[0].mxu0
    %v615 = vadd.f32 0.0, %v614
    %616 = vmatprep.mubr.bf16.mxu0 0
    %617 = vmatmul.mubr.bf16.gmra.mrb[0].mxu0 %v247
    %v618 = vpop.f32.mrb[0].mxu0
    %v619 = vadd.f32 0.0, %v618
    %v620 = vpop.f32.mrb[0].mxu0
    %v621 = vadd.f32 0.0, %v620
    %v622 = vpop.f32.mrb[0].mxu0
    %v623 = vadd.f32 0.0, %v622
    %v624 = vpop.f32.mrb[0].mxu0
    %v625 = vadd.f32 0.0, %v624
    %626 = vmatprep.mubr.bf16.mxu0 0
    %627 = vmatmul.mubr.bf16.gmra.mrb[0].mxu0 %v250
    %v628 = vpop.f32.mrb[0].mxu0
    %v629 = vadd.f32 0.0, %v628
    %v630 = vpop.f32.mrb[0].mxu0
    %v631 = vadd.f32 0.0, %v630
    %v632 = vpop.f32.mrb[0].mxu0
    %v633 = vadd.f32 0.0, %v632
    %v634 = vpop.f32.mrb[0].mxu0
    %v635 = vadd.f32 0.0, %v634
    %636 = vmatprep.mubr.bf16.mxu0 0
    %637 = vmatmul.mubr.bf16.gmra.mrb[0].mxu0 %v253
    %v638 = vpop.f32.mrb[0].mxu0
    %v639 = vadd.f32 0.0, %v638
    %v640 = vpop.f32.mrb[0].mxu0
    %v641 = vadd.f32 0.0, %v640
    %v642 = vpop.f32.mrb[0].mxu0
    %v643 = vadd.f32 0.0, %v642
    %v644 = vpop.f32.mrb[0].mxu0
    %v645 = vadd.f32 0.0, %v644
    %646 = vmatprep.mubr.bf16.mxu0 0
    %647 = vmatmul.mubr.bf16.gmra.mrb[0].mxu0 %v256
    %v648 = vpop.f32.mrb[0].mxu0
    %v649 = vadd.f32 0.0, %v648
    %v650 = vpop.f32.mrb[0].mxu0
    %v651 = vadd.f32 0.0, %v650
    %v652 = vpop.f32.mrb[0].mxu0
    %v653 = vadd.f32 0.0, %v652
    %v654 = vpop.f32.mrb[0].mxu0
    %v655 = vadd.f32 0.0, %v654
    %656 = vdwg.mxu0
    %v689 = vunpack.c.l.b16 %v49
    %v690 = vunpack.c.l.b16 %v50
    %v691 = vunpack.c.l.b16 %v51
    %v692 = vunpack.c.l.b16 %v52
    %v693 = vunpack.c.l.b16 %v53
    %v694 = vunpack.c.l.b16 %v54
    %v695 = vunpack.c.l.b16 %v55
    %v696 = vunpack.c.l.b16 %v56
    %v697 = vunpack.c.l.b16 %v57
    %v698 = vunpack.c.l.b16 %v58
    %v699 = vunpack.c.l.b16 %v59
    %v700 = vunpack.c.l.b16 %v60
    %v701 = vunpack.c.l.b16 %v61
    %v702 = vunpack.c.l.b16 %v62
    %v703 = vunpack.c.l.b16 %v63
    %v704 = vunpack.c.l.b16 %v64
    %v705 = vunpack.c.l.b16 %v65
    %v706 = vunpack.c.l.b16 %v66
    %v707 = vunpack.c.l.b16 %v67
    %v708 = vunpack.c.l.b16 %v68
    %v709 = vunpack.c.l.b16 %v69
    %v710 = vunpack.c.l.b16 %v70
    %v711 = vunpack.c.l.b16 %v71
    %v712 = vunpack.c.l.b16 %v72
    %v713 = vunpack.c.l.b16 %v73
    %v714 = vunpack.c.l.b16 %v74
    %v715 = vunpack.c.l.b16 %v75
    %v716 = vunpack.c.l.b16 %v76
    %v717 = vunpack.c.l.b16 %v77
    %v718 = vunpack.c.l.b16 %v78
    %v719 = vunpack.c.l.b16 %v79
    %v720 = vunpack.c.l.b16 %v80
    %v721 = vpack.c.b16 %v690, %v689
    %v722 = vpack.c.b16 %v692, %v691
    %v723 = vpack.c.b16 %v694, %v693
    %v724 = vpack.c.b16 %v696, %v695
    %v725 = vpack.c.b16 %v698, %v697
    %v726 = vpack.c.b16 %v700, %v699
    %v727 = vpack.c.b16 %v702, %v701
    %v728 = vpack.c.b16 %v704, %v703
    %v729 = vpack.c.b16 %v706, %v705
    %v730 = vpack.c.b16 %v708, %v707
    %v731 = vpack.c.b16 %v710, %v709
    %v732 = vpack.c.b16 %v712, %v711
    %v733 = vpack.c.b16 %v714, %v713
    %v734 = vpack.c.b16 %v716, %v715
    %v735 = vpack.c.b16 %v718, %v717
    %v736 = vpack.c.b16 %v720, %v719
    %v741 = vunpack.c.l.b16 %v81
    %v742 = vunpack.c.h.b16 %v81
    %v743 = vunpack.c.l.b16 %v82
    %v744 = vunpack.c.h.b16 %v82
    %v745 = vunpack.c.l.b16 %v83
    %v746 = vunpack.c.h.b16 %v83
    %v747 = vunpack.c.l.b16 %v84
    %v748 = vunpack.c.h.b16 %v84
    %v749 = vpack.c.b16 %v745, %v741
    %v750 = vpack.c.b16 %v746, %v742
    %v751 = vpack.c.b16 %v747, %v743
    %v752 = vpack.c.b16 %v748, %v744
    %vm757 = vcmask 130048
    %v759 = vsel %vm757, %v721, 0
    %v762 = vsel %vm757, %v722, 0
    %v765 = vsel %vm757, %v723, 0
    %v768 = vsel %vm757, %v724, 0
    %v771 = vsel %vm757, %v725, 0
    %v774 = vsel %vm757, %v726, 0
    %v777 = vsel %vm757, %v727, 0
    %v780 = vsel %vm757, %v728, 0
    %v783 = vsel %vm757, %v729, 0
    %v786 = vsel %vm757, %v730, 0
    %v789 = vsel %vm757, %v731, 0
    %v792 = vsel %vm757, %v732, 0
    %v795 = vsel %vm757, %v733, 0
    %v798 = vsel %vm757, %v734, 0
    %v801 = vsel %vm757, %v735, 0
    %v804 = vsel %vm757, %v736, 0
    %806 = vmatprep.subr.bf16.mxu0 %v750
    %807 = vmatpush1.bf16.msra.mxu0 %v749
    %808 = vmatprep.subr.bf16.mxu0 0
    %809 = vmatpush1.bf16.msra.mxu0 0
    %810 = vmatprep.subr.bf16.mxu0 0
    %811 = vmatpush1.bf16.msra.mxu0 0
    %812 = vmatprep.subr.bf16.mxu0 0
    %813 = vmatpush1.bf16.msra.mxu0 0
    %814 = vmatprep.subr.bf16.mxu0 0
    %815 = vmatpush1.bf16.msra.mxu0 0
    %816 = vmatprep.subr.bf16.mxu0 0
    %817 = vmatpush1.bf16.msra.mxu0 0
    %818 = vmatprep.subr.bf16.mxu0 0
    %819 = vmatpush1.bf16.msra.mxu0 0
    %820 = vmatprep.subr.bf16.mxu0 0
    %821 = vmatpush1.bf16.msra.mxu0 0
    %822 = vmatprep.subr.bf16.mxu0 0
    %823 = vmatpush1.bf16.msra.mxu0 0
    %824 = vmatprep.subr.bf16.mxu0 0
    %825 = vmatpush1.bf16.msra.mxu0 0
    %826 = vmatprep.subr.bf16.mxu0 0
    %827 = vmatpush1.bf16.msra.mxu0 0
    %828 = vmatprep.subr.bf16.mxu0 0
    %829 = vmatpush1.bf16.msra.mxu0 0
    %830 = vmatprep.subr.bf16.mxu0 0
    %831 = vmatpush1.bf16.msra.mxu0 0
    %832 = vmatprep.subr.bf16.mxu0 0
    %833 = vmatpush1.bf16.msra.mxu0 0
    %834 = vmatprep.subr.bf16.mxu0 0
    %835 = vmatpush1.bf16.msra.mxu0 0
    %836 = vmatprep.subr.bf16.mxu0 0
    %837 = vmatpush1.bf16.msra.mxu0 0
    %838 = vmatprep.mubr.bf16.mxu0 0
    %839 = vmatmul.mubr.bf16.gmra.mrb[0].mxu0 %v759
    %v840 = vpop.f32.mrb[0].mxu0
    %v841 = vadd.f32 %v306, %v840
    %v842 = vpop.f32.mrb[0].mxu0
    %v843 = vadd.f32 %v308, %v842
    %v844 = vpop.f32.mrb[0].mxu0
    %v845 = vadd.f32 %v310, %v844
    %v846 = vpop.f32.mrb[0].mxu0
    %v847 = vadd.f32 %v312, %v846
    %848 = vmatprep.mubr.bf16.mxu0 0
    %849 = vmatmul.mubr.bf16.gmra.mrb[0].mxu0 %v762
    %v850 = vpop.f32.mrb[0].mxu0
    %v851 = vadd.f32 %v316, %v850
    %v852 = vpop.f32.mrb[0].mxu0
    %v853 = vadd.f32 %v318, %v852
    %v854 = vpop.f32.mrb[0].mxu0
    %v855 = vadd.f32 %v320, %v854
    %v856 = vpop.f32.mrb[0].mxu0
    %v857 = vadd.f32 %v322, %v856
    %858 = vmatprep.mubr.bf16.mxu0 0
    %859 = vmatmul.mubr.bf16.gmra.mrb[0].mxu0 %v765
    %v860 = vpop.f32.mrb[0].mxu0
    %v861 = vadd.f32 %v326, %v860
    %v862 = vpop.f32.mrb[0].mxu0
    %v863 = vadd.f32 %v328, %v862
    %v864 = vpop.f32.mrb[0].mxu0
    %v865 = vadd.f32 %v330, %v864
    %v866 = vpop.f32.mrb[0].mxu0
    %v867 = vadd.f32 %v332, %v866
    %868 = vmatprep.mubr.bf16.mxu0 0
    %869 = vmatmul.mubr.bf16.gmra.mrb[0].mxu0 %v768
    %v870 = vpop.f32.mrb[0].mxu0
    %v871 = vadd.f32 %v336, %v870
    %v872 = vpop.f32.mrb[0].mxu0
    %v873 = vadd.f32 %v338, %v872
    %v874 = vpop.f32.mrb[0].mxu0
    %v875 = vadd.f32 %v340, %v874
    %v876 = vpop.f32.mrb[0].mxu0
    %v877 = vadd.f32 %v342, %v876
    %878 = vmatprep.mubr.bf16.mxu0 0
    %879 = vmatmul.mubr.bf16.gmra.mrb[0].mxu0 %v771
    %v880 = vpop.f32.mrb[0].mxu0
    %v881 = vadd.f32 %v346, %v880
    %v882 = vpop.f32.mrb[0].mxu0
    %v883 = vadd.f32 %v348, %v882
    %v884 = vpop.f32.mrb[0].mxu0
    %v885 = vadd.f32 %v350, %v884
    %v886 = vpop.f32.mrb[0].mxu0
    %v887 = vadd.f32 %v352, %v886
    %888 = vmatprep.mubr.bf16.mxu0 0
    %889 = vmatmul.mubr.bf16.gmra.mrb[0].mxu0 %v774
    %v890 = vpop.f32.mrb[0].mxu0
    %v891 = vadd.f32 %v356, %v890
    %v892 = vpop.f32.mrb[0].mxu0
    %v893 = vadd.f32 %v358, %v892
    %v894 = vpop.f32.mrb[0].mxu0
    %v895 = vadd.f32 %v360, %v894
    %v896 = vpop.f32.mrb[0].mxu0
    %v897 = vadd.f32 %v362, %v896
    %898 = vmatprep.mubr.bf16.mxu0 0
    %899 = vmatmul.mubr.bf16.gmra.mrb[0].mxu0 %v777
    %v900 = vpop.f32.mrb[0].mxu0
    %v901 = vadd.f32 %v366, %v900
    %v902 = vpop.f32.mrb[0].mxu0
    %v903 = vadd.f32 %v368, %v902
    %v904 = vpop.f32.mrb[0].mxu0
    %v905 = vadd.f32 %v370, %v904
    %v906 = vpop.f32.mrb[0].mxu0
    %v907 = vadd.f32 %v372, %v906
    %908 = vmatprep.mubr.bf16.mxu0 0
    %909 = vmatmul.mubr.bf16.gmra.mrb[0].mxu0 %v780
    %v910 = vpop.f32.mrb[0].mxu0
    %v911 = vadd.f32 %v376, %v910
    %v912 = vpop.f32.mrb[0].mxu0
    %v913 = vadd.f32 %v378, %v912
    %v914 = vpop.f32.mrb[0].mxu0
    %v915 = vadd.f32 %v380, %v914
    %v916 = vpop.f32.mrb[0].mxu0
    %v917 = vadd.f32 %v382, %v916
    %918 = vmatprep.mubr.bf16.mxu0 0
    %919 = vmatmul.mubr.bf16.gmra.mrb[0].mxu0 %v783
    %v920 = vpop.f32.mrb[0].mxu0
    %v921 = vadd.f32 %v386, %v920
    %v922 = vpop.f32.mrb[0].mxu0
    %v923 = vadd.f32 %v388, %v922
    %v924 = vpop.f32.mrb[0].mxu0
    %v925 = vadd.f32 %v390, %v924
    %v926 = vpop.f32.mrb[0].mxu0
    %v927 = vadd.f32 %v392, %v926
    %928 = vmatprep.mubr.bf16.mxu0 0
    %929 = vmatmul.mubr.bf16.gmra.mrb[0].mxu0 %v786
    %v930 = vpop.f32.mrb[0].mxu0
    %v931 = vadd.f32 %v396, %v930
    %v932 = vpop.f32.mrb[0].mxu0
    %v933 = vadd.f32 %v398, %v932
    %v934 = vpop.f32.mrb[0].mxu0
    %v935 = vadd.f32 %v400, %v934
    %v936 = vpop.f32.mrb[0].mxu0
    %v937 = vadd.f32 %v402, %v936
    %938 = vmatprep.mubr.bf16.mxu0 0
    %939 = vmatmul.mubr.bf16.gmra.mrb[0].mxu0 %v789
    %v940 = vpop.f32.mrb[0].mxu0
    %v941 = vadd.f32 %v406, %v940
    %v942 = vpop.f32.mrb[0].mxu0
    %v943 = vadd.f32 %v408, %v942
    %v944 = vpop.f32.mrb[0].mxu0
    %v945 = vadd.f32 %v410, %v944
    %v946 = vpop.f32.mrb[0].mxu0
    %v947 = vadd.f32 %v412, %v946
    %948 = vmatprep.mubr.bf16.mxu0 0
    %949 = vmatmul.mubr.bf16.gmra.mrb[0].mxu0 %v792
    %v950 = vpop.f32.mrb[0].mxu0
    %v951 = vadd.f32 %v416, %v950
    %v952 = vpop.f32.mrb[0].mxu0
    %v953 = vadd.f32 %v418, %v952
    %v954 = vpop.f32.mrb[0].mxu0
    %v955 = vadd.f32 %v420, %v954
    %v956 = vpop.f32.mrb[0].mxu0
    %v957 = vadd.f32 %v422, %v956
    %958 = vmatprep.mubr.bf16.mxu0 0
    %959 = vmatmul.mubr.bf16.gmra.mrb[0].mxu0 %v795
    %v960 = vpop.f32.mrb[0].mxu0
    %v961 = vadd.f32 %v426, %v960
    %v962 = vpop.f32.mrb[0].mxu0
    %v963 = vadd.f32 %v428, %v962
    %v964 = vpop.f32.mrb[0].mxu0
    %v965 = vadd.f32 %v430, %v964
    %v966 = vpop.f32.mrb[0].mxu0
    %v967 = vadd.f32 %v432, %v966
    %968 = vmatprep.mubr.bf16.mxu0 0
    %969 = vmatmul.mubr.bf16.gmra.mrb[0].mxu0 %v798
    %v970 = vpop.f32.mrb[0].mxu0
    %v971 = vadd.f32 %v436, %v970
    %v972 = vpop.f32.mrb[0].mxu0
    %v973 = vadd.f32 %v438, %v972
    %v974 = vpop.f32.mrb[0].mxu0
    %v975 = vadd.f32 %v440, %v974
    %v976 = vpop.f32.mrb[0].mxu0
    %v977 = vadd.f32 %v442, %v976
    %978 = vmatprep.mubr.bf16.mxu0 0
    %979 = vmatmul.mubr.bf16.gmra.mrb[0].mxu0 %v801
    %v980 = vpop.f32.mrb[0].mxu0
    %v981 = vadd.f32 %v446, %v980
    %v982 = vpop.f32.mrb[0].mxu0
    %v983 = vadd.f32 %v448, %v982
    %v984 = vpop.f32.mrb[0].mxu0
    %v985 = vadd.f32 %v450, %v984
    %v986 = vpop.f32.mrb[0].mxu0
    %v987 = vadd.f32 %v452, %v986
    %988 = vmatprep.mubr.bf16.mxu0 0
    %989 = vmatmul.mubr.bf16.gmra.mrb[0].mxu0 %v804
    %v990 = vpop.f32.mrb[0].mxu0
    %v991 = vadd.f32 %v456, %v990
    %v992 = vpop.f32.mrb[0].mxu0
    %v993 = vadd.f32 %v458, %v992
    %v994 = vpop.f32.mrb[0].mxu0
    %v995 = vadd.f32 %v460, %v994
    %v996 = vpop.f32.mrb[0].mxu0
    %v997 = vadd.f32 %v462, %v996
    %998 = vdwg.mxu0
    %999 = vmatprep.subr.bf16.mxu0 %v752
    %1000 = vmatpush1.bf16.msra.mxu0 %v751
    %1001 = vmatprep.subr.bf16.mxu0 0
    %1002 = vmatpush1.bf16.msra.mxu0 0
    %1003 = vmatprep.subr.bf16.mxu0 0
    %1004 = vmatpush1.bf16.msra.mxu0 0
    %1005 = vmatprep.subr.bf16.mxu0 0
    %1006 = vmatpush1.bf16.msra.mxu0 0
    %1007 = vmatprep.subr.bf16.mxu0 0
    %1008 = vmatpush1.bf16.msra.mxu0 0
    %1009 = vmatprep.subr.bf16.mxu0 0
    %1010 = vmatpush1.bf16.msra.mxu0 0
    %1011 = vmatprep.subr.bf16.mxu0 0
    %1012 = vmatpush1.bf16.msra.mxu0 0
    %1013 = vmatprep.subr.bf16.mxu0 0
    %1014 = vmatpush1.bf16.msra.mxu0 0
    %1015 = vmatprep.subr.bf16.mxu0 0
    %1016 = vmatpush1.bf16.msra.mxu0 0
    %1017 = vmatprep.subr.bf16.mxu0 0
    %1018 = vmatpush1.bf16.msra.mxu0 0
    %1019 = vmatprep.subr.bf16.mxu0 0
    %1020 = vmatpush1.bf16.msra.mxu0 0
    %1021 = vmatprep.subr.bf16.mxu0 0
    %1022 = vmatpush1.bf16.msra.mxu0 0
    %1023 = vmatprep.subr.bf16.mxu0 0
    %1024 = vmatpush1.bf16.msra.mxu0 0
    %1025 = vmatprep.subr.bf16.mxu0 0
    %1026 = vmatpush1.bf16.msra.mxu0 0
    %1027 = vmatprep.subr.bf16.mxu0 0
    %1028 = vmatpush1.bf16.msra.mxu0 0
    %1029 = vmatprep.subr.bf16.mxu0 0
    %1030 = vmatpush1.bf16.msra.mxu0 0
    %1031 = vmatprep.mubr.bf16.mxu0 0
    %1032 = vmatmul.mubr.bf16.gmra.mrb[0].mxu0 %v759
    %v1033 = vpop.f32.mrb[0].mxu0
    %v1034 = vadd.f32 %v499, %v1033
    %v1035 = vpop.f32.mrb[0].mxu0
    %v1036 = vadd.f32 %v501, %v1035
    %v1037 = vpop.f32.mrb[0].mxu0
    %v1038 = vadd.f32 %v503, %v1037
    %v1039 = vpop.f32.mrb[0].mxu0
    %v1040 = vadd.f32 %v505, %v1039
    %1041 = vmatprep.mubr.bf16.mxu0 0
    %1042 = vmatmul.mubr.bf16.gmra.mrb[0].mxu0 %v762
    %v1043 = vpop.f32.mrb[0].mxu0
    %v1044 = vadd.f32 %v509, %v1043
    %v1045 = vpop.f32.mrb[0].mxu0
    %v1046 = vadd.f32 %v511, %v1045
    %v1047 = vpop.f32.mrb[0].mxu0
    %v1048 = vadd.f32 %v513, %v1047
    %v1049 = vpop.f32.mrb[0].mxu0
    %v1050 = vadd.f32 %v515, %v1049
    %1051 = vmatprep.mubr.bf16.mxu0 0
    %1052 = vmatmul.mubr.bf16.gmra.mrb[0].mxu0 %v765
    %v1053 = vpop.f32.mrb[0].mxu0
    %v1054 = vadd.f32 %v519, %v1053
    %v1055 = vpop.f32.mrb[0].mxu0
    %v1056 = vadd.f32 %v521, %v1055
    %v1057 = vpop.f32.mrb[0].mxu0
    %v1058 = vadd.f32 %v523, %v1057
    %v1059 = vpop.f32.mrb[0].mxu0
    %v1060 = vadd.f32 %v525, %v1059
    %1061 = vmatprep.mubr.bf16.mxu0 0
    %1062 = vmatmul.mubr.bf16.gmra.mrb[0].mxu0 %v768
    %v1063 = vpop.f32.mrb[0].mxu0
    %v1064 = vadd.f32 %v529, %v1063
    %v1065 = vpop.f32.mrb[0].mxu0
    %v1066 = vadd.f32 %v531, %v1065
    %v1067 = vpop.f32.mrb[0].mxu0
    %v1068 = vadd.f32 %v533, %v1067
    %v1069 = vpop.f32.mrb[0].mxu0
    %v1070 = vadd.f32 %v535, %v1069
    %1071 = vmatprep.mubr.bf16.mxu0 0
    %1072 = vmatmul.mubr.bf16.gmra.mrb[0].mxu0 %v771
    %v1073 = vpop.f32.mrb[0].mxu0
    %v1074 = vadd.f32 %v539, %v1073
    %v1075 = vpop.f32.mrb[0].mxu0
    %v1076 = vadd.f32 %v541, %v1075
    %v1077 = vpop.f32.mrb[0].mxu0
    %v1078 = vadd.f32 %v543, %v1077
    %v1079 = vpop.f32.mrb[0].mxu0
    %v1080 = vadd.f32 %v545, %v1079
    %1081 = vmatprep.mubr.bf16.mxu0 0
    %1082 = vmatmul.mubr.bf16.gmra.mrb[0].mxu0 %v774
    %v1083 = vpop.f32.mrb[0].mxu0
    %v1084 = vadd.f32 %v549, %v1083
    %v1085 = vpop.f32.mrb[0].mxu0
    %v1086 = vadd.f32 %v551, %v1085
    %v1087 = vpop.f32.mrb[0].mxu0
    %v1088 = vadd.f32 %v553, %v1087
    %v1089 = vpop.f32.mrb[0].mxu0
    %v1090 = vadd.f32 %v555, %v1089
    %1091 = vmatprep.mubr.bf16.mxu0 0
    %1092 = vmatmul.mubr.bf16.gmra.mrb[0].mxu0 %v777
    %v1093 = vpop.f32.mrb[0].mxu0
    %v1094 = vadd.f32 %v559, %v1093
    %v1095 = vpop.f32.mrb[0].mxu0
    %v1096 = vadd.f32 %v561, %v1095
    %v1097 = vpop.f32.mrb[0].mxu0
    %v1098 = vadd.f32 %v563, %v1097
    %v1099 = vpop.f32.mrb[0].mxu0
    %v1100 = vadd.f32 %v565, %v1099
    %1101 = vmatprep.mubr.bf16.mxu0 0
    %1102 = vmatmul.mubr.bf16.gmra.mrb[0].mxu0 %v780
    %v1103 = vpop.f32.mrb[0].mxu0
    %v1104 = vadd.f32 %v569, %v1103
    %v1105 = vpop.f32.mrb[0].mxu0
    %v1106 = vadd.f32 %v571, %v1105
    %v1107 = vpop.f32.mrb[0].mxu0
    %v1108 = vadd.f32 %v573, %v1107
    %v1109 = vpop.f32.mrb[0].mxu0
    %v1110 = vadd.f32 %v575, %v1109
    %1111 = vmatprep.mubr.bf16.mxu0 0
    %1112 = vmatmul.mubr.bf16.gmra.mrb[0].mxu0 %v783
    %v1113 = vpop.f32.mrb[0].mxu0
    %v1114 = vadd.f32 %v579, %v1113
    %v1115 = vpop.f32.mrb[0].mxu0
    %v1116 = vadd.f32 %v581, %v1115
    %v1117 = vpop.f32.mrb[0].mxu0
    %v1118 = vadd.f32 %v583, %v1117
    %v1119 = vpop.f32.mrb[0].mxu0
    %v1120 = vadd.f32 %v585, %v1119
    %1121 = vmatprep.mubr.bf16.mxu0 0
    %1122 = vmatmul.mubr.bf16.gmra.mrb[0].mxu0 %v786
    %v1123 = vpop.f32.mrb[0].mxu0
    %v1124 = vadd.f32 %v589, %v1123
    %v1125 = vpop.f32.mrb[0].mxu0
    %v1126 = vadd.f32 %v591, %v1125
    %v1127 = vpop.f32.mrb[0].mxu0
    %v1128 = vadd.f32 %v593, %v1127
    %v1129 = vpop.f32.mrb[0].mxu0
    %v1130 = vadd.f32 %v595, %v1129
    %1131 = vmatprep.mubr.bf16.mxu0 0
    %1132 = vmatmul.mubr.bf16.gmra.mrb[0].mxu0 %v789
    %v1133 = vpop.f32.mrb[0].mxu0
    %v1134 = vadd.f32 %v599, %v1133
    %v1135 = vpop.f32.mrb[0].mxu0
    %v1136 = vadd.f32 %v601, %v1135
    %v1137 = vpop.f32.mrb[0].mxu0
    %v1138 = vadd.f32 %v603, %v1137
    %v1139 = vpop.f32.mrb[0].mxu0
    %v1140 = vadd.f32 %v605, %v1139
    %1141 = vmatprep.mubr.bf16.mxu0 0
    %1142 = vmatmul.mubr.bf16.gmra.mrb[0].mxu0 %v792
    %v1143 = vpop.f32.mrb[0].mxu0
    %v1144 = vadd.f32 %v609, %v1143
    %v1145 = vpop.f32.mrb[0].mxu0
    %v1146 = vadd.f32 %v611, %v1145
    %v1147 = vpop.f32.mrb[0].mxu0
    %v1148 = vadd.f32 %v613, %v1147
    %v1149 = vpop.f32.mrb[0].mxu0
    %v1150 = vadd.f32 %v615, %v1149
    %1151 = vmatprep.mubr.bf16.mxu0 0
    %1152 = vmatmul.mubr.bf16.gmra.mrb[0].mxu0 %v795
    %v1153 = vpop.f32.mrb[0].mxu0
    %v1154 = vadd.f32 %v619, %v1153
    %v1155 = vpop.f32.mrb[0].mxu0
    %v1156 = vadd.f32 %v621, %v1155
    %v1157 = vpop.f32.mrb[0].mxu0
    %v1158 = vadd.f32 %v623, %v1157
    %v1159 = vpop.f32.mrb[0].mxu0
    %v1160 = vadd.f32 %v625, %v1159
    %1161 = vmatprep.mubr.bf16.mxu0 0
    %1162 = vmatmul.mubr.bf16.gmra.mrb[0].mxu0 %v798
    %v1163 = vpop.f32.mrb[0].mxu0
    %v1164 = vadd.f32 %v629, %v1163
    %v1165 = vpop.f32.mrb[0].mxu0
    %v1166 = vadd.f32 %v631, %v1165
    %v1167 = vpop.f32.mrb[0].mxu0
    %v1168 = vadd.f32 %v633, %v1167
    %v1169 = vpop.f32.mrb[0].mxu0
    %v1170 = vadd.f32 %v635, %v1169
    %1171 = vmatprep.mubr.bf16.mxu0 0
    %1172 = vmatmul.mubr.bf16.gmra.mrb[0].mxu0 %v801
    %v1173 = vpop.f32.mrb[0].mxu0
    %v1174 = vadd.f32 %v639, %v1173
    %v1175 = vpop.f32.mrb[0].mxu0
    %v1176 = vadd.f32 %v641, %v1175
    %v1177 = vpop.f32.mrb[0].mxu0
    %v1178 = vadd.f32 %v643, %v1177
    %v1179 = vpop.f32.mrb[0].mxu0
    %v1180 = vadd.f32 %v645, %v1179
    %1181 = vmatprep.mubr.bf16.mxu0 0
    %1182 = vmatmul.mubr.bf16.gmra.mrb[0].mxu0 %v804
    %v1183 = vpop.f32.mrb[0].mxu0
    %v1184 = vadd.f32 %v649, %v1183
    %v1185 = vpop.f32.mrb[0].mxu0
    %v1186 = vadd.f32 %v651, %v1185
    %v1187 = vpop.f32.mrb[0].mxu0
    %v1188 = vadd.f32 %v653, %v1187
    %v1189 = vpop.f32.mrb[0].mxu0
    %v1190 = vadd.f32 %v655, %v1189
    %1191 = vdwg.mxu0
    %v1192 = vld [vmem:[%s4] sm:$0xf]
    %v1194 = vlaneseq
    %v1195 = vshrl.u32 %v1194, 7
    %v1196 = vsub.s32 0, %v1195
    %v1197 = vrot.slane %v1192, %v1196
    %v1198 = vlaneseq
    %v1199 = vshrl.u32 %v1198, 7
    %v1200 = vsub.s32 1, %v1199
    %v1201 = vrot.slane %v1192, %v1200
    %v1202 = vlaneseq
    %v1203 = vshrl.u32 %v1202, 7
    %v1204 = vsub.s32 2, %v1203
    %v1205 = vrot.slane %v1192, %v1204
    %v1206 = vlaneseq
    %v1207 = vshrl.u32 %v1206, 7
    %v1208 = vsub.s32 3, %v1207
    %v1209 = vrot.slane %v1192, %v1208
    %v1214 = vadd.f32 %v841, %v1197
    %v1215 = vadd.f32 %v843, %v1201
    %v1216 = vadd.f32 %v1034, %v1205
    %v1217 = vadd.f32 %v1036, %v1209
    %v1218 = vadd.f32 %v845, %v1197
    %v1219 = vadd.f32 %v847, %v1201
    %v1220 = vadd.f32 %v1038, %v1205
    %v1221 = vadd.f32 %v1040, %v1209
    %v1222 = vadd.f32 %v851, %v1197
    %v1223 = vadd.f32 %v853, %v1201
    %v1224 = vadd.f32 %v1044, %v1205
    %v1225 = vadd.f32 %v1046, %v1209
    %v1226 = vadd.f32 %v855, %v1197
    %v1227 = vadd.f32 %v857, %v1201
    %v1228 = vadd.f32 %v1048, %v1205
    %v1229 = vadd.f32 %v1050, %v1209
    %v1230 = vadd.f32 %v861, %v1197
    %v1231 = vadd.f32 %v863, %v1201
    %v1232 = vadd.f32 %v1054, %v1205
    %v1233 = vadd.f32 %v1056, %v1209
    %v1234 = vadd.f32 %v865, %v1197
    %v1235 = vadd.f32 %v867, %v1201
    %v1236 = vadd.f32 %v1058, %v1205
    %v1237 = vadd.f32 %v1060, %v1209
    %v1238 = vadd.f32 %v871, %v1197
    %v1239 = vadd.f32 %v873, %v1201
    %v1240 = vadd.f32 %v1064, %v1205
    %v1241 = vadd.f32 %v1066, %v1209
    %v1242 = vadd.f32 %v875, %v1197
    %v1243 = vadd.f32 %v877, %v1201
    %v1244 = vadd.f32 %v1068, %v1205
    %v1245 = vadd.f32 %v1070, %v1209
    %v1246 = vadd.f32 %v881, %v1197
    %v1247 = vadd.f32 %v883, %v1201
    %v1248 = vadd.f32 %v1074, %v1205
    %v1249 = vadd.f32 %v1076, %v1209
    %v1250 = vadd.f32 %v885, %v1197
    %v1251 = vadd.f32 %v887, %v1201
    %v1252 = vadd.f32 %v1078, %v1205
    %v1253 = vadd.f32 %v1080, %v1209
    %v1254 = vadd.f32 %v891, %v1197
    %v1255 = vadd.f32 %v893, %v1201
    %v1256 = vadd.f32 %v1084, %v1205
    %v1257 = vadd.f32 %v1086, %v1209
    %v1258 = vadd.f32 %v895, %v1197
    %v1259 = vadd.f32 %v897, %v1201
    %v1260 = vadd.f32 %v1088, %v1205
    %v1261 = vadd.f32 %v1090, %v1209
    %v1262 = vadd.f32 %v901, %v1197
    %v1263 = vadd.f32 %v903, %v1201
    %v1264 = vadd.f32 %v1094, %v1205
    %v1265 = vadd.f32 %v1096, %v1209
    %v1266 = vadd.f32 %v905, %v1197
    %v1267 = vadd.f32 %v907, %v1201
    %v1268 = vadd.f32 %v1098, %v1205
    %v1269 = vadd.f32 %v1100, %v1209
    %v1270 = vadd.f32 %v911, %v1197
    %v1271 = vadd.f32 %v913, %v1201
    %v1272 = vadd.f32 %v1104, %v1205
    %v1273 = vadd.f32 %v1106, %v1209
    %v1274 = vadd.f32 %v915, %v1197
    %v1275 = vadd.f32 %v917, %v1201
    %v1276 = vadd.f32 %v1108, %v1205
    %v1277 = vadd.f32 %v1110, %v1209
    %v1278 = vadd.f32 %v921, %v1197
    %v1279 = vadd.f32 %v923, %v1201
    %v1280 = vadd.f32 %v1114, %v1205
    %v1281 = vadd.f32 %v1116, %v1209
    %v1282 = vadd.f32 %v925, %v1197
    %v1283 = vadd.f32 %v927, %v1201
    %v1284 = vadd.f32 %v1118, %v1205
    %v1285 = vadd.f32 %v1120, %v1209
    %v1286 = vadd.f32 %v931, %v1197
    %v1287 = vadd.f32 %v933, %v1201
    %v1288 = vadd.f32 %v1124, %v1205
    %v1289 = vadd.f32 %v1126, %v1209
    %v1290 = vadd.f32 %v935, %v1197
    %v1291 = vadd.f32 %v937, %v1201
    %v1292 = vadd.f32 %v1128, %v1205
    %v1293 = vadd.f32 %v1130, %v1209
    %v1294 = vadd.f32 %v941, %v1197
    %v1295 = vadd.f32 %v943, %v1201
    %v1296 = vadd.f32 %v1134, %v1205
    %v1297 = vadd.f32 %v1136, %v1209
    %v1298 = vadd.f32 %v945, %v1197
    %v1299 = vadd.f32 %v947, %v1201
    %v1300 = vadd.f32 %v1138, %v1205
    %v1301 = vadd.f32 %v1140, %v1209
    %v1302 = vadd.f32 %v951, %v1197
    %v1303 = vadd.f32 %v953, %v1201
    %v1304 = vadd.f32 %v1144, %v1205
    %v1305 = vadd.f32 %v1146, %v1209
    %v1306 = vadd.f32 %v955, %v1197
    %v1307 = vadd.f32 %v957, %v1201
    %v1308 = vadd.f32 %v1148, %v1205
    %v1309 = vadd.f32 %v1150, %v1209
    %v1310 = vadd.f32 %v961, %v1197
    %v1311 = vadd.f32 %v963, %v1201
    %v1312 = vadd.f32 %v1154, %v1205
    %v1313 = vadd.f32 %v1156, %v1209
    %v1314 = vadd.f32 %v965, %v1197
    %v1315 = vadd.f32 %v967, %v1201
    %v1316 = vadd.f32 %v1158, %v1205
    %v1317 = vadd.f32 %v1160, %v1209
    %v1318 = vadd.f32 %v971, %v1197
    %v1319 = vadd.f32 %v973, %v1201
    %v1320 = vadd.f32 %v1164, %v1205
    %v1321 = vadd.f32 %v1166, %v1209
    %v1322 = vadd.f32 %v975, %v1197
    %v1323 = vadd.f32 %v977, %v1201
    %v1324 = vadd.f32 %v1168, %v1205
    %v1325 = vadd.f32 %v1170, %v1209
    %v1326 = vadd.f32 %v981, %v1197
    %v1327 = vadd.f32 %v983, %v1201
    %v1328 = vadd.f32 %v1174, %v1205
    %v1329 = vadd.f32 %v1176, %v1209
    %v1330 = vadd.f32 %v985, %v1197
    %v1331 = vadd.f32 %v987, %v1201
    %v1332 = vadd.f32 %v1178, %v1205
    %v1333 = vadd.f32 %v1180, %v1209
    %v1334 = vadd.f32 %v991, %v1197
    %v1335 = vadd.f32 %v993, %v1201
    %v1336 = vadd.f32 %v1184, %v1205
    %v1337 = vadd.f32 %v1186, %v1209
    %v1338 = vadd.f32 %v995, %v1197
    %v1339 = vadd.f32 %v997, %v1201
    %v1340 = vadd.f32 %v1188, %v1205
    %v1341 = vadd.f32 %v1190, %v1209
    %v1342 = vmax.f32 %v1214, 0.0
    %v1343 = vmax.f32 %v1215, 0.0
    %v1344 = vmax.f32 %v1216, 0.0
    %v1345 = vmax.f32 %v1217, 0.0
    %v1346 = vmax.f32 %v1218, 0.0
    %v1347 = vmax.f32 %v1219, 0.0
    %v1348 = vmax.f32 %v1220, 0.0
    %v1349 = vmax.f32 %v1221, 0.0
    %v1350 = vmax.f32 %v1222, 0.0
    %v1351 = vmax.f32 %v1223, 0.0
    %v1352 = vmax.f32 %v1224, 0.0
    %v1353 = vmax.f32 %v1225, 0.0
    %v1354 = vmax.f32 %v1226, 0.0
    %v1355 = vmax.f32 %v1227, 0.0
    %v1356 = vmax.f32 %v1228, 0.0
    %v1357 = vmax.f32 %v1229, 0.0
    %v1358 = vmax.f32 %v1230, 0.0
    %v1359 = vmax.f32 %v1231, 0.0
    %v1360 = vmax.f32 %v1232, 0.0
    %v1361 = vmax.f32 %v1233, 0.0
    %v1362 = vmax.f32 %v1234, 0.0
    %v1363 = vmax.f32 %v1235, 0.0
    %v1364 = vmax.f32 %v1236, 0.0
    %v1365 = vmax.f32 %v1237, 0.0
    %v1366 = vmax.f32 %v1238, 0.0
    %v1367 = vmax.f32 %v1239, 0.0
    %v1368 = vmax.f32 %v1240, 0.0
    %v1369 = vmax.f32 %v1241, 0.0
    %v1370 = vmax.f32 %v1242, 0.0
    %v1371 = vmax.f32 %v1243, 0.0
    %v1372 = vmax.f32 %v1244, 0.0
    %v1373 = vmax.f32 %v1245, 0.0
    %v1374 = vmax.f32 %v1246, 0.0
    %v1375 = vmax.f32 %v1247, 0.0
    %v1376 = vmax.f32 %v1248, 0.0
    %v1377 = vmax.f32 %v1249, 0.0
    %v1378 = vmax.f32 %v1250, 0.0
    %v1379 = vmax.f32 %v1251, 0.0
    %v1380 = vmax.f32 %v1252, 0.0
    %v1381 = vmax.f32 %v1253, 0.0
    %v1382 = vmax.f32 %v1254, 0.0
    %v1383 = vmax.f32 %v1255, 0.0
    %v1384 = vmax.f32 %v1256, 0.0
    %v1385 = vmax.f32 %v1257, 0.0
    %v1386 = vmax.f32 %v1258, 0.0
    %v1387 = vmax.f32 %v1259, 0.0
    %v1388 = vmax.f32 %v1260, 0.0
    %v1389 = vmax.f32 %v1261, 0.0
    %v1390 = vmax.f32 %v1262, 0.0
    %v1391 = vmax.f32 %v1263, 0.0
    %v1392 = vmax.f32 %v1264, 0.0
    %v1393 = vmax.f32 %v1265, 0.0
    %v1394 = vmax.f32 %v1266, 0.0
    %v1395 = vmax.f32 %v1267, 0.0
    %v1396 = vmax.f32 %v1268, 0.0
    %v1397 = vmax.f32 %v1269, 0.0
    %v1398 = vmax.f32 %v1270, 0.0
    %v1399 = vmax.f32 %v1271, 0.0
    %v1400 = vmax.f32 %v1272, 0.0
    %v1401 = vmax.f32 %v1273, 0.0
    %v1402 = vmax.f32 %v1274, 0.0
    %v1403 = vmax.f32 %v1275, 0.0
    %v1404 = vmax.f32 %v1276, 0.0
    %v1405 = vmax.f32 %v1277, 0.0
    %v1406 = vmax.f32 %v1278, 0.0
    %v1407 = vmax.f32 %v1279, 0.0
    %v1408 = vmax.f32 %v1280, 0.0
    %v1409 = vmax.f32 %v1281, 0.0
    %v1410 = vmax.f32 %v1282, 0.0
    %v1411 = vmax.f32 %v1283, 0.0
    %v1412 = vmax.f32 %v1284, 0.0
    %v1413 = vmax.f32 %v1285, 0.0
    %v1414 = vmax.f32 %v1286, 0.0
    %v1415 = vmax.f32 %v1287, 0.0
    %v1416 = vmax.f32 %v1288, 0.0
    %v1417 = vmax.f32 %v1289, 0.0
    %v1418 = vmax.f32 %v1290, 0.0
    %v1419 = vmax.f32 %v1291, 0.0
    %v1420 = vmax.f32 %v1292, 0.0
    %v1421 = vmax.f32 %v1293, 0.0
    %v1422 = vmax.f32 %v1294, 0.0
    %v1423 = vmax.f32 %v1295, 0.0
    %v1424 = vmax.f32 %v1296, 0.0
    %v1425 = vmax.f32 %v1297, 0.0
    %v1426 = vmax.f32 %v1298, 0.0
    %v1427 = vmax.f32 %v1299, 0.0
    %v1428 = vmax.f32 %v1300, 0.0
    %v1429 = vmax.f32 %v1301, 0.0
    %v1430 = vmax.f32 %v1302, 0.0
    %v1431 = vmax.f32 %v1303, 0.0
    %v1432 = vmax.f32 %v1304, 0.0
    %v1433 = vmax.f32 %v1305, 0.0
    %v1434 = vmax.f32 %v1306, 0.0
    %v1435 = vmax.f32 %v1307, 0.0
    %v1436 = vmax.f32 %v1308, 0.0
    %v1437 = vmax.f32 %v1309, 0.0
    %v1438 = vmax.f32 %v1310, 0.0
    %v1439 = vmax.f32 %v1311, 0.0
    %v1440 = vmax.f32 %v1312, 0.0
    %v1441 = vmax.f32 %v1313, 0.0
    %v1442 = vmax.f32 %v1314, 0.0
    %v1443 = vmax.f32 %v1315, 0.0
    %v1444 = vmax.f32 %v1316, 0.0
    %v1445 = vmax.f32 %v1317, 0.0
    %v1446 = vmax.f32 %v1318, 0.0
    %v1447 = vmax.f32 %v1319, 0.0
    %v1448 = vmax.f32 %v1320, 0.0
    %v1449 = vmax.f32 %v1321, 0.0
    %v1450 = vmax.f32 %v1322, 0.0
    %v1451 = vmax.f32 %v1323, 0.0
    %v1452 = vmax.f32 %v1324, 0.0
    %v1453 = vmax.f32 %v1325, 0.0
    %v1454 = vmax.f32 %v1326, 0.0
    %v1455 = vmax.f32 %v1327, 0.0
    %v1456 = vmax.f32 %v1328, 0.0
    %v1457 = vmax.f32 %v1329, 0.0
    %v1458 = vmax.f32 %v1330, 0.0
    %v1459 = vmax.f32 %v1331, 0.0
    %v1460 = vmax.f32 %v1332, 0.0
    %v1461 = vmax.f32 %v1333, 0.0
    %v1462 = vmax.f32 %v1334, 0.0
    %v1463 = vmax.f32 %v1335, 0.0
    %v1464 = vmax.f32 %v1336, 0.0
    %v1465 = vmax.f32 %v1337, 0.0
    %v1466 = vmax.f32 %v1338, 0.0
    %v1467 = vmax.f32 %v1339, 0.0
    %v1468 = vmax.f32 %v1340, 0.0
    %v1469 = vmax.f32 %v1341, 0.0
    %v1470 = vpack.c.bf16 %v1346, %v1342
    %v1471 = vpack.c.bf16 %v1347, %v1343
    %v1472 = vpack.c.bf16 %v1348, %v1344
    %v1473 = vpack.c.bf16 %v1349, %v1345
    %v1474 = vpack.c.bf16 %v1354, %v1350
    %v1475 = vpack.c.bf16 %v1355, %v1351
    %v1476 = vpack.c.bf16 %v1356, %v1352
    %v1477 = vpack.c.bf16 %v1357, %v1353
    %v1478 = vpack.c.bf16 %v1362, %v1358
    %v1479 = vpack.c.bf16 %v1363, %v1359
    %v1480 = vpack.c.bf16 %v1364, %v1360
    %v1481 = vpack.c.bf16 %v1365, %v1361
    %v1482 = vpack.c.bf16 %v1370, %v1366
    %v1483 = vpack.c.bf16 %v1371, %v1367
    %v1484 = vpack.c.bf16 %v1372, %v1368
    %v1485 = vpack.c.bf16 %v1373, %v1369
    %v1486 = vpack.c.bf16 %v1378, %v1374
    %v1487 = vpack.c.bf16 %v1379, %v1375
    %v1488 = vpack.c.bf16 %v1380, %v1376
    %v1489 = vpack.c.bf16 %v1381, %v1377
    %v1490 = vpack.c.bf16 %v1386, %v1382
    %v1491 = vpack.c.bf16 %v1387, %v1383
    %v1492 = vpack.c.bf16 %v1388, %v1384
    %v1493 = vpack.c.bf16 %v1389, %v1385
    %v1494 = vpack.c.bf16 %v1394, %v1390
    %v1495 = vpack.c.bf16 %v1395, %v1391
    %v1496 = vpack.c.bf16 %v1396, %v1392
    %v1497 = vpack.c.bf16 %v1397, %v1393
    %v1498 = vpack.c.bf16 %v1402, %v1398
    %v1499 = vpack.c.bf16 %v1403, %v1399
    %v1500 = vpack.c.bf16 %v1404, %v1400
    %v1501 = vpack.c.bf16 %v1405, %v1401
    %v1502 = vpack.c.bf16 %v1410, %v1406
    %v1503 = vpack.c.bf16 %v1411, %v1407
    %v1504 = vpack.c.bf16 %v1412, %v1408
    %v1505 = vpack.c.bf16 %v1413, %v1409
    %v1506 = vpack.c.bf16 %v1418, %v1414
    %v1507 = vpack.c.bf16 %v1419, %v1415
    %v1508 = vpack.c.bf16 %v1420, %v1416
    %v1509 = vpack.c.bf16 %v1421, %v1417
    %v1510 = vpack.c.bf16 %v1426, %v1422
    %v1511 = vpack.c.bf16 %v1427, %v1423
    %v1512 = vpack.c.bf16 %v1428, %v1424
    %v1513 = vpack.c.bf16 %v1429, %v1425
    %v1514 = vpack.c.bf16 %v1434, %v1430
    %v1515 = vpack.c.bf16 %v1435, %v1431
    %v1516 = vpack.c.bf16 %v1436, %v1432
    %v1517 = vpack.c.bf16 %v1437, %v1433
    %v1518 = vpack.c.bf16 %v1442, %v1438
    %v1519 = vpack.c.bf16 %v1443, %v1439
    %v1520 = vpack.c.bf16 %v1444, %v1440
    %v1521 = vpack.c.bf16 %v1445, %v1441
    %v1522 = vpack.c.bf16 %v1450, %v1446
    %v1523 = vpack.c.bf16 %v1451, %v1447
    %v1524 = vpack.c.bf16 %v1452, %v1448
    %v1525 = vpack.c.bf16 %v1453, %v1449
    %v1526 = vpack.c.bf16 %v1458, %v1454
    %v1527 = vpack.c.bf16 %v1459, %v1455
    %v1528 = vpack.c.bf16 %v1460, %v1456
    %v1529 = vpack.c.bf16 %v1461, %v1457
    %v1530 = vpack.c.bf16 %v1466, %v1462
    %v1531 = vpack.c.bf16 %v1467, %v1463
    %v1532 = vpack.c.bf16 %v1468, %v1464
    %v1533 = vpack.c.bf16 %v1469, %v1465
    %v1534 = vld [vmem:[#allocation3] sm:$0xff]
    %v1535 = vld [vmem:[#allocation3 + $0x8] sm:$0xf]
    %v1536 = vld [vmem:[#allocation3 + $0xc] sm:$0xff]
    %v1537 = vld [vmem:[#allocation3 + $0x14] sm:$0xf]
    %v1538 = vld [vmem:[#allocation3 + $0x18] sm:$0xff]
    %v1539 = vld [vmem:[#allocation3 + $0x20] sm:$0xf]
    %v1540 = vld [vmem:[#allocation3 + $0x24] sm:$0xff]
    %v1541 = vld [vmem:[#allocation3 + $0x2c] sm:$0xf]
    %v1542 = vld [vmem:[#allocation3 + $0x30] sm:$0xff]
    %v1543 = vld [vmem:[#allocation3 + $0x38] sm:$0xf]
    %v1544 = vld [vmem:[#allocation3 + $0x3c] sm:$0xff]
    %v1545 = vld [vmem:[#allocation3 + $0x44] sm:$0xf]
    %v1546 = vld [vmem:[#allocation3 + $0x48] sm:$0xff]
    %v1547 = vld [vmem:[#allocation3 + $0x50] sm:$0xf]
    %v1548 = vld [vmem:[#allocation3 + $0x54] sm:$0xff]
    %v1549 = vld [vmem:[#allocation3 + $0x5c] sm:$0xf]
    %v1550 = vld [vmem:[#allocation3 + $0x60] sm:$0xff]
    %v1551 = vld [vmem:[#allocation3 + $0x68] sm:$0xf]
    %v1552 = vld [vmem:[#allocation3 + $0x6c] sm:$0xff]
    %v1553 = vld [vmem:[#allocation3 + $0x74] sm:$0xf]
    %v1554 = vld [vmem:[#allocation3 + $0x78] sm:$0xff]
    %v1555 = vld [vmem:[#allocation3 + $0x80] sm:$0xf]
    %v1556 = vld [vmem:[#allocation3 + $0x84] sm:$0xff]
    %v1557 = vld [vmem:[#allocation3 + $0x8c] sm:$0xf]
    %v1558 = vld [vmem:[#allocation3 + $0x90] sm:$0xff]
    %v1559 = vld [vmem:[#allocation3 + $0x98] sm:$0xf]
    %v1560 = vld [vmem:[#allocation3 + $0x9c] sm:$0xff]
    %v1561 = vld [vmem:[#allocation3 + $0xa4] sm:$0xf]
    %v1562 = vld [vmem:[#allocation3 + $0xa8] sm:$0xff]
    %v1563 = vld [vmem:[#allocation3 + $0xb0] sm:$0xf]
    %v1564 = vld [vmem:[#allocation3 + $0xb4] sm:$0xff]
    %v1565 = vld [vmem:[#allocation3 + $0xbc] sm:$0xf]
    %v1566 = vld [vmem:[#allocation3 + $0xc0] sm:$0xff]
    %v1567 = vld [vmem:[#allocation3 + $0xc8] sm:$0xf]
    %v1568 = vld [vmem:[#allocation3 + $0xcc] sm:$0xff]
    %v1569 = vld [vmem:[#allocation3 + $0xd4] sm:$0xf]
    %v1570 = vld [vmem:[#allocation3 + $0xd8] sm:$0xff]
    %v1571 = vld [vmem:[#allocation3 + $0xe0] sm:$0xf]
    %v1572 = vld [vmem:[#allocation3 + $0xe4] sm:$0xff]
    %v1573 = vld [vmem:[#allocation3 + $0xec] sm:$0xf]
    %v1574 = vld [vmem:[#allocation3 + $0xf0] sm:$0xff]
    %v1575 = vld [vmem:[#allocation3 + $0xf8] sm:$0xf]
    %v1576 = vld [vmem:[#allocation3 + $0xfc] sm:$0xff]
    %v1577 = vld [vmem:[#allocation3 + $0x104] sm:$0xf]
    %v1578 = vld [vmem:[#allocation3 + $0x108] sm:$0xff]
    %v1579 = vld [vmem:[#allocation3 + $0x110] sm:$0xf]
    %v1580 = vld [vmem:[#allocation3 + $0x114] sm:$0xff]
    %v1581 = vld [vmem:[#allocation3 + $0x11c] sm:$0xf]
    %v1582 = vld [vmem:[#allocation3 + $0x120] sm:$0xff]
    %v1583 = vld [vmem:[#allocation3 + $0x128] sm:$0xf]
    %v1584 = vld [vmem:[#allocation3 + $0x12c] sm:$0xff]
    %v1585 = vld [vmem:[#allocation3 + $0x134] sm:$0xf]
    %v1586 = vld [vmem:[#allocation3 + $0x138] sm:$0xff]
    %v1587 = vld [vmem:[#allocation3 + $0x140] sm:$0xf]
    %v1588 = vld [vmem:[#allocation3 + $0x144] sm:$0xff]
    %v1589 = vld [vmem:[#allocation3 + $0x14c] sm:$0xf]
    %v1590 = vld [vmem:[#allocation3 + $0x150] sm:$0xff]
    %v1591 = vld [vmem:[#allocation3 + $0x158] sm:$0xf]
    %v1592 = vld [vmem:[#allocation3 + $0x15c] sm:$0xff]
    %v1593 = vld [vmem:[#allocation3 + $0x164] sm:$0xf]
    %v1594 = vld [vmem:[#allocation3 + $0x168] sm:$0xff]
    %v1595 = vld [vmem:[#allocation3 + $0x170] sm:$0xf]
    %v1596 = vld [vmem:[#allocation3 + $0x174] sm:$0xff]
    %v1597 = vld [vmem:[#allocation3 + $0x17c] sm:$0xf]
    %v1598 = vld [vmem:[#allocation3 + $0x180] sm:$0xff]
    %v1599 = vld [vmem:[#allocation3 + $0x188] sm:$0xf]
    %v1600 = vld [vmem:[#allocation3 + $0x18c] sm:$0xff]
    %v1601 = vld [vmem:[#allocation3 + $0x194] sm:$0xf]
    %v1602 = vld [vmem:[#allocation3 + $0x198] sm:$0xff]
    %v1603 = vld [vmem:[#allocation3 + $0x1a0] sm:$0xf]
    %v1604 = vld [vmem:[#allocation3 + $0x1a4] sm:$0xff]
    %v1605 = vld [vmem:[#allocation3 + $0x1ac] sm:$0xf]
    %v1606 = vld [vmem:[#allocation3 + $0x1b0] sm:$0xff]
    %v1607 = vld [vmem:[#allocation3 + $0x1b8] sm:$0xf]
    %v1608 = vld [vmem:[#allocation3 + $0x1bc] sm:$0xff]
    %v1609 = vld [vmem:[#allocation3 + $0x1c4] sm:$0xf]
    %v1610 = vld [vmem:[#allocation3 + $0x1c8] sm:$0xff]
    %v1611 = vld [vmem:[#allocation3 + $0x1d0] sm:$0xf]
    %v1612 = vld [vmem:[#allocation3 + $0x1d4] sm:$0xff]
    %v1613 = vld [vmem:[#allocation3 + $0x1dc] sm:$0xf]
    %v1614 = vld [vmem:[#allocation3 + $0x1e0] sm:$0xff]
    %v1615 = vld [vmem:[#allocation3 + $0x1e8] sm:$0xf]
    %v1616 = vld [vmem:[#allocation3 + $0x1ec] sm:$0xff]
    %v1617 = vld [vmem:[#allocation3 + $0x1f4] sm:$0xf]
    %v1618 = vld [vmem:[#allocation3 + $0x1f8] sm:$0xff]
    %v1619 = vld [vmem:[#allocation3 + $0x200] sm:$0xf]
    %v1620 = vld [vmem:[#allocation3 + $0x204] sm:$0xff]
    %v1621 = vld [vmem:[#allocation3 + $0x20c] sm:$0xf]
    %v1622 = vld [vmem:[#allocation3 + $0x210] sm:$0xff]
    %v1623 = vld [vmem:[#allocation3 + $0x218] sm:$0xf]
    %v1624 = vld [vmem:[#allocation3 + $0x21c] sm:$0xff]
    %v1625 = vld [vmem:[#allocation3 + $0x224] sm:$0xf]
    %v1626 = vld [vmem:[#allocation3 + $0x228] sm:$0xff]
    %v1627 = vld [vmem:[#allocation3 + $0x230] sm:$0xf]
    %v1628 = vld [vmem:[#allocation3 + $0x234] sm:$0xff]
    %v1629 = vld [vmem:[#allocation3 + $0x23c] sm:$0xf]
    %v1630 = vld [vmem:[#allocation3 + $0x240] sm:$0xff]
    %v1631 = vld [vmem:[#allocation3 + $0x248] sm:$0xf]
    %v1632 = vld [vmem:[#allocation3 + $0x24c] sm:$0xff]
    %v1633 = vld [vmem:[#allocation3 + $0x254] sm:$0xf]
    %v1634 = vld [vmem:[#allocation3 + $0x258] sm:$0xff]
    %v1635 = vld [vmem:[#allocation3 + $0x260] sm:$0xf]
    %v1636 = vld [vmem:[#allocation3 + $0x264] sm:$0xff]
    %v1637 = vld [vmem:[#allocation3 + $0x26c] sm:$0xf]
    %v1638 = vld [vmem:[#allocation3 + $0x270] sm:$0xff]
    %v1639 = vld [vmem:[#allocation3 + $0x278] sm:$0xf]
    %v1640 = vld [vmem:[#allocation3 + $0x27c] sm:$0xff]
    %v1641 = vld [vmem:[#allocation3 + $0x284] sm:$0xf]
    %v1642 = vld [vmem:[#allocation3 + $0x288] sm:$0xff]
    %v1643 = vld [vmem:[#allocation3 + $0x290] sm:$0xf]
    %v1644 = vld [vmem:[#allocation3 + $0x294] sm:$0xff]
    %v1645 = vld [vmem:[#allocation3 + $0x29c] sm:$0xf]
    %v1646 = vld [vmem:[#allocation3 + $0x2a0] sm:$0xff]
    %v1647 = vld [vmem:[#allocation3 + $0x2a8] sm:$0xf]
    %v1648 = vld [vmem:[#allocation3 + $0x2ac] sm:$0xff]
    %v1649 = vld [vmem:[#allocation3 + $0x2b4] sm:$0xf]
    %v1650 = vld [vmem:[#allocation3 + $0x2b8] sm:$0xff]
    %v1651 = vld [vmem:[#allocation3 + $0x2c0] sm:$0xf]
    %v1652 = vld [vmem:[#allocation3 + $0x2c4] sm:$0xff]
    %v1653 = vld [vmem:[#allocation3 + $0x2cc] sm:$0xf]
    %v1654 = vld [vmem:[#allocation3 + $0x2d0] sm:$0xff]
    %v1655 = vld [vmem:[#allocation3 + $0x2d8] sm:$0xf]
    %v1656 = vld [vmem:[#allocation3 + $0x2dc] sm:$0xff]
    %v1657 = vld [vmem:[#allocation3 + $0x2e4] sm:$0xf]
    %v1658 = vld [vmem:[#allocation3 + $0x2e8] sm:$0xff]
    %v1659 = vld [vmem:[#allocation3 + $0x2f0] sm:$0xf]
    %v1660 = vld [vmem:[#allocation3 + $0x2f4] sm:$0xff]
    %v1661 = vld [vmem:[#allocation3 + $0x2fc] sm:$0xf]
    %v1662 = vld [vmem:[%s6] sm:$0x7]
    %v1664 = vlaneseq
    %v1665 = vshrl.u32 %v1664, 7
    %v1666 = vsub.s32 0, %v1665
    %v1667 = vrot.slane %v1662, %v1666
    %v1668 = vlaneseq
    %v1669 = vshrl.u32 %v1668, 7
    %v1670 = vsub.s32 1, %v1669
    %v1671 = vrot.slane %v1662, %v1670
    %v1672 = vlaneseq
    %v1673 = vshrl.u32 %v1672, 7
    %v1674 = vsub.s32 2, %v1673
    %v1675 = vrot.slane %v1662, %v1674
    %v1807 = vunpack.c.l.b16 %v1534
    %v1808 = vunpack.c.h.b16 %v1534
    %v1809 = vunpack.c.l.b16 %v1535
    %v1810 = vunpack.c.l.b16 %v1536
    %v1811 = vunpack.c.h.b16 %v1536
    %v1812 = vunpack.c.l.b16 %v1537
    %v1813 = vunpack.c.l.b16 %v1538
    %v1814 = vunpack.c.h.b16 %v1538
    %v1815 = vunpack.c.l.b16 %v1539
    %v1816 = vunpack.c.l.b16 %v1540
    %v1817 = vunpack.c.h.b16 %v1540
    %v1818 = vunpack.c.l.b16 %v1541
    %v1819 = vunpack.c.l.b16 %v1542
    %v1820 = vunpack.c.h.b16 %v1542
    %v1821 = vunpack.c.l.b16 %v1543
    %v1822 = vunpack.c.l.b16 %v1544
    %v1823 = vunpack.c.h.b16 %v1544
    %v1824 = vunpack.c.l.b16 %v1545
    %v1825 = vunpack.c.l.b16 %v1546
    %v1826 = vunpack.c.h.b16 %v1546
    %v1827 = vunpack.c.l.b16 %v1547
    %v1828 = vunpack.c.l.b16 %v1548
    %v1829 = vunpack.c.h.b16 %v1548
    %v1830 = vunpack.c.l.b16 %v1549
    %v1831 = vunpack.c.l.b16 %v1550
    %v1832 = vunpack.c.h.b16 %v1550
    %v1833 = vunpack.c.l.b16 %v1551
    %v1834 = vunpack.c.l.b16 %v1552
    %v1835 = vunpack.c.h.b16 %v1552
    %v1836 = vunpack.c.l.b16 %v1553
    %v1837 = vunpack.c.l.b16 %v1554
    %v1838 = vunpack.c.h.b16 %v1554
    %v1839 = vunpack.c.l.b16 %v1555
    %v1840 = vunpack.c.l.b16 %v1556
    %v1841 = vunpack.c.h.b16 %v1556
    %v1842 = vunpack.c.l.b16 %v1557
    %v1843 = vunpack.c.l.b16 %v1558
    %v1844 = vunpack.c.h.b16 %v1558
    %v1845 = vunpack.c.l.b16 %v1559
    %v1846 = vunpack.c.l.b16 %v1560
    %v1847 = vunpack.c.h.b16 %v1560
    %v1848 = vunpack.c.l.b16 %v1561
    %v1849 = vunpack.c.l.b16 %v1562
    %v1850 = vunpack.c.h.b16 %v1562
    %v1851 = vunpack.c.l.b16 %v1563
    %v1852 = vunpack.c.l.b16 %v1564
    %v1853 = vunpack.c.h.b16 %v1564
    %v1854 = vunpack.c.l.b16 %v1565
    %v1855 = vunpack.c.l.b16 %v1566
    %v1856 = vunpack.c.h.b16 %v1566
    %v1857 = vunpack.c.l.b16 %v1567
    %v1858 = vunpack.c.l.b16 %v1568
    %v1859 = vunpack.c.h.b16 %v1568
    %v1860 = vunpack.c.l.b16 %v1569
    %v1861 = vunpack.c.l.b16 %v1570
    %v1862 = vunpack.c.h.b16 %v1570
    %v1863 = vunpack.c.l.b16 %v1571
    %v1864 = vunpack.c.l.b16 %v1572
    %v1865 = vunpack.c.h.b16 %v1572
    %v1866 = vunpack.c.l.b16 %v1573
    %v1867 = vunpack.c.l.b16 %v1574
    %v1868 = vunpack.c.h.b16 %v1574
    %v1869 = vunpack.c.l.b16 %v1575
    %v1870 = vunpack.c.l.b16 %v1576
    %v1871 = vunpack.c.h.b16 %v1576
    %v1872 = vunpack.c.l.b16 %v1577
    %v1873 = vunpack.c.l.b16 %v1578
    %v1874 = vunpack.c.h.b16 %v1578
    %v1875 = vunpack.c.l.b16 %v1579
    %v1876 = vunpack.c.l.b16 %v1580
    %v1877 = vunpack.c.h.b16 %v1580
    %v1878 = vunpack.c.l.b16 %v1581
    %v1879 = vunpack.c.l.b16 %v1582
    %v1880 = vunpack.c.h.b16 %v1582
    %v1881 = vunpack.c.l.b16 %v1583
    %v1882 = vunpack.c.l.b16 %v1584
    %v1883 = vunpack.c.h.b16 %v1584
    %v1884 = vunpack.c.l.b16 %v1585
    %v1885 = vunpack.c.l.b16 %v1586
    %v1886 = vunpack.c.h.b16 %v1586
    %v1887 = vunpack.c.l.b16 %v1587
    %v1888 = vunpack.c.l.b16 %v1588
    %v1889 = vunpack.c.h.b16 %v1588
    %v1890 = vunpack.c.l.b16 %v1589
    %v1891 = vunpack.c.l.b16 %v1590
    %v1892 = vunpack.c.h.b16 %v1590
    %v1893 = vunpack.c.l.b16 %v1591
    %v1894 = vunpack.c.l.b16 %v1592
    %v1895 = vunpack.c.h.b16 %v1592
    %v1896 = vunpack.c.l.b16 %v1593
    %v1897 = vunpack.c.l.b16 %v1594
    %v1898 = vunpack.c.h.b16 %v1594
    %v1899 = vunpack.c.l.b16 %v1595
    %v1900 = vunpack.c.l.b16 %v1596
    %v1901 = vunpack.c.h.b16 %v1596
    %v1902 = vunpack.c.l.b16 %v1597
    %v1903 = vunpack.c.l.b16 %v1598
    %v1904 = vunpack.c.h.b16 %v1598
    %v1905 = vunpack.c.l.b16 %v1599
    %v1906 = vunpack.c.l.b16 %v1600
    %v1907 = vunpack.c.h.b16 %v1600
    %v1908 = vunpack.c.l.b16 %v1601
    %v1909 = vunpack.c.l.b16 %v1602
    %v1910 = vunpack.c.h.b16 %v1602
    %v1911 = vunpack.c.l.b16 %v1603
    %v1912 = vunpack.c.l.b16 %v1604
    %v1913 = vunpack.c.h.b16 %v1604
    %v1914 = vunpack.c.l.b16 %v1605
    %v1915 = vunpack.c.l.b16 %v1606
    %v1916 = vunpack.c.h.b16 %v1606
    %v1917 = vunpack.c.l.b16 %v1607
    %v1918 = vunpack.c.l.b16 %v1608
    %v1919 = vunpack.c.h.b16 %v1608
    %v1920 = vunpack.c.l.b16 %v1609
    %v1921 = vunpack.c.l.b16 %v1610
    %v1922 = vunpack.c.h.b16 %v1610
    %v1923 = vunpack.c.l.b16 %v1611
    %v1924 = vunpack.c.l.b16 %v1612
    %v1925 = vunpack.c.h.b16 %v1612
    %v1926 = vunpack.c.l.b16 %v1613
    %v1927 = vunpack.c.l.b16 %v1614
    %v1928 = vunpack.c.h.b16 %v1614
    %v1929 = vunpack.c.l.b16 %v1615
    %v1930 = vunpack.c.l.b16 %v1616
    %v1931 = vunpack.c.h.b16 %v1616
    %v1932 = vunpack.c.l.b16 %v1617
    %v1933 = vunpack.c.l.b16 %v1618
    %v1934 = vunpack.c.h.b16 %v1618
    %v1935 = vunpack.c.l.b16 %v1619
    %v1936 = vunpack.c.l.b16 %v1620
    %v1937 = vunpack.c.h.b16 %v1620
    %v1938 = vunpack.c.l.b16 %v1621
    %v1939 = vunpack.c.l.b16 %v1622
    %v1940 = vunpack.c.h.b16 %v1622
    %v1941 = vunpack.c.l.b16 %v1623
    %v1942 = vunpack.c.l.b16 %v1624
    %v1943 = vunpack.c.h.b16 %v1624
    %v1944 = vunpack.c.l.b16 %v1625
    %v1945 = vunpack.c.l.b16 %v1626
    %v1946 = vunpack.c.h.b16 %v1626
    %v1947 = vunpack.c.l.b16 %v1627
    %v1948 = vunpack.c.l.b16 %v1628
    %v1949 = vunpack.c.h.b16 %v1628
    %v1950 = vunpack.c.l.b16 %v1629
    %v1951 = vunpack.c.l.b16 %v1630
    %v1952 = vunpack.c.h.b16 %v1630
    %v1953 = vunpack.c.l.b16 %v1631
    %v1954 = vunpack.c.l.b16 %v1632
    %v1955 = vunpack.c.h.b16 %v1632
    %v1956 = vunpack.c.l.b16 %v1633
    %v1957 = vunpack.c.l.b16 %v1634
    %v1958 = vunpack.c.h.b16 %v1634
    %v1959 = vunpack.c.l.b16 %v1635
    %v1960 = vunpack.c.l.b16 %v1636
    %v1961 = vunpack.c.h.b16 %v1636
    %v1962 = vunpack.c.l.b16 %v1637
    %v1963 = vunpack.c.l.b16 %v1638
    %v1964 = vunpack.c.h.b16 %v1638
    %v1965 = vunpack.c.l.b16 %v1639
    %v1966 = vunpack.c.l.b16 %v1640
    %v1967 = vunpack.c.h.b16 %v1640
    %v1968 = vunpack.c.l.b16 %v1641
    %v1969 = vunpack.c.l.b16 %v1642
    %v1970 = vunpack.c.h.b16 %v1642
    %v1971 = vunpack.c.l.b16 %v1643
    %v1972 = vunpack.c.l.b16 %v1644
    %v1973 = vunpack.c.h.b16 %v1644
    %v1974 = vunpack.c.l.b16 %v1645
    %v1975 = vunpack.c.l.b16 %v1646
    %v1976 = vunpack.c.h.b16 %v1646
    %v1977 = vunpack.c.l.b16 %v1647
    %v1978 = vunpack.c.l.b16 %v1648
    %v1979 = vunpack.c.h.b16 %v1648
    %v1980 = vunpack.c.l.b16 %v1649
    %v1981 = vunpack.c.l.b16 %v1650
    %v1982 = vunpack.c.h.b16 %v1650
    %v1983 = vunpack.c.l.b16 %v1651
    %v1984 = vunpack.c.l.b16 %v1652
    %v1985 = vunpack.c.h.b16 %v1652
    %v1986 = vunpack.c.l.b16 %v1653
    %v1987 = vunpack.c.l.b16 %v1654
    %v1988 = vunpack.c.h.b16 %v1654
    %v1989 = vunpack.c.l.b16 %v1655
    %v1990 = vunpack.c.l.b16 %v1656
    %v1991 = vunpack.c.h.b16 %v1656
    %v1992 = vunpack.c.l.b16 %v1657
    %v1993 = vunpack.c.l.b16 %v1658
    %v1994 = vunpack.c.h.b16 %v1658
    %v1995 = vunpack.c.l.b16 %v1659
    %v1996 = vunpack.c.l.b16 %v1660
    %v1997 = vunpack.c.h.b16 %v1660
    %v1998 = vunpack.c.l.b16 %v1661
    %v1999 = vpack.c.b16 %v1810, %v1807
    %v2000 = vpack.c.b16 %v1811, %v1808
    %v2001 = vpack.c.b16 %v1812, %v1809
    %v2002 = vpack.c.b16 %v1816, %v1813
    %v2003 = vpack.c.b16 %v1817, %v1814
    %v2004 = vpack.c.b16 %v1818, %v1815
    %v2005 = vpack.c.b16 %v1822, %v1819
    %v2006 = vpack.c.b16 %v1823, %v1820
    %v2007 = vpack.c.b16 %v1824, %v1821
    %v2008 = vpack.c.b16 %v1828, %v1825
    %v2009 = vpack.c.b16 %v1829, %v1826
    %v2010 = vpack.c.b16 %v1830, %v1827
    %v2011 = vpack.c.b16 %v1834, %v1831
    %v2012 = vpack.c.b16 %v1835, %v1832
    %v2013 = vpack.c.b16 %v1836, %v1833
    %v2014 = vpack.c.b16 %v1840, %v1837
    %v2015 = vpack.c.b16 %v1841, %v1838
    %v2016 = vpack.c.b16 %v1842, %v1839
    %v2017 = vpack.c.b16 %v1846, %v1843
    %v2018 = vpack.c.b16 %v1847, %v1844
    %v2019 = vpack.c.b16 %v1848, %v1845
    %v2020 = vpack.c.b16 %v1852, %v1849
    %v2021 = vpack.c.b16 %v1853, %v1850
    %v2022 = vpack.c.b16 %v1854, %v1851
    %v2023 = vpack.c.b16 %v1858, %v1855
    %v2024 = vpack.c.b16 %v1859, %v1856
    %v2025 = vpack.c.b16 %v1860, %v1857
    %v2026 = vpack.c.b16 %v1864, %v1861
    %v2027 = vpack.c.b16 %v1865, %v1862
    %v2028 = vpack.c.b16 %v1866, %v1863
    %v2029 = vpack.c.b16 %v1870, %v1867
    %v2030 = vpack.c.b16 %v1871, %v1868
    %v2031 = vpack.c.b16 %v1872, %v1869
    %v2032 = vpack.c.b16 %v1876, %v1873
    %v2033 = vpack.c.b16 %v1877, %v1874
    %v2034 = vpack.c.b16 %v1878, %v1875
    %v2035 = vpack.c.b16 %v1882, %v1879
    %v2036 = vpack.c.b16 %v1883, %v1880
    %v2037 = vpack.c.b16 %v1884, %v1881
    %v2038 = vpack.c.b16 %v1888, %v1885
    %v2039 = vpack.c.b16 %v1889, %v1886
    %v2040 = vpack.c.b16 %v1890, %v1887
    %v2041 = vpack.c.b16 %v1894, %v1891
    %v2042 = vpack.c.b16 %v1895, %v1892
    %v2043 = vpack.c.b16 %v1896, %v1893
    %v2044 = vpack.c.b16 %v1900, %v1897
    %v2045 = vpack.c.b16 %v1901, %v1898
    %v2046 = vpack.c.b16 %v1902, %v1899
    %v2047 = vpack.c.b16 %v1906, %v1903
    %v2048 = vpack.c.b16 %v1907, %v1904
    %v2049 = vpack.c.b16 %v1908, %v1905
    %v2050 = vpack.c.b16 %v1912, %v1909
    %v2051 = vpack.c.b16 %v1913, %v1910
    %v2052 = vpack.c.b16 %v1914, %v1911
    %v2053 = vpack.c.b16 %v1918, %v1915
    %v2054 = vpack.c.b16 %v1919, %v1916
    %v2055 = vpack.c.b16 %v1920, %v1917
    %v2056 = vpack.c.b16 %v1924, %v1921
    %v2057 = vpack.c.b16 %v1925, %v1922
    %v2058 = vpack.c.b16 %v1926, %v1923
    %v2059 = vpack.c.b16 %v1930, %v1927
    %v2060 = vpack.c.b16 %v1931, %v1928
    %v2061 = vpack.c.b16 %v1932, %v1929
    %v2062 = vpack.c.b16 %v1936, %v1933
    %v2063 = vpack.c.b16 %v1937, %v1934
    %v2064 = vpack.c.b16 %v1938, %v1935
    %v2065 = vpack.c.b16 %v1942, %v1939
    %v2066 = vpack.c.b16 %v1943, %v1940
    %v2067 = vpack.c.b16 %v1944, %v1941
    %v2068 = vpack.c.b16 %v1948, %v1945
    %v2069 = vpack.c.b16 %v1949, %v1946
    %v2070 = vpack.c.b16 %v1950, %v1947
    %v2071 = vpack.c.b16 %v1954, %v1951
    %v2072 = vpack.c.b16 %v1955, %v1952
    %v2073 = vpack.c.b16 %v1956, %v1953
    %v2074 = vpack.c.b16 %v1960, %v1957
    %v2075 = vpack.c.b16 %v1961, %v1958
    %v2076 = vpack.c.b16 %v1962, %v1959
    %v2077 = vpack.c.b16 %v1966, %v1963
    %v2078 = vpack.c.b16 %v1967, %v1964
    %v2079 = vpack.c.b16 %v1968, %v1965
    %v2080 = vpack.c.b16 %v1972, %v1969
    %v2081 = vpack.c.b16 %v1973, %v1970
    %v2082 = vpack.c.b16 %v1974, %v1971
    %v2083 = vpack.c.b16 %v1978, %v1975
    %v2084 = vpack.c.b16 %v1979, %v1976
    %v2085 = vpack.c.b16 %v1980, %v1977
    %v2086 = vpack.c.b16 %v1984, %v1981
    %v2087 = vpack.c.b16 %v1985, %v1982
    %v2088 = vpack.c.b16 %v1986, %v1983
    %v2089 = vpack.c.b16 %v1990, %v1987
    %v2090 = vpack.c.b16 %v1991, %v1988
    %v2091 = vpack.c.b16 %v1992, %v1989
    %v2092 = vpack.c.b16 %v1996, %v1993
    %v2093 = vpack.c.b16 %v1997, %v1994
    %v2094 = vpack.c.b16 %v1998, %v1995
    %2191 = vmatprep.subr.bf16.mxu0 %v2000
    %2192 = vmatpush1.bf16.msra.mxu0 %v1999
    %2193 = vmatprep.subr.bf16.mxu0 %v2003
    %2194 = vmatpush1.bf16.msra.mxu0 %v2002
    %2195 = vmatprep.subr.bf16.mxu0 %v2006
    %2196 = vmatpush1.bf16.msra.mxu0 %v2005
    %2197 = vmatprep.subr.bf16.mxu0 %v2009
    %2198 = vmatpush1.bf16.msra.mxu0 %v2008
    %2199 = vmatprep.subr.bf16.mxu0 %v2012
    %2200 = vmatpush1.bf16.msra.mxu0 %v2011
    %2201 = vmatprep.subr.bf16.mxu0 %v2015
    %2202 = vmatpush1.bf16.msra.mxu0 %v2014
    %2203 = vmatprep.subr.bf16.mxu0 %v2018
    %2204 = vmatpush1.bf16.msra.mxu0 %v2017
    %2205 = vmatprep.subr.bf16.mxu0 %v2021
    %2206 = vmatpush1.bf16.msra.mxu0 %v2020
    %2207 = vmatprep.subr.bf16.mxu0 %v2024
    %2208 = vmatpush1.bf16.msra.mxu0 %v2023
    %2209 = vmatprep.subr.bf16.mxu0 %v2027
    %2210 = vmatpush1.bf16.msra.mxu0 %v2026
    %2211 = vmatprep.subr.bf16.mxu0 %v2030
    %2212 = vmatpush1.bf16.msra.mxu0 %v2029
    %2213 = vmatprep.subr.bf16.mxu0 %v2033
    %2214 = vmatpush1.bf16.msra.mxu0 %v2032
    %2215 = vmatprep.subr.bf16.mxu0 %v2036
    %2216 = vmatpush1.bf16.msra.mxu0 %v2035
    %2217 = vmatprep.subr.bf16.mxu0 %v2039
    %2218 = vmatpush1.bf16.msra.mxu0 %v2038
    %2219 = vmatprep.subr.bf16.mxu0 %v2042
    %2220 = vmatpush1.bf16.msra.mxu0 %v2041
    %2221 = vmatprep.subr.bf16.mxu0 %v2045
    %2222 = vmatpush1.bf16.msra.mxu0 %v2044
    %2223 = vmatprep.mubr.bf16.mxu0 %v1471
    %2224 = vmatmul.mubr.bf16.gmra.mrb[0].mxu0 %v1470
    %v2225 = vpop.f32.mrb[0].mxu0
    %v2226 = vadd.f32 %v1667, %v2225
    %v2227 = vpop.f32.mrb[0].mxu0
    %v2228 = vadd.f32 %v1671, %v2227
    %v2229 = vpop.f32.mrb[0].mxu0
    %v2230 = vadd.f32 %v1667, %v2229
    %v2231 = vpop.f32.mrb[0].mxu0
    %v2232 = vadd.f32 %v1671, %v2231
    %2233 = vmatprep.mubr.bf16.mxu0 %v1475
    %2234 = vmatmul.mubr.bf16.gmra.mrb[0].mxu0 %v1474
    %v2235 = vpop.f32.mrb[0].mxu0
    %v2236 = vadd.f32 %v1667, %v2235
    %v2237 = vpop.f32.mrb[0].mxu0
    %v2238 = vadd.f32 %v1671, %v2237
    %v2239 = vpop.f32.mrb[0].mxu0
    %v2240 = vadd.f32 %v1667, %v2239
    %v2241 = vpop.f32.mrb[0].mxu0
    %v2242 = vadd.f32 %v1671, %v2241
    %2243 = vmatprep.mubr.bf16.mxu0 %v1479
    %2244 = vmatmul.mubr.bf16.gmra.mrb[0].mxu0 %v1478
    %v2245 = vpop.f32.mrb[0].mxu0
    %v2246 = vadd.f32 %v1667, %v2245
    %v2247 = vpop.f32.mrb[0].mxu0
    %v2248 = vadd.f32 %v1671, %v2247
    %v2249 = vpop.f32.mrb[0].mxu0
    %v2250 = vadd.f32 %v1667, %v2249
    %v2251 = vpop.f32.mrb[0].mxu0
    %v2252 = vadd.f32 %v1671, %v2251
    %2253 = vmatprep.mubr.bf16.mxu0 %v1483
    %2254 = vmatmul.mubr.bf16.gmra.mrb[0].mxu0 %v1482
    %v2255 = vpop.f32.mrb[0].mxu0
    %v2256 = vadd.f32 %v1667, %v2255
    %v2257 = vpop.f32.mrb[0].mxu0
    %v2258 = vadd.f32 %v1671, %v2257
    %v2259 = vpop.f32.mrb[0].mxu0
    %v2260 = vadd.f32 %v1667, %v2259
    %v2261 = vpop.f32.mrb[0].mxu0
    %v2262 = vadd.f32 %v1671, %v2261
    %2263 = vmatprep.mubr.bf16.mxu0 %v1487
    %2264 = vmatmul.mubr.bf16.gmra.mrb[0].mxu0 %v1486
    %v2265 = vpop.f32.mrb[0].mxu0
    %v2266 = vadd.f32 %v1667, %v2265
    %v2267 = vpop.f32.mrb[0].mxu0
    %v2268 = vadd.f32 %v1671, %v2267
    %v2269 = vpop.f32.mrb[0].mxu0
    %v2270 = vadd.f32 %v1667, %v2269
    %v2271 = vpop.f32.mrb[0].mxu0
    %v2272 = vadd.f32 %v1671, %v2271
    %2273 = vmatprep.mubr.bf16.mxu0 %v1491
    %2274 = vmatmul.mubr.bf16.gmra.mrb[0].mxu0 %v1490
    %v2275 = vpop.f32.mrb[0].mxu0
    %v2276 = vadd.f32 %v1667, %v2275
    %v2277 = vpop.f32.mrb[0].mxu0
    %v2278 = vadd.f32 %v1671, %v2277
    %v2279 = vpop.f32.mrb[0].mxu0
    %v2280 = vadd.f32 %v1667, %v2279
    %v2281 = vpop.f32.mrb[0].mxu0
    %v2282 = vadd.f32 %v1671, %v2281
    %2283 = vmatprep.mubr.bf16.mxu0 %v1495
    %2284 = vmatmul.mubr.bf16.gmra.mrb[0].mxu0 %v1494
    %v2285 = vpop.f32.mrb[0].mxu0
    %v2286 = vadd.f32 %v1667, %v2285
    %v2287 = vpop.f32.mrb[0].mxu0
    %v2288 = vadd.f32 %v1671, %v2287
    %v2289 = vpop.f32.mrb[0].mxu0
    %v2290 = vadd.f32 %v1667, %v2289
    %v2291 = vpop.f32.mrb[0].mxu0
    %v2292 = vadd.f32 %v1671, %v2291
    %2293 = vmatprep.mubr.bf16.mxu0 %v1499
    %2294 = vmatmul.mubr.bf16.gmra.mrb[0].mxu0 %v1498
    %v2295 = vpop.f32.mrb[0].mxu0
    %v2296 = vadd.f32 %v1667, %v2295
    %v2297 = vpop.f32.mrb[0].mxu0
    %v2298 = vadd.f32 %v1671, %v2297
    %v2299 = vpop.f32.mrb[0].mxu0
    %v2300 = vadd.f32 %v1667, %v2299
    %v2301 = vpop.f32.mrb[0].mxu0
    %v2302 = vadd.f32 %v1671, %v2301
    %2303 = vmatprep.mubr.bf16.mxu0 %v1503
    %2304 = vmatmul.mubr.bf16.gmra.mrb[0].mxu0 %v1502
    %v2305 = vpop.f32.mrb[0].mxu0
    %v2306 = vadd.f32 %v1667, %v2305
    %v2307 = vpop.f32.mrb[0].mxu0
    %v2308 = vadd.f32 %v1671, %v2307
    %v2309 = vpop.f32.mrb[0].mxu0
    %v2310 = vadd.f32 %v1667, %v2309
    %v2311 = vpop.f32.mrb[0].mxu0
    %v2312 = vadd.f32 %v1671, %v2311
    %2313 = vmatprep.mubr.bf16.mxu0 %v1507
    %2314 = vmatmul.mubr.bf16.gmra.mrb[0].mxu0 %v1506
    %v2315 = vpop.f32.mrb[0].mxu0
    %v2316 = vadd.f32 %v1667, %v2315
    %v2317 = vpop.f32.mrb[0].mxu0
    %v2318 = vadd.f32 %v1671, %v2317
    %v2319 = vpop.f32.mrb[0].mxu0
    %v2320 = vadd.f32 %v1667, %v2319
    %v2321 = vpop.f32.mrb[0].mxu0
    %v2322 = vadd.f32 %v1671, %v2321
    %2323 = vmatprep.mubr.bf16.mxu0 %v1511
    %2324 = vmatmul.mubr.bf16.gmra.mrb[0].mxu0 %v1510
    %v2325 = vpop.f32.mrb[0].mxu0
    %v2326 = vadd.f32 %v1667, %v2325
    %v2327 = vpop.f32.mrb[0].mxu0
    %v2328 = vadd.f32 %v1671, %v2327
    %v2329 = vpop.f32.mrb[0].mxu0
    %v2330 = vadd.f32 %v1667, %v2329
    %v2331 = vpop.f32.mrb[0].mxu0
    %v2332 = vadd.f32 %v1671, %v2331
    %2333 = vmatprep.mubr.bf16.mxu0 %v1515
    %2334 = vmatmul.mubr.bf16.gmra.mrb[0].mxu0 %v1514
    %v2335 = vpop.f32.mrb[0].mxu0
    %v2336 = vadd.f32 %v1667, %v2335
    %v2337 = vpop.f32.mrb[0].mxu0
    %v2338 = vadd.f32 %v1671, %v2337
    %v2339 = vpop.f32.mrb[0].mxu0
    %v2340 = vadd.f32 %v1667, %v2339
    %v2341 = vpop.f32.mrb[0].mxu0
    %v2342 = vadd.f32 %v1671, %v2341
    %2343 = vmatprep.mubr.bf16.mxu0 %v1519
    %2344 = vmatmul.mubr.bf16.gmra.mrb[0].mxu0 %v1518
    %v2345 = vpop.f32.mrb[0].mxu0
    %v2346 = vadd.f32 %v1667, %v2345
    %v2347 = vpop.f32.mrb[0].mxu0
    %v2348 = vadd.f32 %v1671, %v2347
    %v2349 = vpop.f32.mrb[0].mxu0
    %v2350 = vadd.f32 %v1667, %v2349
    %v2351 = vpop.f32.mrb[0].mxu0
    %v2352 = vadd.f32 %v1671, %v2351
    %2353 = vmatprep.mubr.bf16.mxu0 %v1523
    %2354 = vmatmul.mubr.bf16.gmra.mrb[0].mxu0 %v1522
    %v2355 = vpop.f32.mrb[0].mxu0
    %v2356 = vadd.f32 %v1667, %v2355
    %v2357 = vpop.f32.mrb[0].mxu0
    %v2358 = vadd.f32 %v1671, %v2357
    %v2359 = vpop.f32.mrb[0].mxu0
    %v2360 = vadd.f32 %v1667, %v2359
    %v2361 = vpop.f32.mrb[0].mxu0
    %v2362 = vadd.f32 %v1671, %v2361
    %2363 = vmatprep.mubr.bf16.mxu0 %v1527
    %2364 = vmatmul.mubr.bf16.gmra.mrb[0].mxu0 %v1526
    %v2365 = vpop.f32.mrb[0].mxu0
    %v2366 = vadd.f32 %v1667, %v2365
    %v2367 = vpop.f32.mrb[0].mxu0
    %v2368 = vadd.f32 %v1671, %v2367
    %v2369 = vpop.f32.mrb[0].mxu0
    %v2370 = vadd.f32 %v1667, %v2369
    %v2371 = vpop.f32.mrb[0].mxu0
    %v2372 = vadd.f32 %v1671, %v2371
    %2373 = vmatprep.mubr.bf16.mxu0 %v1531
    %2374 = vmatmul.mubr.bf16.gmra.mrb[0].mxu0 %v1530
    %v2375 = vpop.f32.mrb[0].mxu0
    %v2376 = vadd.f32 %v1667, %v2375
    %v2377 = vpop.f32.mrb[0].mxu0
    %v2378 = vadd.f32 %v1671, %v2377
    %v2379 = vpop.f32.mrb[0].mxu0
    %v2380 = vadd.f32 %v1667, %v2379
    %v2381 = vpop.f32.mrb[0].mxu0
    %v2382 = vadd.f32 %v1671, %v2381
    %2383 = vdwg.mxu0
    %2384 = vmatprep.subr.bf16.mxu0 %v2048
    %2385 = vmatpush1.bf16.msra.mxu0 %v2047
    %2386 = vmatprep.subr.bf16.mxu0 %v2051
    %2387 = vmatpush1.bf16.msra.mxu0 %v2050
    %2388 = vmatprep.subr.bf16.mxu0 %v2054
    %2389 = vmatpush1.bf16.msra.mxu0 %v2053
    %2390 = vmatprep.subr.bf16.mxu0 %v2057
    %2391 = vmatpush1.bf16.msra.mxu0 %v2056
    %2392 = vmatprep.subr.bf16.mxu0 %v2060
    %2393 = vmatpush1.bf16.msra.mxu0 %v2059
    %2394 = vmatprep.subr.bf16.mxu0 %v2063
    %2395 = vmatpush1.bf16.msra.mxu0 %v2062
    %2396 = vmatprep.subr.bf16.mxu0 %v2066
    %2397 = vmatpush1.bf16.msra.mxu0 %v2065
    %2398 = vmatprep.subr.bf16.mxu0 %v2069
    %2399 = vmatpush1.bf16.msra.mxu0 %v2068
    %2400 = vmatprep.subr.bf16.mxu0 %v2072
    %2401 = vmatpush1.bf16.msra.mxu0 %v2071
    %2402 = vmatprep.subr.bf16.mxu0 %v2075
    %2403 = vmatpush1.bf16.msra.mxu0 %v2074
    %2404 = vmatprep.subr.bf16.mxu0 %v2078
    %2405 = vmatpush1.bf16.msra.mxu0 %v2077
    %2406 = vmatprep.subr.bf16.mxu0 %v2081
    %2407 = vmatpush1.bf16.msra.mxu0 %v2080
    %2408 = vmatprep.subr.bf16.mxu0 %v2084
    %2409 = vmatpush1.bf16.msra.mxu0 %v2083
    %2410 = vmatprep.subr.bf16.mxu0 %v2087
    %2411 = vmatpush1.bf16.msra.mxu0 %v2086
    %2412 = vmatprep.subr.bf16.mxu0 %v2090
    %2413 = vmatpush1.bf16.msra.mxu0 %v2089
    %2414 = vmatprep.subr.bf16.mxu0 %v2093
    %2415 = vmatpush1.bf16.msra.mxu0 %v2092
    %2416 = vmatprep.mubr.bf16.mxu0 %v1473
    %2417 = vmatmul.mubr.bf16.gmra.mrb[0].mxu0 %v1472
    %v2418 = vpop.f32.mrb[0].mxu0
    %v2419 = vadd.f32 %v2226, %v2418
    %v2420 = vpop.f32.mrb[0].mxu0
    %v2421 = vadd.f32 %v2228, %v2420
    %v2422 = vpop.f32.mrb[0].mxu0
    %v2423 = vadd.f32 %v2230, %v2422
    %v2424 = vpop.f32.mrb[0].mxu0
    %v2425 = vadd.f32 %v2232, %v2424
    %2426 = vmatprep.mubr.bf16.mxu0 %v1477
    %2427 = vmatmul.mubr.bf16.gmra.mrb[0].mxu0 %v1476
    %v2428 = vpop.f32.mrb[0].mxu0
    %v2429 = vadd.f32 %v2236, %v2428
    %v2430 = vpop.f32.mrb[0].mxu0
    %v2431 = vadd.f32 %v2238, %v2430
    %v2432 = vpop.f32.mrb[0].mxu0
    %v2433 = vadd.f32 %v2240, %v2432
    %v2434 = vpop.f32.mrb[0].mxu0
    %v2435 = vadd.f32 %v2242, %v2434
    %2436 = vmatprep.mubr.bf16.mxu0 %v1481
    %2437 = vmatmul.mubr.bf16.gmra.mrb[0].mxu0 %v1480
    %v2438 = vpop.f32.mrb[0].mxu0
    %v2439 = vadd.f32 %v2246, %v2438
    %v2440 = vpop.f32.mrb[0].mxu0
    %v2441 = vadd.f32 %v2248, %v2440
    %v2442 = vpop.f32.mrb[0].mxu0
    %v2443 = vadd.f32 %v2250, %v2442
    %v2444 = vpop.f32.mrb[0].mxu0
    %v2445 = vadd.f32 %v2252, %v2444
    %2446 = vmatprep.mubr.bf16.mxu0 %v1485
    %2447 = vmatmul.mubr.bf16.gmra.mrb[0].mxu0 %v1484
    %v2448 = vpop.f32.mrb[0].mxu0
    %v2449 = vadd.f32 %v2256, %v2448
    %v2450 = vpop.f32.mrb[0].mxu0
    %v2451 = vadd.f32 %v2258, %v2450
    %v2452 = vpop.f32.mrb[0].mxu0
    %v2453 = vadd.f32 %v2260, %v2452
    %v2454 = vpop.f32.mrb[0].mxu0
    %v2455 = vadd.f32 %v2262, %v2454
    %2456 = vmatprep.mubr.bf16.mxu0 %v1489
    %2457 = vmatmul.mubr.bf16.gmra.mrb[0].mxu0 %v1488
    %v2458 = vpop.f32.mrb[0].mxu0
    %v2459 = vadd.f32 %v2266, %v2458
    %v2460 = vpop.f32.mrb[0].mxu0
    %v2461 = vadd.f32 %v2268, %v2460
    %v2462 = vpop.f32.mrb[0].mxu0
    %v2463 = vadd.f32 %v2270, %v2462
    %v2464 = vpop.f32.mrb[0].mxu0
    %v2465 = vadd.f32 %v2272, %v2464
    %2466 = vmatprep.mubr.bf16.mxu0 %v1493
    %2467 = vmatmul.mubr.bf16.gmra.mrb[0].mxu0 %v1492
    %v2468 = vpop.f32.mrb[0].mxu0
    %v2469 = vadd.f32 %v2276, %v2468
    %v2470 = vpop.f32.mrb[0].mxu0
    %v2471 = vadd.f32 %v2278, %v2470
    %v2472 = vpop.f32.mrb[0].mxu0
    %v2473 = vadd.f32 %v2280, %v2472
    %v2474 = vpop.f32.mrb[0].mxu0
    %v2475 = vadd.f32 %v2282, %v2474
    %2476 = vmatprep.mubr.bf16.mxu0 %v1497
    %2477 = vmatmul.mubr.bf16.gmra.mrb[0].mxu0 %v1496
    %v2478 = vpop.f32.mrb[0].mxu0
    %v2479 = vadd.f32 %v2286, %v2478
    %v2480 = vpop.f32.mrb[0].mxu0
    %v2481 = vadd.f32 %v2288, %v2480
    %v2482 = vpop.f32.mrb[0].mxu0
    %v2483 = vadd.f32 %v2290, %v2482
    %v2484 = vpop.f32.mrb[0].mxu0
    %v2485 = vadd.f32 %v2292, %v2484
    %2486 = vmatprep.mubr.bf16.mxu0 %v1501
    %2487 = vmatmul.mubr.bf16.gmra.mrb[0].mxu0 %v1500
    %v2488 = vpop.f32.mrb[0].mxu0
    %v2489 = vadd.f32 %v2296, %v2488
    %v2490 = vpop.f32.mrb[0].mxu0
    %v2491 = vadd.f32 %v2298, %v2490
    %v2492 = vpop.f32.mrb[0].mxu0
    %v2493 = vadd.f32 %v2300, %v2492
    %v2494 = vpop.f32.mrb[0].mxu0
    %v2495 = vadd.f32 %v2302, %v2494
    %2496 = vmatprep.mubr.bf16.mxu0 %v1505
    %2497 = vmatmul.mubr.bf16.gmra.mrb[0].mxu0 %v1504
    %v2498 = vpop.f32.mrb[0].mxu0
    %v2499 = vadd.f32 %v2306, %v2498
    %v2500 = vpop.f32.mrb[0].mxu0
    %v2501 = vadd.f32 %v2308, %v2500
    %v2502 = vpop.f32.mrb[0].mxu0
    %v2503 = vadd.f32 %v2310, %v2502
    %v2504 = vpop.f32.mrb[0].mxu0
    %v2505 = vadd.f32 %v2312, %v2504
    %2506 = vmatprep.mubr.bf16.mxu0 %v1509
    %2507 = vmatmul.mubr.bf16.gmra.mrb[0].mxu0 %v1508
    %v2508 = vpop.f32.mrb[0].mxu0
    %v2509 = vadd.f32 %v2316, %v2508
    %v2510 = vpop.f32.mrb[0].mxu0
    %v2511 = vadd.f32 %v2318, %v2510
    %v2512 = vpop.f32.mrb[0].mxu0
    %v2513 = vadd.f32 %v2320, %v2512
    %v2514 = vpop.f32.mrb[0].mxu0
    %v2515 = vadd.f32 %v2322, %v2514
    %2516 = vmatprep.mubr.bf16.mxu0 %v1513
    %2517 = vmatmul.mubr.bf16.gmra.mrb[0].mxu0 %v1512
    %v2518 = vpop.f32.mrb[0].mxu0
    %v2519 = vadd.f32 %v2326, %v2518
    %v2520 = vpop.f32.mrb[0].mxu0
    %v2521 = vadd.f32 %v2328, %v2520
    %v2522 = vpop.f32.mrb[0].mxu0
    %v2523 = vadd.f32 %v2330, %v2522
    %v2524 = vpop.f32.mrb[0].mxu0
    %v2525 = vadd.f32 %v2332, %v2524
    %2526 = vmatprep.mubr.bf16.mxu0 %v1517
    %2527 = vmatmul.mubr.bf16.gmra.mrb[0].mxu0 %v1516
    %v2528 = vpop.f32.mrb[0].mxu0
    %v2529 = vadd.f32 %v2336, %v2528
    %v2530 = vpop.f32.mrb[0].mxu0
    %v2531 = vadd.f32 %v2338, %v2530
    %v2532 = vpop.f32.mrb[0].mxu0
    %v2533 = vadd.f32 %v2340, %v2532
    %v2534 = vpop.f32.mrb[0].mxu0
    %v2535 = vadd.f32 %v2342, %v2534
    %2536 = vmatprep.mubr.bf16.mxu0 %v1521
    %2537 = vmatmul.mubr.bf16.gmra.mrb[0].mxu0 %v1520
    %v2538 = vpop.f32.mrb[0].mxu0
    %v2539 = vadd.f32 %v2346, %v2538
    %v2540 = vpop.f32.mrb[0].mxu0
    %v2541 = vadd.f32 %v2348, %v2540
    %v2542 = vpop.f32.mrb[0].mxu0
    %v2543 = vadd.f32 %v2350, %v2542
    %v2544 = vpop.f32.mrb[0].mxu0
    %v2545 = vadd.f32 %v2352, %v2544
    %2546 = vmatprep.mubr.bf16.mxu0 %v1525
    %2547 = vmatmul.mubr.bf16.gmra.mrb[0].mxu0 %v1524
    %v2548 = vpop.f32.mrb[0].mxu0
    %v2549 = vadd.f32 %v2356, %v2548
    %v2550 = vpop.f32.mrb[0].mxu0
    %v2551 = vadd.f32 %v2358, %v2550
    %v2552 = vpop.f32.mrb[0].mxu0
    %v2553 = vadd.f32 %v2360, %v2552
    %v2554 = vpop.f32.mrb[0].mxu0
    %v2555 = vadd.f32 %v2362, %v2554
    %2556 = vmatprep.mubr.bf16.mxu0 %v1529
    %2557 = vmatmul.mubr.bf16.gmra.mrb[0].mxu0 %v1528
    %v2558 = vpop.f32.mrb[0].mxu0
    %v2559 = vadd.f32 %v2366, %v2558
    %v2560 = vpop.f32.mrb[0].mxu0
    %v2561 = vadd.f32 %v2368, %v2560
    %v2562 = vpop.f32.mrb[0].mxu0
    %v2563 = vadd.f32 %v2370, %v2562
    %v2564 = vpop.f32.mrb[0].mxu0
    %v2565 = vadd.f32 %v2372, %v2564
    %2566 = vmatprep.mubr.bf16.mxu0 %v1533
    %2567 = vmatmul.mubr.bf16.gmra.mrb[0].mxu0 %v1532
    %v2568 = vpop.f32.mrb[0].mxu0
    %v2569 = vadd.f32 %v2376, %v2568
    %v2570 = vpop.f32.mrb[0].mxu0
    %v2571 = vadd.f32 %v2378, %v2570
    %v2572 = vpop.f32.mrb[0].mxu0
    %v2573 = vadd.f32 %v2380, %v2572
    %v2574 = vpop.f32.mrb[0].mxu0
    %v2575 = vadd.f32 %v2382, %v2574
    %2576 = vdwg.mxu0
    %2577 = vmatprep.subr.bf16.mxu0 0
    %2578 = vmatpush1.bf16.msra.mxu0 %v2001
    %2579 = vmatprep.subr.bf16.mxu0 0
    %2580 = vmatpush1.bf16.msra.mxu0 %v2004
    %2581 = vmatprep.subr.bf16.mxu0 0
    %2582 = vmatpush1.bf16.msra.mxu0 %v2007
    %2583 = vmatprep.subr.bf16.mxu0 0
    %2584 = vmatpush1.bf16.msra.mxu0 %v2010
    %2585 = vmatprep.subr.bf16.mxu0 0
    %2586 = vmatpush1.bf16.msra.mxu0 %v2013
    %2587 = vmatprep.subr.bf16.mxu0 0
    %2588 = vmatpush1.bf16.msra.mxu0 %v2016
    %2589 = vmatprep.subr.bf16.mxu0 0
    %2590 = vmatpush1.bf16.msra.mxu0 %v2019
    %2591 = vmatprep.subr.bf16.mxu0 0
    %2592 = vmatpush1.bf16.msra.mxu0 %v2022
    %2593 = vmatprep.subr.bf16.mxu0 0
    %2594 = vmatpush1.bf16.msra.mxu0 %v2025
    %2595 = vmatprep.subr.bf16.mxu0 0
    %2596 = vmatpush1.bf16.msra.mxu0 %v2028
    %2597 = vmatprep.subr.bf16.mxu0 0
    %2598 = vmatpush1.bf16.msra.mxu0 %v2031
    %2599 = vmatprep.subr.bf16.mxu0 0
    %2600 = vmatpush1.bf16.msra.mxu0 %v2034
    %2601 = vmatprep.subr.bf16.mxu0 0
    %2602 = vmatpush1.bf16.msra.mxu0 %v2037
    %2603 = vmatprep.subr.bf16.mxu0 0
    %2604 = vmatpush1.bf16.msra.mxu0 %v2040
    %2605 = vmatprep.subr.bf16.mxu0 0
    %2606 = vmatpush1.bf16.msra.mxu0 %v2043
    %2607 = vmatprep.subr.bf16.mxu0 0
    %2608 = vmatpush1.bf16.msra.mxu0 %v2046
    %2609 = vmatprep.mubr.bf16.mxu0 %v1471
    %2610 = vmatmul.mubr.bf16.gmra.mrb[0].mxu0 %v1470
    %v2611 = vpop.f32.mrb[0].mxu0
    %v2612 = vadd.f32 %v1675, %v2611
    %v2613 = vpop.f32.mrb[0].mxu0
    %v2614 = vpop.f32.mrb[0].mxu0
    %v2615 = vadd.f32 %v1675, %v2614
    %v2616 = vpop.f32.mrb[0].mxu0
    %2617 = vmatprep.mubr.bf16.mxu0 %v1475
    %2618 = vmatmul.mubr.bf16.gmra.mrb[0].mxu0 %v1474
    %v2619 = vpop.f32.mrb[0].mxu0
    %v2620 = vadd.f32 %v1675, %v2619
    %v2621 = vpop.f32.mrb[0].mxu0
    %v2622 = vpop.f32.mrb[0].mxu0
    %v2623 = vadd.f32 %v1675, %v2622
    %v2624 = vpop.f32.mrb[0].mxu0
    %2625 = vmatprep.mubr.bf16.mxu0 %v1479
    %2626 = vmatmul.mubr.bf16.gmra.mrb[0].mxu0 %v1478
    %v2627 = vpop.f32.mrb[0].mxu0
    %v2628 = vadd.f32 %v1675, %v2627
    %v2629 = vpop.f32.mrb[0].mxu0
    %v2630 = vpop.f32.mrb[0].mxu0
    %v2631 = vadd.f32 %v1675, %v2630
    %v2632 = vpop.f32.mrb[0].mxu0
    %2633 = vmatprep.mubr.bf16.mxu0 %v1483
    %2634 = vmatmul.mubr.bf16.gmra.mrb[0].mxu0 %v1482
    %v2635 = vpop.f32.mrb[0].mxu0
    %v2636 = vadd.f32 %v1675, %v2635
    %v2637 = vpop.f32.mrb[0].mxu0
    %v2638 = vpop.f32.mrb[0].mxu0
    %v2639 = vadd.f32 %v1675, %v2638
    %v2640 = vpop.f32.mrb[0].mxu0
    %2641 = vmatprep.mubr.bf16.mxu0 %v1487
    %2642 = vmatmul.mubr.bf16.gmra.mrb[0].mxu0 %v1486
    %v2643 = vpop.f32.mrb[0].mxu0
    %v2644 = vadd.f32 %v1675, %v2643
    %v2645 = vpop.f32.mrb[0].mxu0
    %v2646 = vpop.f32.mrb[0].mxu0
    %v2647 = vadd.f32 %v1675, %v2646
    %v2648 = vpop.f32.mrb[0].mxu0
    %2649 = vmatprep.mubr.bf16.mxu0 %v1491
    %2650 = vmatmul.mubr.bf16.gmra.mrb[0].mxu0 %v1490
    %v2651 = vpop.f32.mrb[0].mxu0
    %v2652 = vadd.f32 %v1675, %v2651
    %v2653 = vpop.f32.mrb[0].mxu0
    %v2654 = vpop.f32.mrb[0].mxu0
    %v2655 = vadd.f32 %v1675, %v2654
    %v2656 = vpop.f32.mrb[0].mxu0
    %2657 = vmatprep.mubr.bf16.mxu0 %v1495
    %2658 = vmatmul.mubr.bf16.gmra.mrb[0].mxu0 %v1494
    %v2659 = vpop.f32.mrb[0].mxu0
    %v2660 = vadd.f32 %v1675, %v2659
    %v2661 = vpop.f32.mrb[0].mxu0
    %v2662 = vpop.f32.mrb[0].mxu0
    %v2663 = vadd.f32 %v1675, %v2662
    %v2664 = vpop.f32.mrb[0].mxu0
    %2665 = vmatprep.mubr.bf16.mxu0 %v1499
    %2666 = vmatmul.mubr.bf16.gmra.mrb[0].mxu0 %v1498
    %v2667 = vpop.f32.mrb[0].mxu0
    %v2668 = vadd.f32 %v1675, %v2667
    %v2669 = vpop.f32.mrb[0].mxu0
    %v2670 = vpop.f32.mrb[0].mxu0
    %v2671 = vadd.f32 %v1675, %v2670
    %v2672 = vpop.f32.mrb[0].mxu0
    %2673 = vmatprep.mubr.bf16.mxu0 %v1503
    %2674 = vmatmul.mubr.bf16.gmra.mrb[0].mxu0 %v1502
    %v2675 = vpop.f32.mrb[0].mxu0
    %v2676 = vadd.f32 %v1675, %v2675
    %v2677 = vpop.f32.mrb[0].mxu0
    %v2678 = vpop.f32.mrb[0].mxu0
    %v2679 = vadd.f32 %v1675, %v2678
    %v2680 = vpop.f32.mrb[0].mxu0
    %2681 = vmatprep.mubr.bf16.mxu0 %v1507
    %2682 = vmatmul.mubr.bf16.gmra.mrb[0].mxu0 %v1506
    %v2683 = vpop.f32.mrb[0].mxu0
    %v2684 = vadd.f32 %v1675, %v2683
    %v2685 = vpop.f32.mrb[0].mxu0
    %v2686 = vpop.f32.mrb[0].mxu0
    %v2687 = vadd.f32 %v1675, %v2686
    %v2688 = vpop.f32.mrb[0].mxu0
    %2689 = vmatprep.mubr.bf16.mxu0 %v1511
    %2690 = vmatmul.mubr.bf16.gmra.mrb[0].mxu0 %v1510
    %v2691 = vpop.f32.mrb[0].mxu0
    %v2692 = vadd.f32 %v1675, %v2691
    %v2693 = vpop.f32.mrb[0].mxu0
    %v2694 = vpop.f32.mrb[0].mxu0
    %v2695 = vadd.f32 %v1675, %v2694
    %v2696 = vpop.f32.mrb[0].mxu0
    %2697 = vmatprep.mubr.bf16.mxu0 %v1515
    %2698 = vmatmul.mubr.bf16.gmra.mrb[0].mxu0 %v1514
    %v2699 = vpop.f32.mrb[0].mxu0
    %v2700 = vadd.f32 %v1675, %v2699
    %v2701 = vpop.f32.mrb[0].mxu0
    %v2702 = vpop.f32.mrb[0].mxu0
    %v2703 = vadd.f32 %v1675, %v2702
    %v2704 = vpop.f32.mrb[0].mxu0
    %2705 = vmatprep.mubr.bf16.mxu0 %v1519
    %2706 = vmatmul.mubr.bf16.gmra.mrb[0].mxu0 %v1518
    %v2707 = vpop.f32.mrb[0].mxu0
    %v2708 = vadd.f32 %v1675, %v2707
    %v2709 = vpop.f32.mrb[0].mxu0
    %v2710 = vpop.f32.mrb[0].mxu0
    %v2711 = vadd.f32 %v1675, %v2710
    %v2712 = vpop.f32.mrb[0].mxu0
    %2713 = vmatprep.mubr.bf16.mxu0 %v1523
    %2714 = vmatmul.mubr.bf16.gmra.mrb[0].mxu0 %v1522
    %v2715 = vpop.f32.mrb[0].mxu0
    %v2716 = vadd.f32 %v1675, %v2715
    %v2717 = vpop.f32.mrb[0].mxu0
    %v2718 = vpop.f32.mrb[0].mxu0
    %v2719 = vadd.f32 %v1675, %v2718
    %v2720 = vpop.f32.mrb[0].mxu0
    %2721 = vmatprep.mubr.bf16.mxu0 %v1527
    %2722 = vmatmul.mubr.bf16.gmra.mrb[0].mxu0 %v1526
    %v2723 = vpop.f32.mrb[0].mxu0
    %v2724 = vadd.f32 %v1675, %v2723
    %v2725 = vpop.f32.mrb[0].mxu0
    %v2726 = vpop.f32.mrb[0].mxu0
    %v2727 = vadd.f32 %v1675, %v2726
    %v2728 = vpop.f32.mrb[0].mxu0
    %2729 = vmatprep.mubr.bf16.mxu0 %v1531
    %2730 = vmatmul.mubr.bf16.gmra.mrb[0].mxu0 %v1530
    %v2731 = vpop.f32.mrb[0].mxu0
    %v2732 = vadd.f32 %v1675, %v2731
    %v2733 = vpop.f32.mrb[0].mxu0
    %v2734 = vpop.f32.mrb[0].mxu0
    %v2735 = vadd.f32 %v1675, %v2734
    %v2736 = vpop.f32.mrb[0].mxu0
    %2737 = vdwg.mxu0
    %2738 = vmatprep.subr.bf16.mxu0 0
    %2739 = vmatpush1.bf16.msra.mxu0 %v2049
    %2740 = vmatprep.subr.bf16.mxu0 0
    %2741 = vmatpush1.bf16.msra.mxu0 %v2052
    %2742 = vmatprep.subr.bf16.mxu0 0
    %2743 = vmatpush1.bf16.msra.mxu0 %v2055
    %2744 = vmatprep.subr.bf16.mxu0 0
    %2745 = vmatpush1.bf16.msra.mxu0 %v2058
    %2746 = vmatprep.subr.bf16.mxu0 0
    %2747 = vmatpush1.bf16.msra.mxu0 %v2061
    %2748 = vmatprep.subr.bf16.mxu0 0
    %2749 = vmatpush1.bf16.msra.mxu0 %v2064
    %2750 = vmatprep.subr.bf16.mxu0 0
    %2751 = vmatpush1.bf16.msra.mxu0 %v2067
    %2752 = vmatprep.subr.bf16.mxu0 0
    %2753 = vmatpush1.bf16.msra.mxu0 %v2070
    %2754 = vmatprep.subr.bf16.mxu0 0
    %2755 = vmatpush1.bf16.msra.mxu0 %v2073
    %2756 = vmatprep.subr.bf16.mxu0 0
    %2757 = vmatpush1.bf16.msra.mxu0 %v2076
    %2758 = vmatprep.subr.bf16.mxu0 0
    %2759 = vmatpush1.bf16.msra.mxu0 %v2079
    %2760 = vmatprep.subr.bf16.mxu0 0
    %2761 = vmatpush1.bf16.msra.mxu0 %v2082
    %2762 = vmatprep.subr.bf16.mxu0 0
    %2763 = vmatpush1.bf16.msra.mxu0 %v2085
    %2764 = vmatprep.subr.bf16.mxu0 0
    %2765 = vmatpush1.bf16.msra.mxu0 %v2088
    %2766 = vmatprep.subr.bf16.mxu0 0
    %2767 = vmatpush1.bf16.msra.mxu0 %v2091
    %2768 = vmatprep.subr.bf16.mxu0 0
    %2769 = vmatpush1.bf16.msra.mxu0 %v2094
    %2770 = vmatprep.mubr.bf16.mxu0 %v1473
    %2771 = vmatmul.mubr.bf16.gmra.mrb[0].mxu0 %v1472
    %v2772 = vpop.f32.mrb[0].mxu0
    %v2773 = vadd.f32 %v2612, %v2772
    %v2774 = vpop.f32.mrb[0].mxu0
    %v2775 = vpop.f32.mrb[0].mxu0
    %v2776 = vadd.f32 %v2615, %v2775
    %v2777 = vpop.f32.mrb[0].mxu0
    %2778 = vmatprep.mubr.bf16.mxu0 %v1477
    %2779 = vmatmul.mubr.bf16.gmra.mrb[0].mxu0 %v1476
    %v2780 = vpop.f32.mrb[0].mxu0
    %v2781 = vadd.f32 %v2620, %v2780
    %v2782 = vpop.f32.mrb[0].mxu0
    %v2783 = vpop.f32.mrb[0].mxu0
    %v2784 = vadd.f32 %v2623, %v2783
    %v2785 = vpop.f32.mrb[0].mxu0
    %2786 = vmatprep.mubr.bf16.mxu0 %v1481
    %2787 = vmatmul.mubr.bf16.gmra.mrb[0].mxu0 %v1480
    %v2788 = vpop.f32.mrb[0].mxu0
    %v2789 = vadd.f32 %v2628, %v2788
    %v2790 = vpop.f32.mrb[0].mxu0
    %v2791 = vpop.f32.mrb[0].mxu0
    %v2792 = vadd.f32 %v2631, %v2791
    %v2793 = vpop.f32.mrb[0].mxu0
    %2794 = vmatprep.mubr.bf16.mxu0 %v1485
    %2795 = vmatmul.mubr.bf16.gmra.mrb[0].mxu0 %v1484
    %v2796 = vpop.f32.mrb[0].mxu0
    %v2797 = vadd.f32 %v2636, %v2796
    %v2798 = vpop.f32.mrb[0].mxu0
    %v2799 = vpop.f32.mrb[0].mxu0
    %v2800 = vadd.f32 %v2639, %v2799
    %v2801 = vpop.f32.mrb[0].mxu0
    %2802 = vmatprep.mubr.bf16.mxu0 %v1489
    %2803 = vmatmul.mubr.bf16.gmra.mrb[0].mxu0 %v1488
    %v2804 = vpop.f32.mrb[0].mxu0
    %v2805 = vadd.f32 %v2644, %v2804
    %v2806 = vpop.f32.mrb[0].mxu0
    %v2807 = vpop.f32.mrb[0].mxu0
    %v2808 = vadd.f32 %v2647, %v2807
    %v2809 = vpop.f32.mrb[0].mxu0
    %2810 = vmatprep.mubr.bf16.mxu0 %v1493
    %2811 = vmatmul.mubr.bf16.gmra.mrb[0].mxu0 %v1492
    %v2812 = vpop.f32.mrb[0].mxu0
    %v2813 = vadd.f32 %v2652, %v2812
    %v2814 = vpop.f32.mrb[0].mxu0
    %v2815 = vpop.f32.mrb[0].mxu0
    %v2816 = vadd.f32 %v2655, %v2815
    %v2817 = vpop.f32.mrb[0].mxu0
    %2818 = vmatprep.mubr.bf16.mxu0 %v1497
    %2819 = vmatmul.mubr.bf16.gmra.mrb[0].mxu0 %v1496
    %v2820 = vpop.f32.mrb[0].mxu0
    %v2821 = vadd.f32 %v2660, %v2820
    %v2822 = vpop.f32.mrb[0].mxu0
    %v2823 = vpop.f32.mrb[0].mxu0
    %v2824 = vadd.f32 %v2663, %v2823
    %v2825 = vpop.f32.mrb[0].mxu0
    %2826 = vmatprep.mubr.bf16.mxu0 %v1501
    %2827 = vmatmul.mubr.bf16.gmra.mrb[0].mxu0 %v1500
    %v2828 = vpop.f32.mrb[0].mxu0
    %v2829 = vadd.f32 %v2668, %v2828
    %v2830 = vpop.f32.mrb[0].mxu0
    %v2831 = vpop.f32.mrb[0].mxu0
    %v2832 = vadd.f32 %v2671, %v2831
    %v2833 = vpop.f32.mrb[0].mxu0
    %2834 = vmatprep.mubr.bf16.mxu0 %v1505
    %2835 = vmatmul.mubr.bf16.gmra.mrb[0].mxu0 %v1504
    %v2836 = vpop.f32.mrb[0].mxu0
    %v2837 = vadd.f32 %v2676, %v2836
    %v2838 = vpop.f32.mrb[0].mxu0
    %v2839 = vpop.f32.mrb[0].mxu0
    %v2840 = vadd.f32 %v2679, %v2839
    %v2841 = vpop.f32.mrb[0].mxu0
    %2842 = vmatprep.mubr.bf16.mxu0 %v1509
    %2843 = vmatmul.mubr.bf16.gmra.mrb[0].mxu0 %v1508
    %v2844 = vpop.f32.mrb[0].mxu0
    %v2845 = vadd.f32 %v2684, %v2844
    %v2846 = vpop.f32.mrb[0].mxu0
    %v2847 = vpop.f32.mrb[0].mxu0
    %v2848 = vadd.f32 %v2687, %v2847
    %v2849 = vpop.f32.mrb[0].mxu0
    %2850 = vmatprep.mubr.bf16.mxu0 %v1513
    %2851 = vmatmul.mubr.bf16.gmra.mrb[0].mxu0 %v1512
    %v2852 = vpop.f32.mrb[0].mxu0
    %v2853 = vadd.f32 %v2692, %v2852
    %v2854 = vpop.f32.mrb[0].mxu0
    %v2855 = vpop.f32.mrb[0].mxu0
    %v2856 = vadd.f32 %v2695, %v2855
    %v2857 = vpop.f32.mrb[0].mxu0
    %2858 = vmatprep.mubr.bf16.mxu0 %v1517
    %2859 = vmatmul.mubr.bf16.gmra.mrb[0].mxu0 %v1516
    %v2860 = vpop.f32.mrb[0].mxu0
    %v2861 = vadd.f32 %v2700, %v2860
    %v2862 = vpop.f32.mrb[0].mxu0
    %v2863 = vpop.f32.mrb[0].mxu0
    %v2864 = vadd.f32 %v2703, %v2863
    %v2865 = vpop.f32.mrb[0].mxu0
    %2866 = vmatprep.mubr.bf16.mxu0 %v1521
    %2867 = vmatmul.mubr.bf16.gmra.mrb[0].mxu0 %v1520
    %v2868 = vpop.f32.mrb[0].mxu0
    %v2869 = vadd.f32 %v2708, %v2868
    %v2870 = vpop.f32.mrb[0].mxu0
    %v2871 = vpop.f32.mrb[0].mxu0
    %v2872 = vadd.f32 %v2711, %v2871
    %v2873 = vpop.f32.mrb[0].mxu0
    %2874 = vmatprep.mubr.bf16.mxu0 %v1525
    %2875 = vmatmul.mubr.bf16.gmra.mrb[0].mxu0 %v1524
    %v2876 = vpop.f32.mrb[0].mxu0
    %v2877 = vadd.f32 %v2716, %v2876
    %v2878 = vpop.f32.mrb[0].mxu0
    %v2879 = vpop.f32.mrb[0].mxu0
    %v2880 = vadd.f32 %v2719, %v2879
    %v2881 = vpop.f32.mrb[0].mxu0
    %2882 = vmatprep.mubr.bf16.mxu0 %v1529
    %2883 = vmatmul.mubr.bf16.gmra.mrb[0].mxu0 %v1528
    %v2884 = vpop.f32.mrb[0].mxu0
    %v2885 = vadd.f32 %v2724, %v2884
    %v2886 = vpop.f32.mrb[0].mxu0
    %v2887 = vpop.f32.mrb[0].mxu0
    %v2888 = vadd.f32 %v2727, %v2887
    %v2889 = vpop.f32.mrb[0].mxu0
    %2890 = vmatprep.mubr.bf16.mxu0 %v1533
    %2891 = vmatmul.mubr.bf16.gmra.mrb[0].mxu0 %v1532
    %v2892 = vpop.f32.mrb[0].mxu0
    %v2893 = vadd.f32 %v2732, %v2892
    %v2894 = vpop.f32.mrb[0].mxu0
    %v2895 = vpop.f32.mrb[0].mxu0
    %v2896 = vadd.f32 %v2735, %v2895
    %v2897 = vpop.f32.mrb[0].mxu0
    %2898 = vdwg.mxu0
    %v2899 = vmax.f32 %v2419, 0.0
    %v2900 = vmax.f32 %v2421, 0.0
    %v2901 = vmax.f32 %v2773, 0.0
    %v2902 = vmax.f32 %v2423, 0.0
    %v2903 = vmax.f32 %v2425, 0.0
    %v2904 = vmax.f32 %v2776, 0.0
    %v2905 = vmax.f32 %v2429, 0.0
    %v2906 = vmax.f32 %v2431, 0.0
    %v2907 = vmax.f32 %v2781, 0.0
    %v2908 = vmax.f32 %v2433, 0.0
    %v2909 = vmax.f32 %v2435, 0.0
    %v2910 = vmax.f32 %v2784, 0.0
    %v2911 = vmax.f32 %v2439, 0.0
    %v2912 = vmax.f32 %v2441, 0.0
    %v2913 = vmax.f32 %v2789, 0.0
    %v2914 = vmax.f32 %v2443, 0.0
    %v2915 = vmax.f32 %v2445, 0.0
    %v2916 = vmax.f32 %v2792, 0.0
    %v2917 = vmax.f32 %v2449, 0.0
    %v2918 = vmax.f32 %v2451, 0.0
    %v2919 = vmax.f32 %v2797, 0.0
    %v2920 = vmax.f32 %v2453, 0.0
    %v2921 = vmax.f32 %v2455, 0.0
    %v2922 = vmax.f32 %v2800, 0.0
    %v2923 = vmax.f32 %v2459, 0.0
    %v2924 = vmax.f32 %v2461, 0.0
    %v2925 = vmax.f32 %v2805, 0.0
    %v2926 = vmax.f32 %v2463, 0.0
    %v2927 = vmax.f32 %v2465, 0.0
    %v2928 = vmax.f32 %v2808, 0.0
    %v2929 = vmax.f32 %v2469, 0.0
    %v2930 = vmax.f32 %v2471, 0.0
    %v2931 = vmax.f32 %v2813, 0.0
    %v2932 = vmax.f32 %v2473, 0.0
    %v2933 = vmax.f32 %v2475, 0.0
    %v2934 = vmax.f32 %v2816, 0.0
    %v2935 = vmax.f32 %v2479, 0.0
    %v2936 = vmax.f32 %v2481, 0.0
    %v2937 = vmax.f32 %v2821, 0.0
    %v2938 = vmax.f32 %v2483, 0.0
    %v2939 = vmax.f32 %v2485, 0.0
    %v2940 = vmax.f32 %v2824, 0.0
    %v2941 = vmax.f32 %v2489, 0.0
    %v2942 = vmax.f32 %v2491, 0.0
    %v2943 = vmax.f32 %v2829, 0.0
    %v2944 = vmax.f32 %v2493, 0.0
    %v2945 = vmax.f32 %v2495, 0.0
    %v2946 = vmax.f32 %v2832, 0.0
    %v2947 = vmax.f32 %v2499, 0.0
    %v2948 = vmax.f32 %v2501, 0.0
    %v2949 = vmax.f32 %v2837, 0.0
    %v2950 = vmax.f32 %v2503, 0.0
    %v2951 = vmax.f32 %v2505, 0.0
    %v2952 = vmax.f32 %v2840, 0.0
    %v2953 = vmax.f32 %v2509, 0.0
    %v2954 = vmax.f32 %v2511, 0.0
    %v2955 = vmax.f32 %v2845, 0.0
    %v2956 = vmax.f32 %v2513, 0.0
    %v2957 = vmax.f32 %v2515, 0.0
    %v2958 = vmax.f32 %v2848, 0.0
    %v2959 = vmax.f32 %v2519, 0.0
    %v2960 = vmax.f32 %v2521, 0.0
    %v2961 = vmax.f32 %v2853, 0.0
    %v2962 = vmax.f32 %v2523, 0.0
    %v2963 = vmax.f32 %v2525, 0.0
    %v2964 = vmax.f32 %v2856, 0.0
    %v2965 = vmax.f32 %v2529, 0.0
    %v2966 = vmax.f32 %v2531, 0.0
    %v2967 = vmax.f32 %v2861, 0.0
    %v2968 = vmax.f32 %v2533, 0.0
    %v2969 = vmax.f32 %v2535, 0.0
    %v2970 = vmax.f32 %v2864, 0.0
    %v2971 = vmax.f32 %v2539, 0.0
    %v2972 = vmax.f32 %v2541, 0.0
    %v2973 = vmax.f32 %v2869, 0.0
    %v2974 = vmax.f32 %v2543, 0.0
    %v2975 = vmax.f32 %v2545, 0.0
    %v2976 = vmax.f32 %v2872, 0.0
    %v2977 = vmax.f32 %v2549, 0.0
    %v2978 = vmax.f32 %v2551, 0.0
    %v2979 = vmax.f32 %v2877, 0.0
    %v2980 = vmax.f32 %v2553, 0.0
    %v2981 = vmax.f32 %v2555, 0.0
    %v2982 = vmax.f32 %v2880, 0.0
    %v2983 = vmax.f32 %v2559, 0.0
    %v2984 = vmax.f32 %v2561, 0.0
    %v2985 = vmax.f32 %v2885, 0.0
    %v2986 = vmax.f32 %v2563, 0.0
    %v2987 = vmax.f32 %v2565, 0.0
    %v2988 = vmax.f32 %v2888, 0.0
    %v2989 = vmax.f32 %v2569, 0.0
    %v2990 = vmax.f32 %v2571, 0.0
    %v2991 = vmax.f32 %v2893, 0.0
    %v2992 = vmax.f32 %v2573, 0.0
    %v2993 = vmax.f32 %v2575, 0.0
    %v2994 = vmax.f32 %v2896, 0.0
    %v2995 = vld [vmem:[%s7] sm:$0x7]
    %v2997 = vlaneseq
    %v2998 = vshrl.u32 %v2997, 7
    %v2999 = vsub.s32 0, %v2998
    %v3000 = vrot.slane %v2995, %v2999
    %v3001 = vlaneseq
    %v3002 = vshrl.u32 %v3001, 7
    %v3003 = vsub.s32 1, %v3002
    %v3004 = vrot.slane %v2995, %v3003
    %v3005 = vlaneseq
    %v3006 = vshrl.u32 %v3005, 7
    %v3007 = vsub.s32 2, %v3006
    %v3008 = vrot.slane %v2995, %v3007
    %v3012 = vmul.f32 %v2899, %v3000
    %v3013 = vmul.f32 %v2900, %v3004
    %v3014 = vmul.f32 %v2901, %v3008
    %v3015 = vmul.f32 %v2902, %v3000
    %v3016 = vmul.f32 %v2903, %v3004
    %v3017 = vmul.f32 %v2904, %v3008
    %v3018 = vmul.f32 %v2905, %v3000
    %v3019 = vmul.f32 %v2906, %v3004
    %v3020 = vmul.f32 %v2907, %v3008
    %v3021 = vmul.f32 %v2908, %v3000
    %v3022 = vmul.f32 %v2909, %v3004
    %v3023 = vmul.f32 %v2910, %v3008
    %v3024 = vmul.f32 %v2911, %v3000
    %v3025 = vmul.f32 %v2912, %v3004
    %v3026 = vmul.f32 %v2913, %v3008
    %v3027 = vmul.f32 %v2914, %v3000
    %v3028 = vmul.f32 %v2915, %v3004
    %v3029 = vmul.f32 %v2916, %v3008
    %v3030 = vmul.f32 %v2917, %v3000
    %v3031 = vmul.f32 %v2918, %v3004
    %v3032 = vmul.f32 %v2919, %v3008
    %v3033 = vmul.f32 %v2920, %v3000
    %v3034 = vmul.f32 %v2921, %v3004
    %v3035 = vmul.f32 %v2922, %v3008
    %v3036 = vmul.f32 %v2923, %v3000
    %v3037 = vmul.f32 %v2924, %v3004
    %v3038 = vmul.f32 %v2925, %v3008
    %v3039 = vmul.f32 %v2926, %v3000
    %v3040 = vmul.f32 %v2927, %v3004
    %v3041 = vmul.f32 %v2928, %v3008
    %v3042 = vmul.f32 %v2929, %v3000
    %v3043 = vmul.f32 %v2930, %v3004
    %v3044 = vmul.f32 %v2931, %v3008
    %v3045 = vmul.f32 %v2932, %v3000
    %v3046 = vmul.f32 %v2933, %v3004
    %v3047 = vmul.f32 %v2934, %v3008
    %v3048 = vmul.f32 %v2935, %v3000
    %v3049 = vmul.f32 %v2936, %v3004
    %v3050 = vmul.f32 %v2937, %v3008
    %v3051 = vmul.f32 %v2938, %v3000
    %v3052 = vmul.f32 %v2939, %v3004
    %v3053 = vmul.f32 %v2940, %v3008
    %v3054 = vmul.f32 %v2941, %v3000
    %v3055 = vmul.f32 %v2942, %v3004
    %v3056 = vmul.f32 %v2943, %v3008
    %v3057 = vmul.f32 %v2944, %v3000
    %v3058 = vmul.f32 %v2945, %v3004
    %v3059 = vmul.f32 %v2946, %v3008
    %v3060 = vmul.f32 %v2947, %v3000
    %v3061 = vmul.f32 %v2948, %v3004
    %v3062 = vmul.f32 %v2949, %v3008
    %v3063 = vmul.f32 %v2950, %v3000
    %v3064 = vmul.f32 %v2951, %v3004
    %v3065 = vmul.f32 %v2952, %v3008
    %v3066 = vmul.f32 %v2953, %v3000
    %v3067 = vmul.f32 %v2954, %v3004
    %v3068 = vmul.f32 %v2955, %v3008
    %v3069 = vmul.f32 %v2956, %v3000
    %v3070 = vmul.f32 %v2957, %v3004
    %v3071 = vmul.f32 %v2958, %v3008
    %v3072 = vmul.f32 %v2959, %v3000
    %v3073 = vmul.f32 %v2960, %v3004
    %v3074 = vmul.f32 %v2961, %v3008
    %v3075 = vmul.f32 %v2962, %v3000
    %v3076 = vmul.f32 %v2963, %v3004
    %v3077 = vmul.f32 %v2964, %v3008
    %v3078 = vmul.f32 %v2965, %v3000
    %v3079 = vmul.f32 %v2966, %v3004
    %v3080 = vmul.f32 %v2967, %v3008
    %v3081 = vmul.f32 %v2968, %v3000
    %v3082 = vmul.f32 %v2969, %v3004
    %v3083 = vmul.f32 %v2970, %v3008
    %v3084 = vmul.f32 %v2971, %v3000
    %v3085 = vmul.f32 %v2972, %v3004
    %v3086 = vmul.f32 %v2973, %v3008
    %v3087 = vmul.f32 %v2974, %v3000
    %v3088 = vmul.f32 %v2975, %v3004
    %v3089 = vmul.f32 %v2976, %v3008
    %v3090 = vmul.f32 %v2977, %v3000
    %v3091 = vmul.f32 %v2978, %v3004
    %v3092 = vmul.f32 %v2979, %v3008
    %v3093 = vmul.f32 %v2980, %v3000
    %v3094 = vmul.f32 %v2981, %v3004
    %v3095 = vmul.f32 %v2982, %v3008
    %v3096 = vmul.f32 %v2983, %v3000
    %v3097 = vmul.f32 %v2984, %v3004
    %v3098 = vmul.f32 %v2985, %v3008
    %v3099 = vmul.f32 %v2986, %v3000
    %v3100 = vmul.f32 %v2987, %v3004
    %v3101 = vmul.f32 %v2988, %v3008
    %v3102 = vmul.f32 %v2989, %v3000
    %v3103 = vmul.f32 %v2990, %v3004
    %v3104 = vmul.f32 %v2991, %v3008
    %v3105 = vmul.f32 %v2992, %v3000
    %v3106 = vmul.f32 %v2993, %v3004
    %v3107 = vmul.f32 %v2994, %v3008
    %v3108 = vadd.f32 %v3012, %v3013
    %v3109 = vadd.f32 %v3108, %v3014
    %3110 = vadd.xlane.f32.xlu0 %v3109
    %v3111 = vpop.xlane.xlu0 %3110
    %v3112 = vadd.f32 %v3015, %v3016
    %v3113 = vadd.f32 %v3112, %v3017
    %3114 = vadd.xlane.f32.xlu0 %v3113
    %v3115 = vpop.xlane.xlu0 %3114
    %v3116 = vadd.f32 %v3018, %v3019
    %v3117 = vadd.f32 %v3116, %v3020
    %3118 = vadd.xlane.f32.xlu0 %v3117
    %v3119 = vpop.xlane.xlu0 %3118
    %v3120 = vadd.f32 %v3021, %v3022
    %v3121 = vadd.f32 %v3120, %v3023
    %3122 = vadd.xlane.f32.xlu0 %v3121
    %v3123 = vpop.xlane.xlu0 %3122
    %v3124 = vadd.f32 %v3024, %v3025
    %v3125 = vadd.f32 %v3124, %v3026
    %3126 = vadd.xlane.f32.xlu0 %v3125
    %v3127 = vpop.xlane.xlu0 %3126
    %v3128 = vadd.f32 %v3027, %v3028
    %v3129 = vadd.f32 %v3128, %v3029
    %3130 = vadd.xlane.f32.xlu0 %v3129
    %v3131 = vpop.xlane.xlu0 %3130
    %v3132 = vadd.f32 %v3030, %v3031
    %v3133 = vadd.f32 %v3132, %v3032
    %3134 = vadd.xlane.f32.xlu0 %v3133
    %v3135 = vpop.xlane.xlu0 %3134
    %v3136 = vadd.f32 %v3033, %v3034
    %v3137 = vadd.f32 %v3136, %v3035
    %3138 = vadd.xlane.f32.xlu0 %v3137
    %v3139 = vpop.xlane.xlu0 %3138
    %v3140 = vadd.f32 %v3036, %v3037
    %v3141 = vadd.f32 %v3140, %v3038
    %3142 = vadd.xlane.f32.xlu0 %v3141
    %v3143 = vpop.xlane.xlu0 %3142
    %v3144 = vadd.f32 %v3039, %v3040
    %v3145 = vadd.f32 %v3144, %v3041
    %3146 = vadd.xlane.f32.xlu0 %v3145
    %v3147 = vpop.xlane.xlu0 %3146
    %v3148 = vadd.f32 %v3042, %v3043
    %v3149 = vadd.f32 %v3148, %v3044
    %3150 = vadd.xlane.f32.xlu0 %v3149
    %v3151 = vpop.xlane.xlu0 %3150
    %v3152 = vadd.f32 %v3045, %v3046
    %v3153 = vadd.f32 %v3152, %v3047
    %3154 = vadd.xlane.f32.xlu0 %v3153
    %v3155 = vpop.xlane.xlu0 %3154
    %v3156 = vadd.f32 %v3048, %v3049
    %v3157 = vadd.f32 %v3156, %v3050
    %3158 = vadd.xlane.f32.xlu0 %v3157
    %v3159 = vpop.xlane.xlu0 %3158
    %v3160 = vadd.f32 %v3051, %v3052
    %v3161 = vadd.f32 %v3160, %v3053
    %3162 = vadd.xlane.f32.xlu0 %v3161
    %v3163 = vpop.xlane.xlu0 %3162
    %v3164 = vadd.f32 %v3054, %v3055
    %v3165 = vadd.f32 %v3164, %v3056
    %3166 = vadd.xlane.f32.xlu0 %v3165
    %v3167 = vpop.xlane.xlu0 %3166
    %v3168 = vadd.f32 %v3057, %v3058
    %v3169 = vadd.f32 %v3168, %v3059
    %3170 = vadd.xlane.f32.xlu0 %v3169
    %v3171 = vpop.xlane.xlu0 %3170
    %v3172 = vadd.f32 %v3060, %v3061
    %v3173 = vadd.f32 %v3172, %v3062
    %3174 = vadd.xlane.f32.xlu0 %v3173
    %v3175 = vpop.xlane.xlu0 %3174
    %v3176 = vadd.f32 %v3063, %v3064
    %v3177 = vadd.f32 %v3176, %v3065
    %3178 = vadd.xlane.f32.xlu0 %v3177
    %v3179 = vpop.xlane.xlu0 %3178
    %v3180 = vadd.f32 %v3066, %v3067
    %v3181 = vadd.f32 %v3180, %v3068
    %3182 = vadd.xlane.f32.xlu0 %v3181
    %v3183 = vpop.xlane.xlu0 %3182
    %v3184 = vadd.f32 %v3069, %v3070
    %v3185 = vadd.f32 %v3184, %v3071
    %3186 = vadd.xlane.f32.xlu0 %v3185
    %v3187 = vpop.xlane.xlu0 %3186
    %v3188 = vadd.f32 %v3072, %v3073
    %v3189 = vadd.f32 %v3188, %v3074
    %3190 = vadd.xlane.f32.xlu0 %v3189
    %v3191 = vpop.xlane.xlu0 %3190
    %v3192 = vadd.f32 %v3075, %v3076
    %v3193 = vadd.f32 %v3192, %v3077
    %3194 = vadd.xlane.f32.xlu0 %v3193
    %v3195 = vpop.xlane.xlu0 %3194
    %v3196 = vadd.f32 %v3078, %v3079
    %v3197 = vadd.f32 %v3196, %v3080
    %3198 = vadd.xlane.f32.xlu0 %v3197
    %v3199 = vpop.xlane.xlu0 %3198
    %v3200 = vadd.f32 %v3081, %v3082
    %v3201 = vadd.f32 %v3200, %v3083
    %3202 = vadd.xlane.f32.xlu0 %v3201
    %v3203 = vpop.xlane.xlu0 %3202
    %v3204 = vadd.f32 %v3084, %v3085
    %v3205 = vadd.f32 %v3204, %v3086
    %3206 = vadd.xlane.f32.xlu0 %v3205
    %v3207 = vpop.xlane.xlu0 %3206
    %v3208 = vadd.f32 %v3087, %v3088
    %v3209 = vadd.f32 %v3208, %v3089
    %3210 = vadd.xlane.f32.xlu0 %v3209
    %v3211 = vpop.xlane.xlu0 %3210
    %v3212 = vadd.f32 %v3090, %v3091
    %v3213 = vadd.f32 %v3212, %v3092
    %3214 = vadd.xlane.f32.xlu0 %v3213
    %v3215 = vpop.xlane.xlu0 %3214
    %v3216 = vadd.f32 %v3093, %v3094
    %v3217 = vadd.f32 %v3216, %v3095
    %3218 = vadd.xlane.f32.xlu0 %v3217
    %v3219 = vpop.xlane.xlu0 %3218
    %v3220 = vadd.f32 %v3096, %v3097
    %v3221 = vadd.f32 %v3220, %v3098
    %3222 = vadd.xlane.f32.xlu0 %v3221
    %v3223 = vpop.xlane.xlu0 %3222
    %v3224 = vadd.f32 %v3099, %v3100
    %v3225 = vadd.f32 %v3224, %v3101
    %3226 = vadd.xlane.f32.xlu0 %v3225
    %v3227 = vpop.xlane.xlu0 %3226
    %v3228 = vadd.f32 %v3102, %v3103
    %v3229 = vadd.f32 %v3228, %v3104
    %3230 = vadd.xlane.f32.xlu0 %v3229
    %v3231 = vpop.xlane.xlu0 %3230
    %v3232 = vadd.f32 %v3105, %v3106
    %v3233 = vadd.f32 %v3232, %v3107
    %3234 = vadd.xlane.f32.xlu0 %v3233
    %v3235 = vpop.xlane.xlu0 %3234
    %v3236 = vld [vmem:[#allocation2] sm:$0x1]
    %v3238 = vlaneseq
    %v3239 = vshrl.u32 %v3238, 7
    %v3240 = vsub.s32 0, %v3239
    %v3241 = vrot.slane %v3236, %v3240
    %v3243 = vadd.f32 %v3111, %v3241
    %v3244 = vadd.f32 %v3115, %v3241
    %v3245 = vadd.f32 %v3119, %v3241
    %v3246 = vadd.f32 %v3123, %v3241
    %v3247 = vadd.f32 %v3127, %v3241
    %v3248 = vadd.f32 %v3131, %v3241
    %v3249 = vadd.f32 %v3135, %v3241
    %v3250 = vadd.f32 %v3139, %v3241
    %v3251 = vadd.f32 %v3143, %v3241
    %v3252 = vadd.f32 %v3147, %v3241
    %v3253 = vadd.f32 %v3151, %v3241
    %v3254 = vadd.f32 %v3155, %v3241
    %v3255 = vadd.f32 %v3159, %v3241
    %v3256 = vadd.f32 %v3163, %v3241
    %v3257 = vadd.f32 %v3167, %v3241
    %v3258 = vadd.f32 %v3171, %v3241
    %v3259 = vadd.f32 %v3175, %v3241
    %v3260 = vadd.f32 %v3179, %v3241
    %v3261 = vadd.f32 %v3183, %v3241
    %v3262 = vadd.f32 %v3187, %v3241
    %v3263 = vadd.f32 %v3191, %v3241
    %v3264 = vadd.f32 %v3195, %v3241
    %v3265 = vadd.f32 %v3199, %v3241
    %v3266 = vadd.f32 %v3203, %v3241
    %v3267 = vadd.f32 %v3207, %v3241
    %v3268 = vadd.f32 %v3211, %v3241
    %v3269 = vadd.f32 %v3215, %v3241
    %v3270 = vadd.f32 %v3219, %v3241
    %v3271 = vadd.f32 %v3223, %v3241
    %v3272 = vadd.f32 %v3227, %v3241
    %v3273 = vadd.f32 %v3231, %v3241
    %v3274 = vadd.f32 %v3235, %v3241
    %vm3275 = vcmask 7168
    %3276 = vst.msk [vmem:[%s9] sm:$0xff] %vm3275, %v3243
    %3277 = vst.msk [vmem:[%s9 + $0x8] sm:$0xff] %vm3275, %v3244
    %3278 = vst.msk [vmem:[%s9 + $0x10] sm:$0xff] %vm3275, %v3245
    %3279 = vst.msk [vmem:[%s9 + $0x18] sm:$0xff] %vm3275, %v3246
    %3280 = vst.msk [vmem:[%s9 + $0x20] sm:$0xff] %vm3275, %v3247
    %3281 = vst.msk [vmem:[%s9 + $0x28] sm:$0xff] %vm3275, %v3248
    %3282 = vst.msk [vmem:[%s9 + $0x30] sm:$0xff] %vm3275, %v3249
    %3283 = vst.msk [vmem:[%s9 + $0x38] sm:$0xff] %vm3275, %v3250
    %3284 = vst.msk [vmem:[%s9 + $0x40] sm:$0xff] %vm3275, %v3251
    %3285 = vst.msk [vmem:[%s9 + $0x48] sm:$0xff] %vm3275, %v3252
    %3286 = vst.msk [vmem:[%s9 + $0x50] sm:$0xff] %vm3275, %v3253
    %3287 = vst.msk [vmem:[%s9 + $0x58] sm:$0xff] %vm3275, %v3254
    %3288 = vst.msk [vmem:[%s9 + $0x60] sm:$0xff] %vm3275, %v3255
    %3289 = vst.msk [vmem:[%s9 + $0x68] sm:$0xff] %vm3275, %v3256
    %3290 = vst.msk [vmem:[%s9 + $0x70] sm:$0xff] %vm3275, %v3257
    %3291 = vst.msk [vmem:[%s9 + $0x78] sm:$0xff] %vm3275, %v3258
    %3292 = vst.msk [vmem:[%s9 + $0x80] sm:$0xff] %vm3275, %v3259
    %3293 = vst.msk [vmem:[%s9 + $0x88] sm:$0xff] %vm3275, %v3260
    %3294 = vst.msk [vmem:[%s9 + $0x90] sm:$0xff] %vm3275, %v3261
    %3295 = vst.msk [vmem:[%s9 + $0x98] sm:$0xff] %vm3275, %v3262
    %3296 = vst.msk [vmem:[%s9 + $0xa0] sm:$0xff] %vm3275, %v3263
    %3297 = vst.msk [vmem:[%s9 + $0xa8] sm:$0xff] %vm3275, %v3264
    %3298 = vst.msk [vmem:[%s9 + $0xb0] sm:$0xff] %vm3275, %v3265
    %3299 = vst.msk [vmem:[%s9 + $0xb8] sm:$0xff] %vm3275, %v3266
    %3300 = vst.msk [vmem:[%s9 + $0xc0] sm:$0xff] %vm3275, %v3267
    %3301 = vst.msk [vmem:[%s9 + $0xc8] sm:$0xff] %vm3275, %v3268
    %3302 = vst.msk [vmem:[%s9 + $0xd0] sm:$0xff] %vm3275, %v3269
    %3303 = vst.msk [vmem:[%s9 + $0xd8] sm:$0xff] %vm3275, %v3270
    %3304 = vst.msk [vmem:[%s9 + $0xe0] sm:$0xff] %vm3275, %v3271
    %3305 = vst.msk [vmem:[%s9 + $0xe8] sm:$0xff] %vm3275, %v3272
    %3306 = vst.msk [vmem:[%s9 + $0xf0] sm:$0xff] %vm3275, %v3273
    %3307 = vst.msk [vmem:[%s9 + $0xf8] sm:$0xff] %vm3275, %v3274
    // Predicated region
    $region42: #{critic_forward.1} parent=1 // pred_check
      _
    $region43: #{critic_forward.1} parent=1 // pred_check_branch
      %3309 = sbr.rel (0) target = $region45
    $region44: #{critic_forward.1} parent=1 // pred_region
      _
    $region45: #{critic_forward.1} parent=1 // pred_fallthru
      _
    // Predicated region
    $region46: #{critic_forward.1} parent=1 // pred_check
      _
    $region47: #{critic_forward.1} parent=1 // pred_check_branch
      %3311 = sbr.rel (0) target = $region49
    $region48: #{critic_forward.1} parent=1 // pred_region
      _
    $region49: #{critic_forward.1} parent=1 // pred_fallthru
      _
    %3312 = vsyncpa [#allocation4], 1

</llo_original>
